<compile_context>
chip_gen: v6e
topology: v6e:2x2x1
jax: 0.10.0
libtpu: 0.0.40
codegen_flags: <defaults>
</compile_context>

<pallas_src>
import functools
import math

import jax
import jax.numpy as jnp
from jax.experimental import pallas as pl
from jax.experimental.pallas import tpu as pltpu


WEIGHT_ORDER = ("ln1_w", "ln1_b", "w_qkv", "b_qkv", "wo", "bo",
                "ln2_w", "ln2_b", "w1", "b1", "w2", "b2")


# ----------------------------------------------------------------------------
# Fused kernel: pos-add + all encoder layers for ONE image (one grid step).
# ----------------------------------------------------------------------------
def _block_kernel(x_ref, pos_ref,
                  ln1_w_ref, ln1_b_ref, w_qkv_ref, b_qkv_ref, wo_ref, bo_ref,
                  ln2_w_ref, ln2_b_ref, w1_ref, b1_ref, w2_ref, b2_ref,
                  o_ref, *, num_layers, num_heads, head_dim):
    _, C, S = o_ref.shape                 # per-image block: (1, channels, tokens)
    mm = w_qkv_ref.dtype                  # matmul weight dtype (bf16)
    eps = 1e-5

    # Seed the residual stream (channel-major) with x + pos_embed.
    x = x_ref[0] + pos_ref[0]             # (C, S) f32

    def layer_norm(v, w, b):              # normalize over channels (sublanes)
        mu = jnp.mean(v, axis=0, keepdims=True)
        d = v - mu
        var = jnp.mean(d * d, axis=0, keepdims=True)
        return d * jax.lax.rsqrt(var + eps) * w + b

    def linear(v, w, b):                  # (out,in) @ (in,S) + (out,1)
        return jnp.dot(w, v.astype(mm),
                       preferred_element_type=jnp.float32) + b

    # Statically unrolled layer loop (L is small); weights indexed with a
    # static layer index -> each slice is a compile-time-constant view.
    for l in range(num_layers):
        # ---- norm1 + multi-head self-attention + residual -------------------
        h = layer_norm(x, ln1_w_ref[l], ln1_b_ref[l])
        # Fused QKV projection: one matmul, 1/sqrt(head_dim) pre-folded into Q.
        qkv = linear(h, w_qkv_ref[l], b_qkv_ref[l])          # (3C, S) f32
        # Sublane-aligned slices + reshapes (no transposes / stacks / concats).
        q = qkv[0 * C:1 * C].reshape(num_heads, head_dim, S)  # (H, hd, S)
        k = qkv[1 * C:2 * C].reshape(num_heads, head_dim, S)
        v = qkv[2 * C:3 * C].reshape(num_heads, head_dim, S)

        # Scores: contract head_dim, batch over heads -> (H, S, S), f32.
        s = jax.lax.dot_general(q, k, (((1,), (1,)), ((0,), (0,))),
                                preferred_element_type=jnp.float32)
        s = s - jnp.max(s, axis=-1, keepdims=True)
        p = jnp.exp(s)
        p = p * pl.reciprocal(jnp.sum(p, axis=-1, keepdims=True), approx=False)

        # Context: ctx[h,d,i] = sum_j v[h,d,j] * p[h,i,j] -> (H, hd, S).
        ctx = jax.lax.dot_general(v, p, (((2,), (2,)), ((0,), (0,))),
                                  preferred_element_type=jnp.float32)
        attn = ctx.reshape(C, S)          # head merge is a sublane no-op
        x = x + linear(attn, wo_ref[l], bo_ref[l])

        # ---- norm2 + MLP + residual ------------------------------------------
        h2 = layer_norm(x, ln2_w_ref[l], ln2_b_ref[l])
        h2 = linear(h2, w1_ref[l], b1_ref[l])
        # TODO(synk): PyTorch nn.GELU defaults to the exact erf GELU; the tanh
        #             approximation is used here (guaranteed Mosaic lowering).
        h2 = 0.5 * h2 * (1.0 + jnp.tanh(0.7978845608028654 *
                                        (h2 + 0.044715 * h2 * h2 * h2)))
        h2 = linear(h2, w2_ref[l], b2_ref[l])
        x = x + h2

    o_ref[0] = x.astype(o_ref.dtype)


# ----------------------------------------------------------------------------
# One-time parameter prep: fuse / scale / cast / stack PyTorch-layout weights.
# ----------------------------------------------------------------------------
def prepare_block_params(encoder_params, pos_embed_sbc, *, num_heads,
                         matmul_dtype=jnp.bfloat16):
    C = encoder_params[0]["ln1_w"].shape[0]
    head_dim = C // num_heads
    scale = 1.0 / math.sqrt(head_dim)

    def col(vec):                         # per-channel vector -> (dim, 1) f32
        return vec.reshape(-1, 1).astype(jnp.float32)

    def stack(fn):                        # stack per-layer tensors on axis 0
        return jnp.stack([fn(p) for p in encoder_params], axis=0)

    def qkv_w(p):                         # single fused (3C, C) weight,
        w = p["in_proj_w"].astype(jnp.float32)        # scale folded into Q rows
        return jnp.concatenate([w[:C] * scale, w[C:]], axis=0).astype(matmul_dtype)

    def qkv_b(p):
        b = p["in_proj_b"].astype(jnp.float32)
        return col(jnp.concatenate([b[:C] * scale, b[C:]], axis=0))

    prepped = {
        "ln1_w": stack(lambda p: col(p["ln1_w"])),
        "ln1_b": stack(lambda p: col(p["ln1_b"])),
        "w_qkv": stack(qkv_w),
        "b_qkv": stack(qkv_b),
        # PyTorch weights are (out_features, in_features) == exactly the
        # orientation needed for channel-major W @ x.
        "wo": stack(lambda p: p["out_proj_w"].astype(matmul_dtype)),
        "bo": stack(lambda p: col(p["out_proj_b"])),
        "ln2_w": stack(lambda p: col(p["ln2_w"])),
        "ln2_b": stack(lambda p: col(p["ln2_b"])),
        "w1": stack(lambda p: p["fc1_w"].astype(matmul_dtype)),
        "b1": stack(lambda p: col(p["fc1_b"])),
        "w2": stack(lambda p: p["fc2_w"].astype(matmul_dtype)),
        "b2": stack(lambda p: col(p["fc2_b"])),
    }
    # pos_embed (S, B, C) -> kernel per-image channel-major layout (B, C, S).
    prepped["pos"] = jnp.transpose(pos_embed_sbc, (1, 2, 0)).astype(jnp.float32)
    return prepped


# ----------------------------------------------------------------------------
# Single pallas_call: grid over batch, all layers fused inside the kernel.
# ----------------------------------------------------------------------------
def _fused_block(x_bcs, prepped, *, num_heads):
    B, C, S = x_bcs.shape
    L = prepped["w_qkv"].shape[0]
    Hd = prepped["w1"].shape[1]
    head_dim = C // num_heads

    w_args = [prepped[k] for k in WEIGHT_ORDER]

    def resident(a):                      # whole array, constant block index:
        zeros = (0,) * a.ndim             # loaded once, VMEM-resident.
        return pl.BlockSpec(a.shape, lambda b: zeros)

    act_spec = pl.BlockSpec((1, C, S), lambda b: (b, 0, 0))

    kernel = functools.partial(_block_kernel, num_layers=L,
                               num_heads=num_heads, head_dim=head_dim)

    # Advisory cost estimate so XLA schedules the surrounding reshapes well.
    flops = B * L * (2 * S * C * 3 * C + 4 * num_heads * S * S * head_dim
                     + 2 * S * C * C + 4 * S * C * Hd)
    transcendentals = B * L * (num_heads * S * S + S * Hd + 2 * S)
    bytes_accessed = (3 * B * C * S * 4
                      + sum(int(a.size) * a.dtype.itemsize for a in w_args))

    return pl.pallas_call(
        kernel,
        out_shape=jax.ShapeDtypeStruct((B, C, S), jnp.float32),
        grid=(B,),
        in_specs=[act_spec, act_spec] + [resident(a) for a in w_args],
        out_specs=act_spec,
        compiler_params=pltpu.CompilerParams(
            dimension_semantics=("parallel",)),
        cost_estimate=pl.CostEstimate(flops=flops,
                                      transcendentals=transcendentals,
                                      bytes_accessed=bytes_accessed),
    )(x_bcs, prepped["pos"], *w_args)


# ----------------------------------------------------------------------------
# TransformerBlock forward: minimal layout glue around the fused kernel.
# ----------------------------------------------------------------------------
def transformer_block_forward(x_nchw, prepped, *, num_heads):
    """x_nchw: (B, C, H, W); conv = Identity (in_channels == out_channels)."""
    B, C, H, W = x_nchw.shape
    S = H * W
    # (B, C, H, W) -> (B, C, S): pure reshape, no host-side transposes.
    x_bcs = x_nchw.reshape(B, C, S)
    y_bcs = _fused_block(x_bcs, prepped, num_heads=num_heads)
    # (B, C, S) -> (B, C, H, W)  (== permute(1,2,0).reshape in the reference).
    return y_bcs.reshape(B, C, H, W)


# ----------------------------------------------------------------------------
# Deterministic PyTorch-layout parameter init.
# ----------------------------------------------------------------------------
def init_encoder_params(key, dim, mlp_ratio):
    hidden = dim * mlp_ratio
    ks = jax.random.split(key, 8)
    std = 0.02
    return {
        "ln1_w": jnp.ones((dim,), jnp.float32),
        "ln1_b": jnp.zeros((dim,), jnp.float32),
        "in_proj_w": std * jax.random.normal(ks[0], (3 * dim, dim), jnp.float32),
        "in_proj_b": std * jax.random.normal(ks[1], (3 * dim,), jnp.float32),
        "out_proj_w": std * jax.random.normal(ks[2], (dim, dim), jnp.float32),
        "out_proj_b": std * jax.random.normal(ks[3], (dim,), jnp.float32),
        "ln2_w": jnp.ones((dim,), jnp.float32),
        "ln2_b": jnp.zeros((dim,), jnp.float32),
        "fc1_w": std * jax.random.normal(ks[4], (hidden, dim), jnp.float32),
        "fc1_b": std * jax.random.normal(ks[5], (hidden,), jnp.float32),
        "fc2_w": std * jax.random.normal(ks[6], (dim, hidden), jnp.float32),
        "fc2_b": std * jax.random.normal(ks[7], (dim,), jnp.float32),
    }


if __name__ == "__main__":
    # Small config: in_channels = out_channels = 32 (conv = Identity),
    # num_heads = 4, num_encoders = 2, mlp_ratio = 2, dropout = 0.
    B, C, H, W = 2, 32, 4, 4
    num_heads = 4
    num_encoders = 2
    mlp_ratio = 2
    S = H * W

    root = jax.random.PRNGKey(0)
    kx, kp, kw = jax.random.split(root, 3)
    x = jax.random.normal(kx, (B, C, H, W), jnp.float32)
    pos_embed = 0.02 * jax.random.normal(kp, (S, B, C), jnp.float32)

    enc_keys = jax.random.split(kw, num_encoders)
    encoder_params = [init_encoder_params(k, C, mlp_ratio) for k in enc_keys]

    # One-time weight prep (qkv fuse / scale fold / cast / stack + pos relayout).
    prepped = prepare_block_params(encoder_params, pos_embed,
                                   num_heads=num_heads)

    fwd = jax.jit(functools.partial(transformer_block_forward,
                                    num_heads=num_heads))
    out = fwd(x, prepped)
    out = jax.block_until_ready(out)
    assert out.shape == (B, C, H, W)
    assert bool(jnp.all(jnp.isfinite(out)))
    print("KERNEL_OK")
</pallas_src>

<mosaic_0001>
module attributes {stable_mosaic.version = 11 : i64} {
  func.func @_block_kernel(%arg0: i32, %arg1: memref<1x32x16xf32, #tpu.memory_space<vmem>>, %arg2: memref<1x32x16xf32, #tpu.memory_space<vmem>>, %arg3: memref<2x32x1xf32, #tpu.memory_space<vmem>>, %arg4: memref<2x32x1xf32, #tpu.memory_space<vmem>>, %arg5: memref<2x96x32xbf16, #tpu.memory_space<vmem>>, %arg6: memref<2x96x1xf32, #tpu.memory_space<vmem>>, %arg7: memref<2x32x32xbf16, #tpu.memory_space<vmem>>, %arg8: memref<2x32x1xf32, #tpu.memory_space<vmem>>, %arg9: memref<2x32x1xf32, #tpu.memory_space<vmem>>, %arg10: memref<2x32x1xf32, #tpu.memory_space<vmem>>, %arg11: memref<2x64x32xbf16, #tpu.memory_space<vmem>>, %arg12: memref<2x64x1xf32, #tpu.memory_space<vmem>>, %arg13: memref<2x32x64xbf16, #tpu.memory_space<vmem>>, %arg14: memref<2x32x1xf32, #tpu.memory_space<vmem>>, %arg15: memref<1x32x16xf32, #tpu.memory_space<vmem>>) attributes {dimension_semantics = [#tpu.dimension_semantics<parallel>], iteration_bounds = array<i64: 2>, scalar_prefetch = 0 : i64, scratch_operands = 0 : i64, tpu.core_type = #tpu.core_type<tc>, window_params = [{transform_indices = @transform_0, window_bounds = array<i64: 1, 32, 16>}, {transform_indices = @transform_1, window_bounds = array<i64: 1, 32, 16>}, {pipeline_mode = #tpu.pipeline_mode<synchronous>, transform_indices = @transform_2, window_bounds = array<i64: 2, 32, 1>}, {pipeline_mode = #tpu.pipeline_mode<synchronous>, transform_indices = @transform_3, window_bounds = array<i64: 2, 32, 1>}, {pipeline_mode = #tpu.pipeline_mode<synchronous>, transform_indices = @transform_4, window_bounds = array<i64: 2, 96, 32>}, {pipeline_mode = #tpu.pipeline_mode<synchronous>, transform_indices = @transform_5, window_bounds = array<i64: 2, 96, 1>}, {pipeline_mode = #tpu.pipeline_mode<synchronous>, transform_indices = @transform_6, window_bounds = array<i64: 2, 32, 32>}, {pipeline_mode = #tpu.pipeline_mode<synchronous>, transform_indices = @transform_7, window_bounds = array<i64: 2, 32, 1>}, {pipeline_mode = #tpu.pipeline_mode<synchronous>, transform_indices = @transform_8, window_bounds = array<i64: 2, 32, 1>}, {pipeline_mode = #tpu.pipeline_mode<synchronous>, transform_indices = @transform_9, window_bounds = array<i64: 2, 32, 1>}, {pipeline_mode = #tpu.pipeline_mode<synchronous>, transform_indices = @transform_10, window_bounds = array<i64: 2, 64, 32>}, {pipeline_mode = #tpu.pipeline_mode<synchronous>, transform_indices = @transform_11, window_bounds = array<i64: 2, 64, 1>}, {pipeline_mode = #tpu.pipeline_mode<synchronous>, transform_indices = @transform_12, window_bounds = array<i64: 2, 32, 64>}, {pipeline_mode = #tpu.pipeline_mode<synchronous>, transform_indices = @transform_13, window_bounds = array<i64: 2, 32, 1>}, {transform_indices = @transform_14, window_bounds = array<i64: 1, 32, 16>}]} {
    %c0 = arith.constant 0 : index
    %c0_0 = arith.constant 0 : index
    %c0_1 = arith.constant 0 : index
    %0 = vector.load %arg1[%c0, %c0_0, %c0_1] : memref<1x32x16xf32, #tpu.memory_space<vmem>>, vector<1x32x16xf32>
    %1 = vector.shape_cast %0 : vector<1x32x16xf32> to vector<32x16xf32>
    %c0_2 = arith.constant 0 : index
    %c0_3 = arith.constant 0 : index
    %c0_4 = arith.constant 0 : index
    %2 = vector.load %arg2[%c0_2, %c0_3, %c0_4] : memref<1x32x16xf32, #tpu.memory_space<vmem>>, vector<1x32x16xf32>
    %3 = vector.shape_cast %2 : vector<1x32x16xf32> to vector<32x16xf32>
    %4 = arith.addf %1, %3 : vector<32x16xf32>
    %c0_5 = arith.constant 0 : index
    %c0_6 = arith.constant 0 : index
    %c0_7 = arith.constant 0 : index
    %5 = vector.load %arg3[%c0_5, %c0_6, %c0_7] : memref<2x32x1xf32, #tpu.memory_space<vmem>>, vector<1x32x1xf32>
    %6 = vector.shape_cast %5 : vector<1x32x1xf32> to vector<32x1xf32>
    %c0_8 = arith.constant 0 : index
    %c0_9 = arith.constant 0 : index
    %c0_10 = arith.constant 0 : index
    %7 = vector.load %arg4[%c0_8, %c0_9, %c0_10] : memref<2x32x1xf32, #tpu.memory_space<vmem>>, vector<1x32x1xf32>
    %8 = vector.shape_cast %7 : vector<1x32x1xf32> to vector<32x1xf32>
    %cst = arith.constant dense<0.000000e+00> : vector<16xf32>
    %9 = vector.multi_reduction <add>, %4, %cst [0] : vector<32x16xf32> to vector<16xf32>
    %10 = vector.shape_cast %9 : vector<16xf32> to vector<1x16xf32>
    %cst_11 = arith.constant 3.200000e+01 : f32
    %11 = vector.broadcast %cst_11 : f32 to vector<1x16xf32>
    %12 = arith.divf %10, %11 : vector<1x16xf32>
    %13 = vector.broadcast %12 : vector<1x16xf32> to vector<32x16xf32>
    %14 = arith.subf %4, %13 : vector<32x16xf32>
    %15 = arith.mulf %14, %14 : vector<32x16xf32>
    %cst_12 = arith.constant dense<0.000000e+00> : vector<16xf32>
    %16 = vector.multi_reduction <add>, %15, %cst_12 [0] : vector<32x16xf32> to vector<16xf32>
    %17 = vector.shape_cast %16 : vector<16xf32> to vector<1x16xf32>
    %cst_13 = arith.constant 3.200000e+01 : f32
    %18 = vector.broadcast %cst_13 : f32 to vector<1x16xf32>
    %19 = arith.divf %17, %18 : vector<1x16xf32>
    %cst_14 = arith.constant 9.99999974E-6 : f32
    %20 = vector.broadcast %cst_14 : f32 to vector<1x16xf32>
    %21 = arith.addf %19, %20 : vector<1x16xf32>
    %22 = math.rsqrt %21 : vector<1x16xf32>
    %23 = vector.broadcast %22 : vector<1x16xf32> to vector<32x16xf32>
    %24 = arith.mulf %14, %23 : vector<32x16xf32>
    %25 = vector.broadcast %6 : vector<32x1xf32> to vector<32x16xf32>
    %26 = arith.mulf %24, %25 : vector<32x16xf32>
    %27 = vector.broadcast %8 : vector<32x1xf32> to vector<32x16xf32>
    %28 = arith.addf %26, %27 : vector<32x16xf32>
    %c0_15 = arith.constant 0 : index
    %c0_16 = arith.constant 0 : index
    %c0_17 = arith.constant 0 : index
    %29 = vector.load %arg5[%c0_15, %c0_16, %c0_17] : memref<2x96x32xbf16, #tpu.memory_space<vmem>>, vector<1x96x32xbf16>
    %30 = vector.shape_cast %29 : vector<1x96x32xbf16> to vector<96x32xbf16>
    %c0_18 = arith.constant 0 : index
    %c0_19 = arith.constant 0 : index
    %c0_20 = arith.constant 0 : index
    %31 = vector.load %arg6[%c0_18, %c0_19, %c0_20] : memref<2x96x1xf32, #tpu.memory_space<vmem>>, vector<1x96x1xf32>
    %32 = vector.shape_cast %31 : vector<1x96x1xf32> to vector<96x1xf32>
    %33 = arith.truncf %28 : vector<32x16xf32> to vector<32x16xbf16>
    %cst_21 = arith.constant dense<0.000000e+00> : vector<96x16xf32>
    %34 = tpu.matmul %30, %33, %cst_21 {dimension_numbers = #tpu.dot_dimension_numbers<[1], [0], [0], [1], [0, 0, 1, 1], [], []>} : vector<96x32xbf16>, vector<32x16xbf16>, vector<96x16xf32> -> vector<96x16xf32>
    %35 = vector.broadcast %32 : vector<96x1xf32> to vector<96x16xf32>
    %36 = arith.addf %34, %35 : vector<96x16xf32>
    %37 = vector.extract_strided_slice %36 {offsets = [0, 0], sizes = [32, 16], strides = [1, 1]} : vector<96x16xf32> to vector<32x16xf32>
    %38 = vector.shape_cast %37 : vector<32x16xf32> to vector<4x8x16xf32>
    %39 = vector.extract_strided_slice %36 {offsets = [32, 0], sizes = [32, 16], strides = [1, 1]} : vector<96x16xf32> to vector<32x16xf32>
    %40 = vector.shape_cast %39 : vector<32x16xf32> to vector<4x8x16xf32>
    %41 = vector.extract_strided_slice %36 {offsets = [64, 0], sizes = [32, 16], strides = [1, 1]} : vector<96x16xf32> to vector<32x16xf32>
    %42 = vector.shape_cast %41 : vector<32x16xf32> to vector<4x8x16xf32>
    %cst_22 = arith.constant dense<0.000000e+00> : vector<4x16x16xf32>
    %43 = tpu.matmul %38, %40, %cst_22 {dimension_numbers = #tpu.dot_dimension_numbers<[1], [1], [2], [2], [0, 0, 0, 2, 1, 2], [0], [0]>} : vector<4x8x16xf32>, vector<4x8x16xf32>, vector<4x16x16xf32> -> vector<4x16x16xf32>
    %cst_23 = arith.constant dense<0xFF800000> : vector<4x16xf32>
    %44 = vector.multi_reduction <maximumf>, %43, %cst_23 [2] : vector<4x16x16xf32> to vector<4x16xf32>
    %45 = vector.shape_cast %44 : vector<4x16xf32> to vector<4x16x1xf32>
    %46 = vector.broadcast %45 : vector<4x16x1xf32> to vector<4x16x16xf32>
    %47 = arith.subf %43, %46 : vector<4x16x16xf32>
    %48 = math.exp %47 : vector<4x16x16xf32>
    %cst_24 = arith.constant dense<0.000000e+00> : vector<4x16xf32>
    %49 = vector.multi_reduction <add>, %48, %cst_24 [2] : vector<4x16x16xf32> to vector<4x16xf32>
    %50 = vector.shape_cast %49 : vector<4x16xf32> to vector<4x16x1xf32>
    %51 = tpu.reciprocal %50 : vector<4x16x1xf32> -> vector<4x16x1xf32>
    %52 = vector.broadcast %51 : vector<4x16x1xf32> to vector<4x16x16xf32>
    %53 = arith.mulf %48, %52 : vector<4x16x16xf32>
    %cst_25 = arith.constant dense<0.000000e+00> : vector<4x8x16xf32>
    %54 = tpu.matmul %42, %53, %cst_25 {dimension_numbers = #tpu.dot_dimension_numbers<[2], [2], [1], [1], [0, 0, 0, 1, 1, 1], [0], [0]>} : vector<4x8x16xf32>, vector<4x16x16xf32>, vector<4x8x16xf32> -> vector<4x8x16xf32>
    %55 = vector.shape_cast %54 : vector<4x8x16xf32> to vector<32x16xf32>
    %c0_26 = arith.constant 0 : index
    %c0_27 = arith.constant 0 : index
    %c0_28 = arith.constant 0 : index
    %56 = vector.load %arg7[%c0_26, %c0_27, %c0_28] : memref<2x32x32xbf16, #tpu.memory_space<vmem>>, vector<1x32x32xbf16>
    %57 = vector.shape_cast %56 : vector<1x32x32xbf16> to vector<32x32xbf16>
    %c0_29 = arith.constant 0 : index
    %c0_30 = arith.constant 0 : index
    %c0_31 = arith.constant 0 : index
    %58 = vector.load %arg8[%c0_29, %c0_30, %c0_31] : memref<2x32x1xf32, #tpu.memory_space<vmem>>, vector<1x32x1xf32>
    %59 = vector.shape_cast %58 : vector<1x32x1xf32> to vector<32x1xf32>
    %60 = arith.truncf %55 : vector<32x16xf32> to vector<32x16xbf16>
    %cst_32 = arith.constant dense<0.000000e+00> : vector<32x16xf32>
    %61 = tpu.matmul %57, %60, %cst_32 {dimension_numbers = #tpu.dot_dimension_numbers<[1], [0], [0], [1], [0, 0, 1, 1], [], []>} : vector<32x32xbf16>, vector<32x16xbf16>, vector<32x16xf32> -> vector<32x16xf32>
    %62 = vector.broadcast %59 : vector<32x1xf32> to vector<32x16xf32>
    %63 = arith.addf %61, %62 : vector<32x16xf32>
    %64 = arith.addf %4, %63 : vector<32x16xf32>
    %c0_33 = arith.constant 0 : index
    %c0_34 = arith.constant 0 : index
    %c0_35 = arith.constant 0 : index
    %65 = vector.load %arg9[%c0_33, %c0_34, %c0_35] : memref<2x32x1xf32, #tpu.memory_space<vmem>>, vector<1x32x1xf32>
    %66 = vector.shape_cast %65 : vector<1x32x1xf32> to vector<32x1xf32>
    %c0_36 = arith.constant 0 : index
    %c0_37 = arith.constant 0 : index
    %c0_38 = arith.constant 0 : index
    %67 = vector.load %arg10[%c0_36, %c0_37, %c0_38] : memref<2x32x1xf32, #tpu.memory_space<vmem>>, vector<1x32x1xf32>
    %68 = vector.shape_cast %67 : vector<1x32x1xf32> to vector<32x1xf32>
    %cst_39 = arith.constant dense<0.000000e+00> : vector<16xf32>
    %69 = vector.multi_reduction <add>, %64, %cst_39 [0] : vector<32x16xf32> to vector<16xf32>
    %70 = vector.shape_cast %69 : vector<16xf32> to vector<1x16xf32>
    %cst_40 = arith.constant 3.200000e+01 : f32
    %71 = vector.broadcast %cst_40 : f32 to vector<1x16xf32>
    %72 = arith.divf %70, %71 : vector<1x16xf32>
    %73 = vector.broadcast %72 : vector<1x16xf32> to vector<32x16xf32>
    %74 = arith.subf %64, %73 : vector<32x16xf32>
    %75 = arith.mulf %74, %74 : vector<32x16xf32>
    %cst_41 = arith.constant dense<0.000000e+00> : vector<16xf32>
    %76 = vector.multi_reduction <add>, %75, %cst_41 [0] : vector<32x16xf32> to vector<16xf32>
    %77 = vector.shape_cast %76 : vector<16xf32> to vector<1x16xf32>
    %cst_42 = arith.constant 3.200000e+01 : f32
    %78 = vector.broadcast %cst_42 : f32 to vector<1x16xf32>
    %79 = arith.divf %77, %78 : vector<1x16xf32>
    %cst_43 = arith.constant 9.99999974E-6 : f32
    %80 = vector.broadcast %cst_43 : f32 to vector<1x16xf32>
    %81 = arith.addf %79, %80 : vector<1x16xf32>
    %82 = math.rsqrt %81 : vector<1x16xf32>
    %83 = vector.broadcast %82 : vector<1x16xf32> to vector<32x16xf32>
    %84 = arith.mulf %74, %83 : vector<32x16xf32>
    %85 = vector.broadcast %66 : vector<32x1xf32> to vector<32x16xf32>
    %86 = arith.mulf %84, %85 : vector<32x16xf32>
    %87 = vector.broadcast %68 : vector<32x1xf32> to vector<32x16xf32>
    %88 = arith.addf %86, %87 : vector<32x16xf32>
    %c0_44 = arith.constant 0 : index
    %c0_45 = arith.constant 0 : index
    %c0_46 = arith.constant 0 : index
    %89 = vector.load %arg11[%c0_44, %c0_45, %c0_46] : memref<2x64x32xbf16, #tpu.memory_space<vmem>>, vector<1x64x32xbf16>
    %90 = vector.shape_cast %89 : vector<1x64x32xbf16> to vector<64x32xbf16>
    %c0_47 = arith.constant 0 : index
    %c0_48 = arith.constant 0 : index
    %c0_49 = arith.constant 0 : index
    %91 = vector.load %arg12[%c0_47, %c0_48, %c0_49] : memref<2x64x1xf32, #tpu.memory_space<vmem>>, vector<1x64x1xf32>
    %92 = vector.shape_cast %91 : vector<1x64x1xf32> to vector<64x1xf32>
    %93 = arith.truncf %88 : vector<32x16xf32> to vector<32x16xbf16>
    %cst_50 = arith.constant dense<0.000000e+00> : vector<64x16xf32>
    %94 = tpu.matmul %90, %93, %cst_50 {dimension_numbers = #tpu.dot_dimension_numbers<[1], [0], [0], [1], [0, 0, 1, 1], [], []>} : vector<64x32xbf16>, vector<32x16xbf16>, vector<64x16xf32> -> vector<64x16xf32>
    %95 = vector.broadcast %92 : vector<64x1xf32> to vector<64x16xf32>
    %96 = arith.addf %94, %95 : vector<64x16xf32>
    %cst_51 = arith.constant 5.000000e-01 : f32
    %97 = vector.broadcast %cst_51 : f32 to vector<64x16xf32>
    %98 = arith.mulf %97, %96 : vector<64x16xf32>
    %cst_52 = arith.constant 4.471500e-02 : f32
    %99 = vector.broadcast %cst_52 : f32 to vector<64x16xf32>
    %100 = arith.mulf %99, %96 : vector<64x16xf32>
    %101 = arith.mulf %100, %96 : vector<64x16xf32>
    %102 = arith.mulf %101, %96 : vector<64x16xf32>
    %103 = arith.addf %96, %102 : vector<64x16xf32>
    %cst_53 = arith.constant 0.797884583 : f32
    %104 = vector.broadcast %cst_53 : f32 to vector<64x16xf32>
    %105 = arith.mulf %104, %103 : vector<64x16xf32>
    %106 = math.tanh %105 : vector<64x16xf32>
    %cst_54 = arith.constant 1.000000e+00 : f32
    %107 = vector.broadcast %cst_54 : f32 to vector<64x16xf32>
    %108 = arith.addf %107, %106 : vector<64x16xf32>
    %109 = arith.mulf %98, %108 : vector<64x16xf32>
    %c0_55 = arith.constant 0 : index
    %c0_56 = arith.constant 0 : index
    %c0_57 = arith.constant 0 : index
    %110 = vector.load %arg13[%c0_55, %c0_56, %c0_57] : memref<2x32x64xbf16, #tpu.memory_space<vmem>>, vector<1x32x64xbf16>
    %111 = vector.shape_cast %110 : vector<1x32x64xbf16> to vector<32x64xbf16>
    %c0_58 = arith.constant 0 : index
    %c0_59 = arith.constant 0 : index
    %c0_60 = arith.constant 0 : index
    %112 = vector.load %arg14[%c0_58, %c0_59, %c0_60] : memref<2x32x1xf32, #tpu.memory_space<vmem>>, vector<1x32x1xf32>
    %113 = vector.shape_cast %112 : vector<1x32x1xf32> to vector<32x1xf32>
    %114 = arith.truncf %109 : vector<64x16xf32> to vector<64x16xbf16>
    %cst_61 = arith.constant dense<0.000000e+00> : vector<32x16xf32>
    %115 = tpu.matmul %111, %114, %cst_61 {dimension_numbers = #tpu.dot_dimension_numbers<[1], [0], [0], [1], [0, 0, 1, 1], [], []>} : vector<32x64xbf16>, vector<64x16xbf16>, vector<32x16xf32> -> vector<32x16xf32>
    %116 = vector.broadcast %113 : vector<32x1xf32> to vector<32x16xf32>
    %117 = arith.addf %115, %116 : vector<32x16xf32>
    %118 = arith.addf %64, %117 : vector<32x16xf32>
    %c1 = arith.constant 1 : index
    %c0_62 = arith.constant 0 : index
    %c0_63 = arith.constant 0 : index
    %119 = vector.load %arg3[%c1, %c0_62, %c0_63] : memref<2x32x1xf32, #tpu.memory_space<vmem>>, vector<1x32x1xf32>
    %120 = vector.shape_cast %119 : vector<1x32x1xf32> to vector<32x1xf32>
    %c1_64 = arith.constant 1 : index
    %c0_65 = arith.constant 0 : index
    %c0_66 = arith.constant 0 : index
    %121 = vector.load %arg4[%c1_64, %c0_65, %c0_66] : memref<2x32x1xf32, #tpu.memory_space<vmem>>, vector<1x32x1xf32>
    %122 = vector.shape_cast %121 : vector<1x32x1xf32> to vector<32x1xf32>
    %cst_67 = arith.constant dense<0.000000e+00> : vector<16xf32>
    %123 = vector.multi_reduction <add>, %118, %cst_67 [0] : vector<32x16xf32> to vector<16xf32>
    %124 = vector.shape_cast %123 : vector<16xf32> to vector<1x16xf32>
    %cst_68 = arith.constant 3.200000e+01 : f32
    %125 = vector.broadcast %cst_68 : f32 to vector<1x16xf32>
    %126 = arith.divf %124, %125 : vector<1x16xf32>
    %127 = vector.broadcast %126 : vector<1x16xf32> to vector<32x16xf32>
    %128 = arith.subf %118, %127 : vector<32x16xf32>
    %129 = arith.mulf %128, %128 : vector<32x16xf32>
    %cst_69 = arith.constant dense<0.000000e+00> : vector<16xf32>
    %130 = vector.multi_reduction <add>, %129, %cst_69 [0] : vector<32x16xf32> to vector<16xf32>
    %131 = vector.shape_cast %130 : vector<16xf32> to vector<1x16xf32>
    %cst_70 = arith.constant 3.200000e+01 : f32
    %132 = vector.broadcast %cst_70 : f32 to vector<1x16xf32>
    %133 = arith.divf %131, %132 : vector<1x16xf32>
    %cst_71 = arith.constant 9.99999974E-6 : f32
    %134 = vector.broadcast %cst_71 : f32 to vector<1x16xf32>
    %135 = arith.addf %133, %134 : vector<1x16xf32>
    %136 = math.rsqrt %135 : vector<1x16xf32>
    %137 = vector.broadcast %136 : vector<1x16xf32> to vector<32x16xf32>
    %138 = arith.mulf %128, %137 : vector<32x16xf32>
    %139 = vector.broadcast %120 : vector<32x1xf32> to vector<32x16xf32>
    %140 = arith.mulf %138, %139 : vector<32x16xf32>
    %141 = vector.broadcast %122 : vector<32x1xf32> to vector<32x16xf32>
    %142 = arith.addf %140, %141 : vector<32x16xf32>
    %c1_72 = arith.constant 1 : index
    %c0_73 = arith.constant 0 : index
    %c0_74 = arith.constant 0 : index
    %143 = vector.load %arg5[%c1_72, %c0_73, %c0_74] : memref<2x96x32xbf16, #tpu.memory_space<vmem>>, vector<1x96x32xbf16>
    %144 = vector.shape_cast %143 : vector<1x96x32xbf16> to vector<96x32xbf16>
    %c1_75 = arith.constant 1 : index
    %c0_76 = arith.constant 0 : index
    %c0_77 = arith.constant 0 : index
    %145 = vector.load %arg6[%c1_75, %c0_76, %c0_77] : memref<2x96x1xf32, #tpu.memory_space<vmem>>, vector<1x96x1xf32>
    %146 = vector.shape_cast %145 : vector<1x96x1xf32> to vector<96x1xf32>
    %147 = arith.truncf %142 : vector<32x16xf32> to vector<32x16xbf16>
    %cst_78 = arith.constant dense<0.000000e+00> : vector<96x16xf32>
    %148 = tpu.matmul %144, %147, %cst_78 {dimension_numbers = #tpu.dot_dimension_numbers<[1], [0], [0], [1], [0, 0, 1, 1], [], []>} : vector<96x32xbf16>, vector<32x16xbf16>, vector<96x16xf32> -> vector<96x16xf32>
    %149 = vector.broadcast %146 : vector<96x1xf32> to vector<96x16xf32>
    %150 = arith.addf %148, %149 : vector<96x16xf32>
    %151 = vector.extract_strided_slice %150 {offsets = [0, 0], sizes = [32, 16], strides = [1, 1]} : vector<96x16xf32> to vector<32x16xf32>
    %152 = vector.shape_cast %151 : vector<32x16xf32> to vector<4x8x16xf32>
    %153 = vector.extract_strided_slice %150 {offsets = [32, 0], sizes = [32, 16], strides = [1, 1]} : vector<96x16xf32> to vector<32x16xf32>
    %154 = vector.shape_cast %153 : vector<32x16xf32> to vector<4x8x16xf32>
    %155 = vector.extract_strided_slice %150 {offsets = [64, 0], sizes = [32, 16], strides = [1, 1]} : vector<96x16xf32> to vector<32x16xf32>
    %156 = vector.shape_cast %155 : vector<32x16xf32> to vector<4x8x16xf32>
    %cst_79 = arith.constant dense<0.000000e+00> : vector<4x16x16xf32>
    %157 = tpu.matmul %152, %154, %cst_79 {dimension_numbers = #tpu.dot_dimension_numbers<[1], [1], [2], [2], [0, 0, 0, 2, 1, 2], [0], [0]>} : vector<4x8x16xf32>, vector<4x8x16xf32>, vector<4x16x16xf32> -> vector<4x16x16xf32>
    %cst_80 = arith.constant dense<0xFF800000> : vector<4x16xf32>
    %158 = vector.multi_reduction <maximumf>, %157, %cst_80 [2] : vector<4x16x16xf32> to vector<4x16xf32>
    %159 = vector.shape_cast %158 : vector<4x16xf32> to vector<4x16x1xf32>
    %160 = vector.broadcast %159 : vector<4x16x1xf32> to vector<4x16x16xf32>
    %161 = arith.subf %157, %160 : vector<4x16x16xf32>
    %162 = math.exp %161 : vector<4x16x16xf32>
    %cst_81 = arith.constant dense<0.000000e+00> : vector<4x16xf32>
    %163 = vector.multi_reduction <add>, %162, %cst_81 [2] : vector<4x16x16xf32> to vector<4x16xf32>
    %164 = vector.shape_cast %163 : vector<4x16xf32> to vector<4x16x1xf32>
    %165 = tpu.reciprocal %164 : vector<4x16x1xf32> -> vector<4x16x1xf32>
    %166 = vector.broadcast %165 : vector<4x16x1xf32> to vector<4x16x16xf32>
    %167 = arith.mulf %162, %166 : vector<4x16x16xf32>
    %cst_82 = arith.constant dense<0.000000e+00> : vector<4x8x16xf32>
    %168 = tpu.matmul %156, %167, %cst_82 {dimension_numbers = #tpu.dot_dimension_numbers<[2], [2], [1], [1], [0, 0, 0, 1, 1, 1], [0], [0]>} : vector<4x8x16xf32>, vector<4x16x16xf32>, vector<4x8x16xf32> -> vector<4x8x16xf32>
    %169 = vector.shape_cast %168 : vector<4x8x16xf32> to vector<32x16xf32>
    %c1_83 = arith.constant 1 : index
    %c0_84 = arith.constant 0 : index
    %c0_85 = arith.constant 0 : index
    %170 = vector.load %arg7[%c1_83, %c0_84, %c0_85] : memref<2x32x32xbf16, #tpu.memory_space<vmem>>, vector<1x32x32xbf16>
    %171 = vector.shape_cast %170 : vector<1x32x32xbf16> to vector<32x32xbf16>
    %c1_86 = arith.constant 1 : index
    %c0_87 = arith.constant 0 : index
    %c0_88 = arith.constant 0 : index
    %172 = vector.load %arg8[%c1_86, %c0_87, %c0_88] : memref<2x32x1xf32, #tpu.memory_space<vmem>>, vector<1x32x1xf32>
    %173 = vector.shape_cast %172 : vector<1x32x1xf32> to vector<32x1xf32>
    %174 = arith.truncf %169 : vector<32x16xf32> to vector<32x16xbf16>
    %cst_89 = arith.constant dense<0.000000e+00> : vector<32x16xf32>
    %175 = tpu.matmul %171, %174, %cst_89 {dimension_numbers = #tpu.dot_dimension_numbers<[1], [0], [0], [1], [0, 0, 1, 1], [], []>} : vector<32x32xbf16>, vector<32x16xbf16>, vector<32x16xf32> -> vector<32x16xf32>
    %176 = vector.broadcast %173 : vector<32x1xf32> to vector<32x16xf32>
    %177 = arith.addf %175, %176 : vector<32x16xf32>
    %178 = arith.addf %118, %177 : vector<32x16xf32>
    %c1_90 = arith.constant 1 : index
    %c0_91 = arith.constant 0 : index
    %c0_92 = arith.constant 0 : index
    %179 = vector.load %arg9[%c1_90, %c0_91, %c0_92] : memref<2x32x1xf32, #tpu.memory_space<vmem>>, vector<1x32x1xf32>
    %180 = vector.shape_cast %179 : vector<1x32x1xf32> to vector<32x1xf32>
    %c1_93 = arith.constant 1 : index
    %c0_94 = arith.constant 0 : index
    %c0_95 = arith.constant 0 : index
    %181 = vector.load %arg10[%c1_93, %c0_94, %c0_95] : memref<2x32x1xf32, #tpu.memory_space<vmem>>, vector<1x32x1xf32>
    %182 = vector.shape_cast %181 : vector<1x32x1xf32> to vector<32x1xf32>
    %cst_96 = arith.constant dense<0.000000e+00> : vector<16xf32>
    %183 = vector.multi_reduction <add>, %178, %cst_96 [0] : vector<32x16xf32> to vector<16xf32>
    %184 = vector.shape_cast %183 : vector<16xf32> to vector<1x16xf32>
    %cst_97 = arith.constant 3.200000e+01 : f32
    %185 = vector.broadcast %cst_97 : f32 to vector<1x16xf32>
    %186 = arith.divf %184, %185 : vector<1x16xf32>
    %187 = vector.broadcast %186 : vector<1x16xf32> to vector<32x16xf32>
    %188 = arith.subf %178, %187 : vector<32x16xf32>
    %189 = arith.mulf %188, %188 : vector<32x16xf32>
    %cst_98 = arith.constant dense<0.000000e+00> : vector<16xf32>
    %190 = vector.multi_reduction <add>, %189, %cst_98 [0] : vector<32x16xf32> to vector<16xf32>
    %191 = vector.shape_cast %190 : vector<16xf32> to vector<1x16xf32>
    %cst_99 = arith.constant 3.200000e+01 : f32
    %192 = vector.broadcast %cst_99 : f32 to vector<1x16xf32>
    %193 = arith.divf %191, %192 : vector<1x16xf32>
    %cst_100 = arith.constant 9.99999974E-6 : f32
    %194 = vector.broadcast %cst_100 : f32 to vector<1x16xf32>
    %195 = arith.addf %193, %194 : vector<1x16xf32>
    %196 = math.rsqrt %195 : vector<1x16xf32>
    %197 = vector.broadcast %196 : vector<1x16xf32> to vector<32x16xf32>
    %198 = arith.mulf %188, %197 : vector<32x16xf32>
    %199 = vector.broadcast %180 : vector<32x1xf32> to vector<32x16xf32>
    %200 = arith.mulf %198, %199 : vector<32x16xf32>
    %201 = vector.broadcast %182 : vector<32x1xf32> to vector<32x16xf32>
    %202 = arith.addf %200, %201 : vector<32x16xf32>
    %c1_101 = arith.constant 1 : index
    %c0_102 = arith.constant 0 : index
    %c0_103 = arith.constant 0 : index
    %203 = vector.load %arg11[%c1_101, %c0_102, %c0_103] : memref<2x64x32xbf16, #tpu.memory_space<vmem>>, vector<1x64x32xbf16>
    %204 = vector.shape_cast %203 : vector<1x64x32xbf16> to vector<64x32xbf16>
    %c1_104 = arith.constant 1 : index
    %c0_105 = arith.constant 0 : index
    %c0_106 = arith.constant 0 : index
    %205 = vector.load %arg12[%c1_104, %c0_105, %c0_106] : memref<2x64x1xf32, #tpu.memory_space<vmem>>, vector<1x64x1xf32>
    %206 = vector.shape_cast %205 : vector<1x64x1xf32> to vector<64x1xf32>
    %207 = arith.truncf %202 : vector<32x16xf32> to vector<32x16xbf16>
    %cst_107 = arith.constant dense<0.000000e+00> : vector<64x16xf32>
    %208 = tpu.matmul %204, %207, %cst_107 {dimension_numbers = #tpu.dot_dimension_numbers<[1], [0], [0], [1], [0, 0, 1, 1], [], []>} : vector<64x32xbf16>, vector<32x16xbf16>, vector<64x16xf32> -> vector<64x16xf32>
    %209 = vector.broadcast %206 : vector<64x1xf32> to vector<64x16xf32>
    %210 = arith.addf %208, %209 : vector<64x16xf32>
    %cst_108 = arith.constant 5.000000e-01 : f32
    %211 = vector.broadcast %cst_108 : f32 to vector<64x16xf32>
    %212 = arith.mulf %211, %210 : vector<64x16xf32>
    %cst_109 = arith.constant 4.471500e-02 : f32
    %213 = vector.broadcast %cst_109 : f32 to vector<64x16xf32>
    %214 = arith.mulf %213, %210 : vector<64x16xf32>
    %215 = arith.mulf %214, %210 : vector<64x16xf32>
    %216 = arith.mulf %215, %210 : vector<64x16xf32>
    %217 = arith.addf %210, %216 : vector<64x16xf32>
    %cst_110 = arith.constant 0.797884583 : f32
    %218 = vector.broadcast %cst_110 : f32 to vector<64x16xf32>
    %219 = arith.mulf %218, %217 : vector<64x16xf32>
    %220 = math.tanh %219 : vector<64x16xf32>
    %cst_111 = arith.constant 1.000000e+00 : f32
    %221 = vector.broadcast %cst_111 : f32 to vector<64x16xf32>
    %222 = arith.addf %221, %220 : vector<64x16xf32>
    %223 = arith.mulf %212, %222 : vector<64x16xf32>
    %c1_112 = arith.constant 1 : index
    %c0_113 = arith.constant 0 : index
    %c0_114 = arith.constant 0 : index
    %224 = vector.load %arg13[%c1_112, %c0_113, %c0_114] : memref<2x32x64xbf16, #tpu.memory_space<vmem>>, vector<1x32x64xbf16>
    %225 = vector.shape_cast %224 : vector<1x32x64xbf16> to vector<32x64xbf16>
    %c1_115 = arith.constant 1 : index
    %c0_116 = arith.constant 0 : index
    %c0_117 = arith.constant 0 : index
    %226 = vector.load %arg14[%c1_115, %c0_116, %c0_117] : memref<2x32x1xf32, #tpu.memory_space<vmem>>, vector<1x32x1xf32>
    %227 = vector.shape_cast %226 : vector<1x32x1xf32> to vector<32x1xf32>
    %228 = arith.truncf %223 : vector<64x16xf32> to vector<64x16xbf16>
    %cst_118 = arith.constant dense<0.000000e+00> : vector<32x16xf32>
    %229 = tpu.matmul %225, %228, %cst_118 {dimension_numbers = #tpu.dot_dimension_numbers<[1], [0], [0], [1], [0, 0, 1, 1], [], []>} : vector<32x64xbf16>, vector<64x16xbf16>, vector<32x16xf32> -> vector<32x16xf32>
    %230 = vector.broadcast %227 : vector<32x1xf32> to vector<32x16xf32>
    %231 = arith.addf %229, %230 : vector<32x16xf32>
    %232 = arith.addf %178, %231 : vector<32x16xf32>
    %c0_119 = arith.constant 0 : index
    %c0_120 = arith.constant 0 : index
    %c0_121 = arith.constant 0 : index
    %233 = vector.load %arg15[%c0_119, %c0_120, %c0_121] : memref<1x32x16xf32, #tpu.memory_space<vmem>>, vector<1x32x16xf32>
    %234 = vector.shape_cast %233 : vector<1x32x16xf32> to vector<32x16xf32>
    %235 = vector.shape_cast %232 : vector<32x16xf32> to vector<1x32x16xf32>
    tpu.vector_store %arg15[%c0_119, %c0_120, %c0_121], %235 {strides = array<i32>} : memref<1x32x16xf32, #tpu.memory_space<vmem>>, vector<1x32x16xf32>,
    return
  }
  func.func @transform_0(%arg0: i32) -> (i32, i32, i32) {
    %c0_i32 = arith.constant 0 : i32
    %c0_i32_0 = arith.constant 0 : i32
    %c0_i32_1 = arith.constant 0 : i32
    return %arg0, %c0_i32, %c0_i32_0 : i32, i32, i32
  }
  func.func @transform_1(%arg0: i32) -> (i32, i32, i32) {
    %c0_i32 = arith.constant 0 : i32
    %c0_i32_0 = arith.constant 0 : i32
    %c0_i32_1 = arith.constant 0 : i32
    return %arg0, %c0_i32, %c0_i32_0 : i32, i32, i32
  }
  func.func @transform_2(%arg0: i32) -> (i32, i32, i32) {
    %c0_i32 = arith.constant 0 : i32
    %c0_i32_0 = arith.constant 0 : i32
    %c0_i32_1 = arith.constant 0 : i32
    %c0_i32_2 = arith.constant 0 : i32
    return %c0_i32, %c0_i32_0, %c0_i32_1 : i32, i32, i32
  }
  func.func @transform_3(%arg0: i32) -> (i32, i32, i32) {
    %c0_i32 = arith.constant 0 : i32
    %c0_i32_0 = arith.constant 0 : i32
    %c0_i32_1 = arith.constant 0 : i32
    %c0_i32_2 = arith.constant 0 : i32
    return %c0_i32, %c0_i32_0, %c0_i32_1 : i32, i32, i32
  }
  func.func @transform_4(%arg0: i32) -> (i32, i32, i32) {
    %c0_i32 = arith.constant 0 : i32
    %c0_i32_0 = arith.constant 0 : i32
    %c0_i32_1 = arith.constant 0 : i32
    %c0_i32_2 = arith.constant 0 : i32
    return %c0_i32, %c0_i32_0, %c0_i32_1 : i32, i32, i32
  }
  func.func @transform_5(%arg0: i32) -> (i32, i32, i32) {
    %c0_i32 = arith.constant 0 : i32
    %c0_i32_0 = arith.constant 0 : i32
    %c0_i32_1 = arith.constant 0 : i32
    %c0_i32_2 = arith.constant 0 : i32
    return %c0_i32, %c0_i32_0, %c0_i32_1 : i32, i32, i32
  }
  func.func @transform_6(%arg0: i32) -> (i32, i32, i32) {
    %c0_i32 = arith.constant 0 : i32
    %c0_i32_0 = arith.constant 0 : i32
    %c0_i32_1 = arith.constant 0 : i32
    %c0_i32_2 = arith.constant 0 : i32
    return %c0_i32, %c0_i32_0, %c0_i32_1 : i32, i32, i32
  }
  func.func @transform_7(%arg0: i32) -> (i32, i32, i32) {
    %c0_i32 = arith.constant 0 : i32
    %c0_i32_0 = arith.constant 0 : i32
    %c0_i32_1 = arith.constant 0 : i32
    %c0_i32_2 = arith.constant 0 : i32
    return %c0_i32, %c0_i32_0, %c0_i32_1 : i32, i32, i32
  }
  func.func @transform_8(%arg0: i32) -> (i32, i32, i32) {
    %c0_i32 = arith.constant 0 : i32
    %c0_i32_0 = arith.constant 0 : i32
    %c0_i32_1 = arith.constant 0 : i32
    %c0_i32_2 = arith.constant 0 : i32
    return %c0_i32, %c0_i32_0, %c0_i32_1 : i32, i32, i32
  }
  func.func @transform_9(%arg0: i32) -> (i32, i32, i32) {
    %c0_i32 = arith.constant 0 : i32
    %c0_i32_0 = arith.constant 0 : i32
    %c0_i32_1 = arith.constant 0 : i32
    %c0_i32_2 = arith.constant 0 : i32
    return %c0_i32, %c0_i32_0, %c0_i32_1 : i32, i32, i32
  }
  func.func @transform_10(%arg0: i32) -> (i32, i32, i32) {
    %c0_i32 = arith.constant 0 : i32
    %c0_i32_0 = arith.constant 0 : i32
    %c0_i32_1 = arith.constant 0 : i32
    %c0_i32_2 = arith.constant 0 : i32
    return %c0_i32, %c0_i32_0, %c0_i32_1 : i32, i32, i32
  }
  func.func @transform_11(%arg0: i32) -> (i32, i32, i32) {
    %c0_i32 = arith.constant 0 : i32
    %c0_i32_0 = arith.constant 0 : i32
    %c0_i32_1 = arith.constant 0 : i32
    %c0_i32_2 = arith.constant 0 : i32
    return %c0_i32, %c0_i32_0, %c0_i32_1 : i32, i32, i32
  }
  func.func @transform_12(%arg0: i32) -> (i32, i32, i32) {
    %c0_i32 = arith.constant 0 : i32
    %c0_i32_0 = arith.constant 0 : i32
    %c0_i32_1 = arith.constant 0 : i32
    %c0_i32_2 = arith.constant 0 : i32
    return %c0_i32, %c0_i32_0, %c0_i32_1 : i32, i32, i32
  }
  func.func @transform_13(%arg0: i32) -> (i32, i32, i32) {
    %c0_i32 = arith.constant 0 : i32
    %c0_i32_0 = arith.constant 0 : i32
    %c0_i32_1 = arith.constant 0 : i32
    %c0_i32_2 = arith.constant 0 : i32
    return %c0_i32, %c0_i32_0, %c0_i32_1 : i32, i32, i32
  }
  func.func @transform_14(%arg0: i32) -> (i32, i32, i32) {
    %c0_i32 = arith.constant 0 : i32
    %c0_i32_0 = arith.constant 0 : i32
    %c0_i32_1 = arith.constant 0 : i32
    return %arg0, %c0_i32, %c0_i32_0 : i32, i32, i32
  }
}

</mosaic_0001>

<llo_original>
// kernel: transformer_block_forward.1
$region0: #{transformer_block_forward.1}
  #allocation0 [shape = 'u32[]', space=smem, size = 0x4, offset = 0x4, fixed_abs, tag = 'smem constant byte address 0x4 - core index']
  #allocation1 [shape = 'u32[144,128]{1,0:T(1,128)}', space=vmem, size = 0x12000, scoped, tag = 'internal scratch']
  %s0 = inlined_call_operand.vmem [shape: f32[2,32,16], index: 0, kind: input, shape index: {}]
  %s1 = inlined_call_operand.vmem [shape: f32[2,32,16], index: 1, kind: input, shape index: {}]
  %s2 = inlined_call_operand.vmem [shape: f32[2,32,1], index: 2, kind: input, shape index: {}]
  %s3 = inlined_call_operand.vmem [shape: f32[2,32,1], index: 3, kind: input, shape index: {}]
  %s4 = inlined_call_operand.vmem [shape: bf16[2,96,32], index: 4, kind: input, shape index: {}]
  %s5 = inlined_call_operand.vmem [shape: f32[2,96,1], index: 5, kind: input, shape index: {}]
  %s6 = inlined_call_operand.vmem [shape: bf16[2,32,32], index: 6, kind: input, shape index: {}]
  %s7 = inlined_call_operand.vmem [shape: f32[2,32,1], index: 7, kind: input, shape index: {}]
  %s8 = inlined_call_operand.vmem [shape: f32[2,32,1], index: 8, kind: input, shape index: {}]
  %s9 = inlined_call_operand.vmem [shape: f32[2,32,1], index: 9, kind: input, shape index: {}]
  %s10 = inlined_call_operand.vmem [shape: bf16[2,64,32], index: 10, kind: input, shape index: {}]
  %s11 = inlined_call_operand.vmem [shape: f32[2,64,1], index: 11, kind: input, shape index: {}]
  %s12 = inlined_call_operand.vmem [shape: bf16[2,32,64], index: 12, kind: input, shape index: {}]
  %s13 = inlined_call_operand.vmem [shape: f32[2,32,1], index: 13, kind: input, shape index: {}]
  %s14 = inlined_call_operand.vmem [shape: f32[2,32,16], index: 14, kind: output, shape index: {}]
  %s15 = sld [smem:[#allocation0]]
  $region89: #{transformer_block_forward.1} parent=0
    _
  %s17 = ssub.s32 1, %s15
  %s18 = scalar_select 0, %s17, %s15
  loop: start=0, step=1, limit=4
  $region2: #{transformer_block_forward.1} parent=0 // loop_pre_header
    _
  $region3: #{transformer_block_forward.1} parent=0 // loop_header
    %s20 = sphi 0, %s24
    %p21 = scmp.ge.s32.totalorder %s20, 4
    %s30 = sphi 0, %s32
    %s33 = sphi 0, %s30
    %s34 = sphi 0, %s33
    %s50 = sphi 0, %s34
    %s56 = sphi 0, %s58
    %s59 = sphi 0, %s56
    %s60 = sphi 0, %s59
    %s76 = sphi 0, %s60
    %s80 = sphi 0, %s80
    %s82 = sphi 0, %s80
    %s83 = sphi 0, %s82
    %s97 = sphi 0, %s83
    %s101 = sphi 0, %s101
    %s103 = sphi 0, %s101
    %s104 = sphi 0, %s103
    %s118 = sphi 0, %s104
    %s122 = sphi 0, %s122
    %s124 = sphi 0, %s122
    %s125 = sphi 0, %s124
    %s139 = sphi 0, %s125
    %s143 = sphi 0, %s143
    %s145 = sphi 0, %s143
    %s146 = sphi 0, %s145
    %s160 = sphi 0, %s146
    %s164 = sphi 0, %s164
    %s166 = sphi 0, %s164
    %s167 = sphi 0, %s166
    %s181 = sphi 0, %s167
    %s185 = sphi 0, %s185
    %s187 = sphi 0, %s185
    %s188 = sphi 0, %s187
    %s202 = sphi 0, %s188
    %s206 = sphi 0, %s206
    %s208 = sphi 0, %s206
    %s209 = sphi 0, %s208
    %s223 = sphi 0, %s209
    %s227 = sphi 0, %s227
    %s229 = sphi 0, %s227
    %s230 = sphi 0, %s229
    %s244 = sphi 0, %s230
    %s248 = sphi 0, %s248
    %s250 = sphi 0, %s248
    %s251 = sphi 0, %s250
    %s265 = sphi 0, %s251
    %s269 = sphi 0, %s269
    %s271 = sphi 0, %s269
    %s272 = sphi 0, %s271
    %s286 = sphi 0, %s272
    %s290 = sphi 0, %s290
    %s292 = sphi 0, %s290
    %s293 = sphi 0, %s292
    %s307 = sphi 0, %s293
    %s311 = sphi 0, %s311
    %s313 = sphi 0, %s311
    %s314 = sphi 0, %s313
    %s328 = sphi 0, %s314
    %s334 = sphi 0, %s336
    %s337 = sphi 0, %s334
    %s338 = sphi 0, %s337
    %s354 = sphi 0, %s338
  $region4: #{transformer_block_forward.1} parent=0 // loop_header_branch
    %23 = sbr.rel (%p21) target = $region8
  $region5: #{transformer_block_forward.1} parent=0 // loop_body
    %s25 = ssub.s32 %s20, 1
    %s26 = ssub.s32 %s20, 2
    %s27 = sadd.s32 %s20, 1
    %s28 = ssub.s32 %s20, %s27
    %p29 = scmp.eq.s32.totalorder %s28, 0
    %s31 = sadd.s32 %s30, 1
    %s32 = scalar_select %p29, %s30, %s31
    %p35 = pneg %p29
    %p36 = scmp.eq.s32.totalorder %s20, 1
    %p37 = por %p35, %p36
    %p38 = scmp.ne.s32.totalorder %s30, %s33
    %p39 = scmp.eq.s32.totalorder %s20, 0
    %p40 = por %p38, %p39
    %p41 = scmp.ne.s32.totalorder %s30, %s33
    %p42 = scmp.eq.s32.totalorder %s25, 1
    %p43 = por %p41, %p42
    %p44 = scmp.ne.s32.totalorder %s33, %s34
    %p45 = scmp.eq.s32.totalorder %s25, 0
    %p46 = por %p44, %p45
    %p47 = scmp.ne.s32.totalorder %s33, %s34
    %p48 = scmp.eq.s32.totalorder %s26, 1
    %p49 = por %p47, %p48
    %p51 = scmp.ne.s32.totalorder %s34, %s50
    %p52 = scmp.eq.s32.totalorder %s26, 0
    %p53 = por %p51, %p52
    %s54 = ssub.s32 %s20, %s27
    %p55 = scmp.eq.s32.totalorder %s54, 0
    %s57 = sadd.s32 %s56, 1
    %s58 = scalar_select %p55, %s56, %s57
    %p61 = pneg %p55
    %p62 = scmp.eq.s32.totalorder %s20, 1
    %p63 = por %p61, %p62
    %p64 = scmp.ne.s32.totalorder %s56, %s59
    %p65 = scmp.eq.s32.totalorder %s20, 0
    %p66 = por %p64, %p65
    %p67 = scmp.ne.s32.totalorder %s56, %s59
    %p68 = scmp.eq.s32.totalorder %s25, 1
    %p69 = por %p67, %p68
    %p70 = scmp.ne.s32.totalorder %s59, %s60
    %p71 = scmp.eq.s32.totalorder %s25, 0
    %p72 = por %p70, %p71
    %p73 = scmp.ne.s32.totalorder %s59, %s60
    %p74 = scmp.eq.s32.totalorder %s26, 1
    %p75 = por %p73, %p74
    %p77 = scmp.ne.s32.totalorder %s60, %s76
    %p78 = scmp.eq.s32.totalorder %s26, 0
    %p79 = por %p77, %p78
    %s81 = sadd.s32 %s80, 1
    %p84 = scmp.eq.s32.totalorder %s20, 1
    %p85 = scmp.ne.s32.totalorder %s80, %s82
    %p86 = scmp.eq.s32.totalorder %s20, 0
    %p87 = por %p85, %p86
    %p88 = scmp.ne.s32.totalorder %s80, %s82
    %p89 = scmp.eq.s32.totalorder %s25, 1
    %p90 = por %p88, %p89
    %p91 = scmp.ne.s32.totalorder %s82, %s83
    %p92 = scmp.eq.s32.totalorder %s25, 0
    %p93 = por %p91, %p92
    %p94 = scmp.ne.s32.totalorder %s82, %s83
    %p95 = scmp.eq.s32.totalorder %s26, 1
    %p96 = por %p94, %p95
    %p98 = scmp.ne.s32.totalorder %s83, %s97
    %p99 = scmp.eq.s32.totalorder %s26, 0
    %p100 = por %p98, %p99
    %s102 = sadd.s32 %s101, 1
    %p105 = scmp.eq.s32.totalorder %s20, 1
    %p106 = scmp.ne.s32.totalorder %s101, %s103
    %p107 = scmp.eq.s32.totalorder %s20, 0
    %p108 = por %p106, %p107
    %p109 = scmp.ne.s32.totalorder %s101, %s103
    %p110 = scmp.eq.s32.totalorder %s25, 1
    %p111 = por %p109, %p110
    %p112 = scmp.ne.s32.totalorder %s103, %s104
    %p113 = scmp.eq.s32.totalorder %s25, 0
    %p114 = por %p112, %p113
    %p115 = scmp.ne.s32.totalorder %s103, %s104
    %p116 = scmp.eq.s32.totalorder %s26, 1
    %p117 = por %p115, %p116
    %p119 = scmp.ne.s32.totalorder %s104, %s118
    %p120 = scmp.eq.s32.totalorder %s26, 0
    %p121 = por %p119, %p120
    %s123 = sadd.s32 %s122, 1
    %p126 = scmp.eq.s32.totalorder %s20, 1
    %p127 = scmp.ne.s32.totalorder %s122, %s124
    %p128 = scmp.eq.s32.totalorder %s20, 0
    %p129 = por %p127, %p128
    %p130 = scmp.ne.s32.totalorder %s122, %s124
    %p131 = scmp.eq.s32.totalorder %s25, 1
    %p132 = por %p130, %p131
    %p133 = scmp.ne.s32.totalorder %s124, %s125
    %p134 = scmp.eq.s32.totalorder %s25, 0
    %p135 = por %p133, %p134
    %p136 = scmp.ne.s32.totalorder %s124, %s125
    %p137 = scmp.eq.s32.totalorder %s26, 1
    %p138 = por %p136, %p137
    %p140 = scmp.ne.s32.totalorder %s125, %s139
    %p141 = scmp.eq.s32.totalorder %s26, 0
    %p142 = por %p140, %p141
    %s144 = sadd.s32 %s143, 1
    %p147 = scmp.eq.s32.totalorder %s20, 1
    %p148 = scmp.ne.s32.totalorder %s143, %s145
    %p149 = scmp.eq.s32.totalorder %s20, 0
    %p150 = por %p148, %p149
    %p151 = scmp.ne.s32.totalorder %s143, %s145
    %p152 = scmp.eq.s32.totalorder %s25, 1
    %p153 = por %p151, %p152
    %p154 = scmp.ne.s32.totalorder %s145, %s146
    %p155 = scmp.eq.s32.totalorder %s25, 0
    %p156 = por %p154, %p155
    %p157 = scmp.ne.s32.totalorder %s145, %s146
    %p158 = scmp.eq.s32.totalorder %s26, 1
    %p159 = por %p157, %p158
    %p161 = scmp.ne.s32.totalorder %s146, %s160
    %p162 = scmp.eq.s32.totalorder %s26, 0
    %p163 = por %p161, %p162
    %s165 = sadd.s32 %s164, 1
    %p168 = scmp.eq.s32.totalorder %s20, 1
    %p169 = scmp.ne.s32.totalorder %s164, %s166
    %p170 = scmp.eq.s32.totalorder %s20, 0
    %p171 = por %p169, %p170
    %p172 = scmp.ne.s32.totalorder %s164, %s166
    %p173 = scmp.eq.s32.totalorder %s25, 1
    %p174 = por %p172, %p173
    %p175 = scmp.ne.s32.totalorder %s166, %s167
    %p176 = scmp.eq.s32.totalorder %s25, 0
    %p177 = por %p175, %p176
    %p178 = scmp.ne.s32.totalorder %s166, %s167
    %p179 = scmp.eq.s32.totalorder %s26, 1
    %p180 = por %p178, %p179
    %p182 = scmp.ne.s32.totalorder %s167, %s181
    %p183 = scmp.eq.s32.totalorder %s26, 0
    %p184 = por %p182, %p183
    %s186 = sadd.s32 %s185, 1
    %p189 = scmp.eq.s32.totalorder %s20, 1
    %p190 = scmp.ne.s32.totalorder %s185, %s187
    %p191 = scmp.eq.s32.totalorder %s20, 0
    %p192 = por %p190, %p191
    %p193 = scmp.ne.s32.totalorder %s185, %s187
    %p194 = scmp.eq.s32.totalorder %s25, 1
    %p195 = por %p193, %p194
    %p196 = scmp.ne.s32.totalorder %s187, %s188
    %p197 = scmp.eq.s32.totalorder %s25, 0
    %p198 = por %p196, %p197
    %p199 = scmp.ne.s32.totalorder %s187, %s188
    %p200 = scmp.eq.s32.totalorder %s26, 1
    %p201 = por %p199, %p200
    %p203 = scmp.ne.s32.totalorder %s188, %s202
    %p204 = scmp.eq.s32.totalorder %s26, 0
    %p205 = por %p203, %p204
    %s207 = sadd.s32 %s206, 1
    %p210 = scmp.eq.s32.totalorder %s20, 1
    %p211 = scmp.ne.s32.totalorder %s206, %s208
    %p212 = scmp.eq.s32.totalorder %s20, 0
    %p213 = por %p211, %p212
    %p214 = scmp.ne.s32.totalorder %s206, %s208
    %p215 = scmp.eq.s32.totalorder %s25, 1
    %p216 = por %p214, %p215
    %p217 = scmp.ne.s32.totalorder %s208, %s209
    %p218 = scmp.eq.s32.totalorder %s25, 0
    %p219 = por %p217, %p218
    %p220 = scmp.ne.s32.totalorder %s208, %s209
    %p221 = scmp.eq.s32.totalorder %s26, 1
    %p222 = por %p220, %p221
    %p224 = scmp.ne.s32.totalorder %s209, %s223
    %p225 = scmp.eq.s32.totalorder %s26, 0
    %p226 = por %p224, %p225
    %s228 = sadd.s32 %s227, 1
    %p231 = scmp.eq.s32.totalorder %s20, 1
    %p232 = scmp.ne.s32.totalorder %s227, %s229
    %p233 = scmp.eq.s32.totalorder %s20, 0
    %p234 = por %p232, %p233
    %p235 = scmp.ne.s32.totalorder %s227, %s229
    %p236 = scmp.eq.s32.totalorder %s25, 1
    %p237 = por %p235, %p236
    %p238 = scmp.ne.s32.totalorder %s229, %s230
    %p239 = scmp.eq.s32.totalorder %s25, 0
    %p240 = por %p238, %p239
    %p241 = scmp.ne.s32.totalorder %s229, %s230
    %p242 = scmp.eq.s32.totalorder %s26, 1
    %p243 = por %p241, %p242
    %p245 = scmp.ne.s32.totalorder %s230, %s244
    %p246 = scmp.eq.s32.totalorder %s26, 0
    %p247 = por %p245, %p246
    %s249 = sadd.s32 %s248, 1
    %p252 = scmp.eq.s32.totalorder %s20, 1
    %p253 = scmp.ne.s32.totalorder %s248, %s250
    %p254 = scmp.eq.s32.totalorder %s20, 0
    %p255 = por %p253, %p254
    %p256 = scmp.ne.s32.totalorder %s248, %s250
    %p257 = scmp.eq.s32.totalorder %s25, 1
    %p258 = por %p256, %p257
    %p259 = scmp.ne.s32.totalorder %s250, %s251
    %p260 = scmp.eq.s32.totalorder %s25, 0
    %p261 = por %p259, %p260
    %p262 = scmp.ne.s32.totalorder %s250, %s251
    %p263 = scmp.eq.s32.totalorder %s26, 1
    %p264 = por %p262, %p263
    %p266 = scmp.ne.s32.totalorder %s251, %s265
    %p267 = scmp.eq.s32.totalorder %s26, 0
    %p268 = por %p266, %p267
    %s270 = sadd.s32 %s269, 1
    %p273 = scmp.eq.s32.totalorder %s20, 1
    %p274 = scmp.ne.s32.totalorder %s269, %s271
    %p275 = scmp.eq.s32.totalorder %s20, 0
    %p276 = por %p274, %p275
    %p277 = scmp.ne.s32.totalorder %s269, %s271
    %p278 = scmp.eq.s32.totalorder %s25, 1
    %p279 = por %p277, %p278
    %p280 = scmp.ne.s32.totalorder %s271, %s272
    %p281 = scmp.eq.s32.totalorder %s25, 0
    %p282 = por %p280, %p281
    %p283 = scmp.ne.s32.totalorder %s271, %s272
    %p284 = scmp.eq.s32.totalorder %s26, 1
    %p285 = por %p283, %p284
    %p287 = scmp.ne.s32.totalorder %s272, %s286
    %p288 = scmp.eq.s32.totalorder %s26, 0
    %p289 = por %p287, %p288
    %s291 = sadd.s32 %s290, 1
    %p294 = scmp.eq.s32.totalorder %s20, 1
    %p295 = scmp.ne.s32.totalorder %s290, %s292
    %p296 = scmp.eq.s32.totalorder %s20, 0
    %p297 = por %p295, %p296
    %p298 = scmp.ne.s32.totalorder %s290, %s292
    %p299 = scmp.eq.s32.totalorder %s25, 1
    %p300 = por %p298, %p299
    %p301 = scmp.ne.s32.totalorder %s292, %s293
    %p302 = scmp.eq.s32.totalorder %s25, 0
    %p303 = por %p301, %p302
    %p304 = scmp.ne.s32.totalorder %s292, %s293
    %p305 = scmp.eq.s32.totalorder %s26, 1
    %p306 = por %p304, %p305
    %p308 = scmp.ne.s32.totalorder %s293, %s307
    %p309 = scmp.eq.s32.totalorder %s26, 0
    %p310 = por %p308, %p309
    %s312 = sadd.s32 %s311, 1
    %p315 = scmp.eq.s32.totalorder %s20, 1
    %p316 = scmp.ne.s32.totalorder %s311, %s313
    %p317 = scmp.eq.s32.totalorder %s20, 0
    %p318 = por %p316, %p317
    %p319 = scmp.ne.s32.totalorder %s311, %s313
    %p320 = scmp.eq.s32.totalorder %s25, 1
    %p321 = por %p319, %p320
    %p322 = scmp.ne.s32.totalorder %s313, %s314
    %p323 = scmp.eq.s32.totalorder %s25, 0
    %p324 = por %p322, %p323
    %p325 = scmp.ne.s32.totalorder %s313, %s314
    %p326 = scmp.eq.s32.totalorder %s26, 1
    %p327 = por %p325, %p326
    %p329 = scmp.ne.s32.totalorder %s314, %s328
    %p330 = scmp.eq.s32.totalorder %s26, 0
    %p331 = por %p329, %p330
    %s332 = ssub.s32 %s20, %s27
    %p333 = scmp.eq.s32.totalorder %s332, 0
    %s335 = sadd.s32 %s334, 1
    %s336 = scalar_select %p333, %s334, %s335
    %p339 = pneg %p333
    %p340 = scmp.eq.s32.totalorder %s20, 1
    %p341 = por %p339, %p340
    %p342 = scmp.ne.s32.totalorder %s334, %s337
    %p343 = scmp.eq.s32.totalorder %s20, 0
    %p344 = por %p342, %p343
    %p345 = scmp.ne.s32.totalorder %s334, %s337
    %p346 = scmp.eq.s32.totalorder %s25, 1
    %p347 = por %p345, %p346
    %p348 = scmp.ne.s32.totalorder %s337, %s338
    %p349 = scmp.eq.s32.totalorder %s25, 0
    %p350 = por %p348, %p349
    %p351 = scmp.ne.s32.totalorder %s337, %s338
    %p352 = scmp.eq.s32.totalorder %s26, 1
    %p353 = por %p351, %p352
    %p355 = scmp.ne.s32.totalorder %s338, %s354
    %p356 = scmp.eq.s32.totalorder %s26, 0
    %p357 = por %p355, %p356
    %p358 = scmp.le.s32.totalorder 1, %s20
    %p359 = scmp.lt.s32.totalorder %s20, 3
    %p360 = pnand %p358, %p359
    %p361 = pneg %p360
    // Predicated region
    $region9: #{transformer_block_forward.1} parent=5 // pred_check
      _
    $region10: #{transformer_block_forward.1} parent=5 // pred_check_branch
      %363 = sbr.rel (%p360) target = $region12
    $region11: #{transformer_block_forward.1} parent=5 // pred_region
      %s364 = ssub.s32 %s20, 1
      // Predicated region
      $region13: #{transformer_block_forward.1} parent=11 // pred_check
        %p365 = pneg %p93
      $region14: #{transformer_block_forward.1} parent=11 // pred_check_branch
        %367 = sbr.rel (%p365) target = $region16
      $region15: #{transformer_block_forward.1} parent=11 // pred_region
        _
      $region16: #{transformer_block_forward.1} parent=11 // pred_fallthru
        _
      // Predicated region
      $region17: #{transformer_block_forward.1} parent=11 // pred_check
        %p368 = pneg %p114
      $region18: #{transformer_block_forward.1} parent=11 // pred_check_branch
        %370 = sbr.rel (%p368) target = $region20
      $region19: #{transformer_block_forward.1} parent=11 // pred_region
        _
      $region20: #{transformer_block_forward.1} parent=11 // pred_fallthru
        _
      // Predicated region
      $region21: #{transformer_block_forward.1} parent=11 // pred_check
        %p371 = pneg %p135
      $region22: #{transformer_block_forward.1} parent=11 // pred_check_branch
        %373 = sbr.rel (%p371) target = $region24
      $region23: #{transformer_block_forward.1} parent=11 // pred_region
        _
      $region24: #{transformer_block_forward.1} parent=11 // pred_fallthru
        _
      // Predicated region
      $region25: #{transformer_block_forward.1} parent=11 // pred_check
        %p374 = pneg %p156
      $region26: #{transformer_block_forward.1} parent=11 // pred_check_branch
        %376 = sbr.rel (%p374) target = $region28
      $region27: #{transformer_block_forward.1} parent=11 // pred_region
        _
      $region28: #{transformer_block_forward.1} parent=11 // pred_fallthru
        _
      // Predicated region
      $region29: #{transformer_block_forward.1} parent=11 // pred_check
        %p377 = pneg %p177
      $region30: #{transformer_block_forward.1} parent=11 // pred_check_branch
        %379 = sbr.rel (%p377) target = $region32
      $region31: #{transformer_block_forward.1} parent=11 // pred_region
        _
      $region32: #{transformer_block_forward.1} parent=11 // pred_fallthru
        _
      // Predicated region
      $region33: #{transformer_block_forward.1} parent=11 // pred_check
        %p380 = pneg %p198
      $region34: #{transformer_block_forward.1} parent=11 // pred_check_branch
        %382 = sbr.rel (%p380) target = $region36
      $region35: #{transformer_block_forward.1} parent=11 // pred_region
        _
      $region36: #{transformer_block_forward.1} parent=11 // pred_fallthru
        _
      // Predicated region
      $region37: #{transformer_block_forward.1} parent=11 // pred_check
        %p383 = pneg %p219
      $region38: #{transformer_block_forward.1} parent=11 // pred_check_branch
        %385 = sbr.rel (%p383) target = $region40
      $region39: #{transformer_block_forward.1} parent=11 // pred_region
        _
      $region40: #{transformer_block_forward.1} parent=11 // pred_fallthru
        _
      // Predicated region
      $region41: #{transformer_block_forward.1} parent=11 // pred_check
        %p386 = pneg %p240
      $region42: #{transformer_block_forward.1} parent=11 // pred_check_branch
        %388 = sbr.rel (%p386) target = $region44
      $region43: #{transformer_block_forward.1} parent=11 // pred_region
        _
      $region44: #{transformer_block_forward.1} parent=11 // pred_fallthru
        _
      // Predicated region
      $region45: #{transformer_block_forward.1} parent=11 // pred_check
        %p389 = pneg %p261
      $region46: #{transformer_block_forward.1} parent=11 // pred_check_branch
        %391 = sbr.rel (%p389) target = $region48
      $region47: #{transformer_block_forward.1} parent=11 // pred_region
        _
      $region48: #{transformer_block_forward.1} parent=11 // pred_fallthru
        _
      // Predicated region
      $region49: #{transformer_block_forward.1} parent=11 // pred_check
        %p392 = pneg %p282
      $region50: #{transformer_block_forward.1} parent=11 // pred_check_branch
        %394 = sbr.rel (%p392) target = $region52
      $region51: #{transformer_block_forward.1} parent=11 // pred_region
        _
      $region52: #{transformer_block_forward.1} parent=11 // pred_fallthru
        _
      // Predicated region
      $region53: #{transformer_block_forward.1} parent=11 // pred_check
        %p395 = pneg %p303
      $region54: #{transformer_block_forward.1} parent=11 // pred_check_branch
        %397 = sbr.rel (%p395) target = $region56
      $region55: #{transformer_block_forward.1} parent=11 // pred_region
        _
      $region56: #{transformer_block_forward.1} parent=11 // pred_fallthru
        _
      // Predicated region
      $region57: #{transformer_block_forward.1} parent=11 // pred_check
        %p398 = pneg %p324
      $region58: #{transformer_block_forward.1} parent=11 // pred_check_branch
        %400 = sbr.rel (%p398) target = $region60
      $region59: #{transformer_block_forward.1} parent=11 // pred_region
        _
      $region60: #{transformer_block_forward.1} parent=11 // pred_fallthru
        _
    $region12: #{transformer_block_forward.1} parent=5 // pred_fallthru
      _
    %p401 = scmp.lt.s32.totalorder %s20, 2
    // Predicated region
    $region61: #{transformer_block_forward.1} parent=5 // pred_check
      %p402 = pneg %p401
    $region62: #{transformer_block_forward.1} parent=5 // pred_check_branch
      %404 = sbr.rel (%p402) target = $region64
    $region63: #{transformer_block_forward.1} parent=5 // pred_region
      // Predicated region
      $region65: #{transformer_block_forward.1} parent=63 // pred_check
        %p405 = pneg %p40
      $region66: #{transformer_block_forward.1} parent=63 // pred_check_branch
        %407 = sbr.rel (%p405) target = $region68
      $region67: #{transformer_block_forward.1} parent=63 // pred_region
        %p408 = scmp.lt.s32.totalorder %s20, 1
        %s409 = scalar_select %p408, %s20, 1
        %s410 = smul.addr %s409, 4
        %s411 = smul.addr %s410, 8
        %s412 = scalar_lea.vmem %s0, %s411
      $region68: #{transformer_block_forward.1} parent=63 // pred_fallthru
        _
      // Predicated region
      $region69: #{transformer_block_forward.1} parent=63 // pred_check
        %p413 = pneg %p66
      $region70: #{transformer_block_forward.1} parent=63 // pred_check_branch
        %415 = sbr.rel (%p413) target = $region72
      $region71: #{transformer_block_forward.1} parent=63 // pred_region
        %p416 = scmp.lt.s32.totalorder %s20, 1
        %s417 = scalar_select %p416, %s20, 1
        %s418 = smul.addr %s417, 4
        %s419 = smul.addr %s418, 8
        %s420 = scalar_lea.vmem %s1, %s419
      $region72: #{transformer_block_forward.1} parent=63 // pred_fallthru
        _
    $region64: #{transformer_block_forward.1} parent=5 // pred_fallthru
      _
    %p421 = scmp.le.s32.totalorder 1, %s20
    %p422 = scmp.lt.s32.totalorder %s20, 3
    %p423 = pnand %p421, %p422
    %p424 = pneg %p423
    // Predicated region
    $region73: #{transformer_block_forward.1} parent=5 // pred_check
      _
    $region74: #{transformer_block_forward.1} parent=5 // pred_check_branch
      %426 = sbr.rel (%p423) target = $region76
    $region75: #{transformer_block_forward.1} parent=5 // pred_region
      %s427 = ssub.s32 %s20, 1
      %p428 = scmp.lt.s32.totalorder %s25, 1
      %s429 = scalar_select %p428, %s25, 1
      %s430 = smul.addr %s429, 4
      %s431 = smul.addr %s430, 8
      %s432 = scalar_lea.vmem %s0, %s431
      %p433 = pneg %p46
      %p434 = pneg %p43
      %p435 = scmp.lt.s32.totalorder %s25, 1
      %s436 = scalar_select %p435, %s25, 1
      %s437 = smul.addr %s436, 4
      %s438 = smul.addr %s437, 8
      %s439 = scalar_lea.vmem %s1, %s438
      %p440 = pneg %p72
      %p441 = pneg %p69
      %p442 = pneg %p93
      %p443 = pneg %p90
      %p444 = pneg %p114
      %p445 = pneg %p111
      %p446 = pneg %p135
      %p447 = pneg %p132
      %p448 = pneg %p156
      %p449 = pneg %p153
      %p450 = pneg %p177
      %p451 = pneg %p174
      %p452 = pneg %p198
      %p453 = pneg %p195
      %p454 = pneg %p219
      %p455 = pneg %p216
      %p456 = pneg %p240
      %p457 = pneg %p237
      %p458 = pneg %p261
      %p459 = pneg %p258
      %p460 = pneg %p282
      %p461 = pneg %p279
      %p462 = pneg %p303
      %p463 = pneg %p300
      %p464 = pneg %p324
      %p465 = pneg %p321
      %p466 = pneg %p350
      %p467 = pneg %p347
      %p468 = scmp.lt.s32.totalorder %s25, 1
      %s469 = scalar_select %p468, %s25, 1
      %s470 = smul.addr %s469, 4
      %s471 = smul.addr %s470, 8
      %s472 = scalar_lea.vmem %s14, %s471
      %p473 = scmp.lt.s32.totalorder %s25, 1
      %s474 = scalar_select %p473, %s25, 1
      %s475 = smul.addr %s474, 4
      %s476 = smul.addr %s475, 8
      %s477 = scalar_lea.vmem %s0, %s476
      %p478 = scmp.lt.s32.totalorder %s25, 1
      %s479 = scalar_select %p478, %s25, 1
      %s480 = smul.addr %s479, 4
      %s481 = smul.addr %s480, 8
      %s482 = scalar_lea.vmem %s1, %s481
      %p483 = scmp.lt.s32.totalorder %s25, 1
      %s484 = scalar_select %p483, %s25, 1
      %s485 = smul.addr %s484, 4
      %s486 = smul.addr %s485, 8
      %s487 = scalar_lea.vmem %s14, %s486
      %v489 = vld [vmem:[%s477] sm:$0xff]
      %v490 = vld [vmem:[%s477 + $0x8] sm:$0xff]
      %v491 = vld [vmem:[%s477 + $0x10] sm:$0xff]
      %v492 = vld [vmem:[%s477 + $0x18] sm:$0xff]
      %v493 = vld [vmem:[%s482] sm:$0xff]
      %v494 = vld [vmem:[%s482 + $0x8] sm:$0xff]
      %v495 = vld [vmem:[%s482 + $0x10] sm:$0xff]
      %v496 = vld [vmem:[%s482 + $0x18] sm:$0xff]
      %v497 = vadd.f32 %v489, %v493
      %v498 = vadd.f32 %v490, %v494
      %v499 = vadd.f32 %v491, %v495
      %v500 = vadd.f32 %v492, %v496
      %v501 = vld [vmem:[%s2] sm:$0xff]
      %v502 = vld [vmem:[%s2 + $0x8] sm:$0xff]
      %v503 = vld [vmem:[%s2 + $0x10] sm:$0xff]
      %v504 = vld [vmem:[%s2 + $0x18] sm:$0xff]
      %v505 = vld [vmem:[%s3] sm:$0xff]
      %v506 = vld [vmem:[%s3 + $0x8] sm:$0xff]
      %v507 = vld [vmem:[%s3 + $0x10] sm:$0xff]
      %v508 = vld [vmem:[%s3 + $0x18] sm:$0xff]
      %vm509 = vcmask 130048
      %v510 = vsel %vm509, %v497, 0.0
      %v511 = vsel %vm509, %v498, 0.0
      %v512 = vadd.f32 %v510, %v511
      %v513 = vsel %vm509, %v499, 0.0
      %v514 = vadd.f32 %v512, %v513
      %v515 = vsel %vm509, %v500, 0.0
      %v516 = vadd.f32 %v514, %v515
      %v517 = vrot.slane %v516, 4
      %v518 = vadd.f32 %v516, %v517
      %v519 = vrot.slane %v518, 2
      %v520 = vadd.f32 %v518, %v519
      %v521 = vrot.slane %v520, 1
      %v522 = vadd.f32 %v520, %v521
      %v523 = vrcp.pop 32.0
      %v524 = vmul.f32 %v522, %v523
      %v525 = vsub.f32 %v497, %v524
      %v526 = vsub.f32 %v498, %v524
      %v527 = vsub.f32 %v499, %v524
      %v528 = vsub.f32 %v500, %v524
      %v529 = vmul.f32 %v525, %v525
      %v530 = vmul.f32 %v526, %v526
      %v531 = vmul.f32 %v527, %v527
      %v532 = vmul.f32 %v528, %v528
      %v533 = vsel %vm509, %v529, 0.0
      %v534 = vsel %vm509, %v530, 0.0
      %v535 = vadd.f32 %v533, %v534
      %v536 = vsel %vm509, %v531, 0.0
      %v537 = vadd.f32 %v535, %v536
      %v538 = vsel %vm509, %v532, 0.0
      %v539 = vadd.f32 %v537, %v538
      %v540 = vrot.slane %v539, 4
      %v541 = vadd.f32 %v539, %v540
      %v542 = vrot.slane %v541, 2
      %v543 = vadd.f32 %v541, %v542
      %v544 = vrot.slane %v543, 1
      %v545 = vadd.f32 %v543, %v544
      %v546 = vmul.f32 %v545, %v523
      %v547 = vadd.f32 %v546, 1e-05
      %v548 = vrsqrt.pop %v547
      %v549 = vmul.f32 %v525, %v548
      %v550 = vmul.f32 %v526, %v548
      %v551 = vmul.f32 %v527, %v548
      %v552 = vmul.f32 %v528, %v548
      %554 = vset.pattern.permute.xlu0 0
      %555 = vperm.xlu0 %554, %v501
      %v556 = vpop.permute.xlu0 %555
      %559 = vset.pattern.permute.xlu0 0
      %560 = vperm.xlu0 %559, %v502
      %v561 = vpop.permute.xlu0 %560
      %564 = vset.pattern.permute.xlu0 0
      %565 = vperm.xlu0 %564, %v503
      %v566 = vpop.permute.xlu0 %565
      %569 = vset.pattern.permute.xlu0 0
      %570 = vperm.xlu0 %569, %v504
      %v571 = vpop.permute.xlu0 %570
      %v573 = vmul.f32 %v549, %v556
      %v574 = vmul.f32 %v550, %v561
      %v575 = vmul.f32 %v551, %v566
      %v576 = vmul.f32 %v552, %v571
      %578 = vset.pattern.permute.xlu0 0
      %579 = vperm.xlu0 %578, %v505
      %v580 = vpop.permute.xlu0 %579
      %583 = vset.pattern.permute.xlu0 0
      %584 = vperm.xlu0 %583, %v506
      %v585 = vpop.permute.xlu0 %584
      %588 = vset.pattern.permute.xlu0 0
      %589 = vperm.xlu0 %588, %v507
      %v590 = vpop.permute.xlu0 %589
      %593 = vset.pattern.permute.xlu0 0
      %594 = vperm.xlu0 %593, %v508
      %v595 = vpop.permute.xlu0 %594
      %v597 = vadd.f32 %v573, %v580
      %v598 = vadd.f32 %v574, %v585
      %v599 = vadd.f32 %v575, %v590
      %v600 = vadd.f32 %v576, %v595
      %v601 = vld [vmem:[%s4] sm:$0xf]
      %v602 = vld [vmem:[%s4 + $0x4] sm:$0xf]
      %v603 = vld [vmem:[%s4 + $0x8] sm:$0xf]
      %v604 = vld [vmem:[%s4 + $0xc] sm:$0xf]
      %v605 = vld [vmem:[%s4 + $0x10] sm:$0xf]
      %v606 = vld [vmem:[%s4 + $0x14] sm:$0xf]
      %v607 = vld [vmem:[%s4 + $0x18] sm:$0xf]
      %v608 = vld [vmem:[%s4 + $0x1c] sm:$0xf]
      %v609 = vld [vmem:[%s4 + $0x20] sm:$0xf]
      %v610 = vld [vmem:[%s4 + $0x24] sm:$0xf]
      %v611 = vld [vmem:[%s4 + $0x28] sm:$0xf]
      %v612 = vld [vmem:[%s4 + $0x2c] sm:$0xf]
      %v613 = vld [vmem:[%s5] sm:$0xff]
      %v614 = vld [vmem:[%s5 + $0x8] sm:$0xff]
      %v615 = vld [vmem:[%s5 + $0x10] sm:$0xff]
      %v616 = vld [vmem:[%s5 + $0x18] sm:$0xff]
      %v617 = vld [vmem:[%s5 + $0x20] sm:$0xff]
      %v618 = vld [vmem:[%s5 + $0x28] sm:$0xff]
      %v619 = vld [vmem:[%s5 + $0x30] sm:$0xff]
      %v620 = vld [vmem:[%s5 + $0x38] sm:$0xff]
      %v621 = vld [vmem:[%s5 + $0x40] sm:$0xff]
      %v622 = vld [vmem:[%s5 + $0x48] sm:$0xff]
      %v623 = vld [vmem:[%s5 + $0x50] sm:$0xff]
      %v624 = vld [vmem:[%s5 + $0x58] sm:$0xff]
      %v625 = vpack.c.bf16 %v598, %v597
      %v626 = vpack.c.bf16 %v600, %v599
      %628 = vset.pattern.permute.xlu0 0
      %629 = vperm.xlu0 %628, %v613
      %v630 = vpop.permute.xlu0 %629
      %633 = vset.pattern.permute.xlu0 0
      %634 = vperm.xlu0 %633, %v614
      %v635 = vpop.permute.xlu0 %634
      %638 = vset.pattern.permute.xlu0 0
      %639 = vperm.xlu0 %638, %v615
      %v640 = vpop.permute.xlu0 %639
      %643 = vset.pattern.permute.xlu0 0
      %644 = vperm.xlu0 %643, %v616
      %v645 = vpop.permute.xlu0 %644
      %648 = vset.pattern.permute.xlu0 0
      %649 = vperm.xlu0 %648, %v617
      %v650 = vpop.permute.xlu0 %649
      %653 = vset.pattern.permute.xlu0 0
      %654 = vperm.xlu0 %653, %v618
      %v655 = vpop.permute.xlu0 %654
      %658 = vset.pattern.permute.xlu0 0
      %659 = vperm.xlu0 %658, %v619
      %v660 = vpop.permute.xlu0 %659
      %663 = vset.pattern.permute.xlu0 0
      %664 = vperm.xlu0 %663, %v620
      %v665 = vpop.permute.xlu0 %664
      %668 = vset.pattern.permute.xlu0 0
      %669 = vperm.xlu0 %668, %v621
      %v670 = vpop.permute.xlu0 %669
      %673 = vset.pattern.permute.xlu0 0
      %674 = vperm.xlu0 %673, %v622
      %v675 = vpop.permute.xlu0 %674
      %678 = vset.pattern.permute.xlu0 0
      %679 = vperm.xlu0 %678, %v623
      %v680 = vpop.permute.xlu0 %679
      %683 = vset.pattern.permute.xlu0 0
      %684 = vperm.xlu0 %683, %v624
      %v685 = vpop.permute.xlu0 %684
      %v699 = vunpack.c.l.b16 %v601
      %v700 = vunpack.c.l.b16 %v602
      %v701 = vunpack.c.l.b16 %v603
      %v702 = vunpack.c.l.b16 %v604
      %v703 = vunpack.c.l.b16 %v605
      %v704 = vunpack.c.l.b16 %v606
      %v705 = vunpack.c.l.b16 %v607
      %v706 = vunpack.c.l.b16 %v608
      %v707 = vunpack.c.l.b16 %v609
      %v708 = vunpack.c.l.b16 %v610
      %v709 = vunpack.c.l.b16 %v611
      %v710 = vunpack.c.l.b16 %v612
      %v711 = vpack.c.b16 %v700, %v699
      %v712 = vpack.c.b16 %v702, %v701
      %v713 = vpack.c.b16 %v704, %v703
      %v714 = vpack.c.b16 %v706, %v705
      %v715 = vpack.c.b16 %v708, %v707
      %v716 = vpack.c.b16 %v710, %v709
      %vm717 = vcmask 261120
      %v719 = vsel %vm717, %v711, 0
      %v722 = vsel %vm717, %v712, 0
      %v725 = vsel %vm717, %v713, 0
      %v728 = vsel %vm717, %v714, 0
      %v731 = vsel %vm717, %v715, 0
      %v734 = vsel %vm717, %v716, 0
      %736 = vmatprep.subr.bf16.mxu0 0
      %737 = vmatpush1.bf16.msra.mxu0 0
      %738 = vmatprep.subr.bf16.mxu0 0
      %739 = vmatpush1.bf16.msra.mxu0 0
      %740 = vmatprep.subr.bf16.mxu0 0
      %741 = vmatpush1.bf16.msra.mxu0 0
      %742 = vmatprep.subr.bf16.mxu0 0
      %743 = vmatpush1.bf16.msra.mxu0 0
      %744 = vmatprep.subr.bf16.mxu0 0
      %745 = vmatpush1.bf16.msra.mxu0 0
      %746 = vmatprep.subr.bf16.mxu0 0
      %747 = vmatpush1.bf16.msra.mxu0 0
      %748 = vmatprep.subr.bf16.mxu0 0
      %749 = vmatpush1.bf16.msra.mxu0 %v626
      %750 = vmatprep.subr.bf16.mxu0 0
      %751 = vmatpush1.bf16.msra.mxu0 %v625
      %752 = vmatprep.subr.bf16.mxu0 0
      %753 = vmatpush2.bf16.msra.mxu0 0
      %754 = vmatprep.subr.bf16.mxu0 0
      %755 = vmatpush2.bf16.msra.mxu0 0
      %756 = vmatprep.subr.bf16.mxu0 0
      %757 = vmatpush2.bf16.msra.mxu0 0
      %758 = vmatprep.subr.bf16.mxu0 0
      %759 = vmatpush2.bf16.msra.mxu0 0
      %760 = vmatprep.subr.bf16.mxu0 0
      %761 = vmatpush2.bf16.msra.mxu0 0
      %762 = vmatprep.subr.bf16.mxu0 0
      %763 = vmatpush2.bf16.msra.mxu0 0
      %764 = vmatprep.subr.bf16.mxu0 0
      %765 = vmatpush2.bf16.msra.mxu0 0
      %766 = vmatprep.subr.bf16.mxu0 0
      %767 = vmatpush2.bf16.msra.mxu0 0
      %768 = vmatprep.mubr.bf16.mxu0 0
      %769 = vmatmul.mubr.bf16.gmra.mxu0 %v719
      %v770 = vpop.f32.mrf.mxu0
      %v771 = vadd.f32 %v630, %v770
      %v772 = vpop.f32.mrf.mxu0
      %v773 = vpop.f32.mrf.mxu0
      %v774 = vadd.f32 %v635, %v773
      %v775 = vpop.f32.mrf.mxu0
      %776 = vmatprep.mubr.bf16.mxu0 0
      %777 = vmatmul.mubr.bf16.gmra.mxu0 %v722
      %v778 = vpop.f32.mrf.mxu0
      %v779 = vadd.f32 %v640, %v778
      %v780 = vpop.f32.mrf.mxu0
      %v781 = vpop.f32.mrf.mxu0
      %v782 = vadd.f32 %v645, %v781
      %v783 = vpop.f32.mrf.mxu0
      %784 = vmatprep.mubr.bf16.mxu0 0
      %785 = vmatmul.mubr.bf16.gmra.mxu0 %v725
      %v786 = vpop.f32.mrf.mxu0
      %v787 = vadd.f32 %v650, %v786
      %v788 = vpop.f32.mrf.mxu0
      %v789 = vpop.f32.mrf.mxu0
      %v790 = vadd.f32 %v655, %v789
      %v791 = vpop.f32.mrf.mxu0
      %792 = vmatprep.mubr.bf16.mxu0 0
      %793 = vmatmul.mubr.bf16.gmra.mxu0 %v728
      %v794 = vpop.f32.mrf.mxu0
      %v795 = vadd.f32 %v660, %v794
      %v796 = vpop.f32.mrf.mxu0
      %v797 = vpop.f32.mrf.mxu0
      %v798 = vadd.f32 %v665, %v797
      %v799 = vpop.f32.mrf.mxu0
      %800 = vmatprep.mubr.bf16.mxu0 0
      %801 = vmatmul.mubr.bf16.gmra.mxu0 %v731
      %v802 = vpop.f32.mrf.mxu0
      %v803 = vadd.f32 %v670, %v802
      %v804 = vpop.f32.mrf.mxu0
      %v805 = vpop.f32.mrf.mxu0
      %v806 = vadd.f32 %v675, %v805
      %v807 = vpop.f32.mrf.mxu0
      %808 = vmatprep.mubr.bf16.mxu0 0
      %809 = vmatmul.mubr.bf16.gmra.mxu0 %v734
      %v810 = vpop.f32.mrf.mxu0
      %v811 = vadd.f32 %v680, %v810
      %v812 = vpop.f32.mrf.mxu0
      %v813 = vpop.f32.mrf.mxu0
      %v814 = vadd.f32 %v685, %v813
      %v815 = vpop.f32.mrf.mxu0
      %816 = vdwg.mxu0
      %817 = vxpose.xlu0.b32.start [1/16] %v771, 128
      %818 = vxpose.xlu0.b32.cont [2/16] 0.0, 128
      %819 = vxpose.xlu0.b32.cont [3/16] 0.0, 128
      %820 = vxpose.xlu0.b32.cont [4/16] 0.0, 128
      %821 = vxpose.xlu0.b32.cont [5/16] 0.0, 128
      %822 = vxpose.xlu0.b32.cont [6/16] 0.0, 128
      %823 = vxpose.xlu0.b32.cont [7/16] 0.0, 128
      %824 = vxpose.xlu0.b32.cont [8/16] 0.0, 128
      %825 = vxpose.xlu0.b32.cont [9/16] 0.0, 128
      %826 = vxpose.xlu0.b32.cont [10/16] 0.0, 128
      %827 = vxpose.xlu0.b32.cont [11/16] 0.0, 128
      %828 = vxpose.xlu0.b32.cont [12/16] 0.0, 128
      %829 = vxpose.xlu0.b32.cont [13/16] 0.0, 128
      %830 = vxpose.xlu0.b32.cont [14/16] 0.0, 128
      %831 = vxpose.xlu0.b32.cont [15/16] 0.0, 128
      %832 = vxpose.xlu0.b32.end [16/16] 0.0, 128
      %v833 = vpop.trf.xlu0
      %v834 = vpop.trf.xlu0
      %v835 = vpop.trf.xlu0
      %v836 = vpop.trf.xlu0
      %v837 = vpop.trf.xlu0
      %v838 = vpop.trf.xlu0
      %v839 = vpop.trf.xlu0
      %v840 = vpop.trf.xlu0
      %v841 = vpop.trf.xlu0
      %v842 = vpop.trf.xlu0
      %v843 = vpop.trf.xlu0
      %v844 = vpop.trf.xlu0
      %v845 = vpop.trf.xlu0
      %v846 = vpop.trf.xlu0
      %v847 = vpop.trf.xlu0
      %v848 = vpop.trf.xlu0
      %vm849 = vcmask 64512
      %v851 = vsel %vm849, %v833, 0
      %v854 = vsel %vm849, %v834, 0
      %856 = vmatprep.subr.mxu0 0.0
      %857 = vmatpush1.msra.mxu0 0.0
      %858 = vmatprep.subr.mxu0 0.0
      %859 = vmatpush1.msra.mxu0 0.0
      %860 = vmatprep.subr.mxu0 0.0
      %861 = vmatpush1.msra.mxu0 0.0
      %862 = vmatprep.subr.mxu0 0.0
      %863 = vmatpush1.msra.mxu0 0.0
      %864 = vmatprep.subr.mxu0 0.0
      %865 = vmatpush1.msra.mxu0 0.0
      %866 = vmatprep.subr.mxu0 0.0
      %867 = vmatpush1.msra.mxu0 0.0
      %868 = vmatprep.subr.mxu0 0.0
      %869 = vmatpush1.msra.mxu0 0.0
      %870 = vmatprep.subr.mxu0 0.0
      %871 = vmatpush1.msra.mxu0 0.0
      %872 = vmatprep.subr.mxu0 0.0
      %873 = vmatpush1.msra.mxu0 0.0
      %874 = vmatprep.subr.mxu0 0.0
      %875 = vmatpush1.msra.mxu0 0.0
      %876 = vmatprep.subr.mxu0 0.0
      %877 = vmatpush1.msra.mxu0 0.0
      %878 = vmatprep.subr.mxu0 0.0
      %879 = vmatpush1.msra.mxu0 0.0
      %880 = vmatprep.subr.mxu0 0.0
      %881 = vmatpush1.msra.mxu0 0.0
      %882 = vmatprep.subr.mxu0 0.0
      %883 = vmatpush1.msra.mxu0 0.0
      %884 = vmatprep.subr.mxu0 0.0
      %885 = vmatpush1.msra.mxu0 0.0
      %886 = vmatprep.subr.mxu0 0.0
      %887 = vmatpush1.msra.mxu0 %v787
      %888 = vmatprep.subr.mxu0 0.0
      %889 = vmatpush2.msra.mxu0 0.0
      %890 = vmatprep.subr.mxu0 0.0
      %891 = vmatpush2.msra.mxu0 0.0
      %892 = vmatprep.subr.mxu0 0.0
      %893 = vmatpush2.msra.mxu0 0.0
      %894 = vmatprep.subr.mxu0 0.0
      %895 = vmatpush2.msra.mxu0 0.0
      %896 = vmatprep.subr.mxu0 0.0
      %897 = vmatpush2.msra.mxu0 0.0
      %898 = vmatprep.subr.mxu0 0.0
      %899 = vmatpush2.msra.mxu0 0.0
      %900 = vmatprep.subr.mxu0 0.0
      %901 = vmatpush2.msra.mxu0 0.0
      %902 = vmatprep.subr.mxu0 0.0
      %903 = vmatpush2.msra.mxu0 0.0
      %904 = vmatprep.subr.mxu0 0.0
      %905 = vmatpush2.msra.mxu0 0.0
      %906 = vmatprep.subr.mxu0 0.0
      %907 = vmatpush2.msra.mxu0 0.0
      %908 = vmatprep.subr.mxu0 0.0
      %909 = vmatpush2.msra.mxu0 0.0
      %910 = vmatprep.subr.mxu0 0.0
      %911 = vmatpush2.msra.mxu0 0.0
      %912 = vmatprep.subr.mxu0 0.0
      %913 = vmatpush2.msra.mxu0 0.0
      %914 = vmatprep.subr.mxu0 0.0
      %915 = vmatpush2.msra.mxu0 0.0
      %916 = vmatprep.subr.mxu0 0.0
      %917 = vmatpush2.msra.mxu0 0.0
      %918 = vmatprep.subr.mxu0 0.0
      %919 = vmatpush2.msra.mxu0 0.0
      %920 = vmatprep.mubr.f32.mxu0 0.0
      %921 = vmatmul.mubr.f32.gmra.mxu0 %v851
      %v922 = vpop.f32.mrf.mxu0
      %v923 = vadd.f32 0.0, %v922
      %v924 = vpop.f32.mrf.mxu0
      %925 = vmatprep.mubr.f32.mxu0 0.0
      %926 = vmatmul.mubr.f32.gmra.mxu0 %v854
      %v927 = vpop.f32.mrf.mxu0
      %v928 = vadd.f32 0.0, %v927
      %v929 = vpop.f32.mrf.mxu0
      %930 = vdwg.mxu0
      %931 = vxpose.xlu0.b32.start [1/16] %v774, 128
      %932 = vxpose.xlu0.b32.cont [2/16] 0.0, 128
      %933 = vxpose.xlu0.b32.cont [3/16] 0.0, 128
      %934 = vxpose.xlu0.b32.cont [4/16] 0.0, 128
      %935 = vxpose.xlu0.b32.cont [5/16] 0.0, 128
      %936 = vxpose.xlu0.b32.cont [6/16] 0.0, 128
      %937 = vxpose.xlu0.b32.cont [7/16] 0.0, 128
      %938 = vxpose.xlu0.b32.cont [8/16] 0.0, 128
      %939 = vxpose.xlu0.b32.cont [9/16] 0.0, 128
      %940 = vxpose.xlu0.b32.cont [10/16] 0.0, 128
      %941 = vxpose.xlu0.b32.cont [11/16] 0.0, 128
      %942 = vxpose.xlu0.b32.cont [12/16] 0.0, 128
      %943 = vxpose.xlu0.b32.cont [13/16] 0.0, 128
      %944 = vxpose.xlu0.b32.cont [14/16] 0.0, 128
      %945 = vxpose.xlu0.b32.cont [15/16] 0.0, 128
      %946 = vxpose.xlu0.b32.end [16/16] 0.0, 128
      %v947 = vpop.trf.xlu0
      %v948 = vpop.trf.xlu0
      %v949 = vpop.trf.xlu0
      %v950 = vpop.trf.xlu0
      %v951 = vpop.trf.xlu0
      %v952 = vpop.trf.xlu0
      %v953 = vpop.trf.xlu0
      %v954 = vpop.trf.xlu0
      %v955 = vpop.trf.xlu0
      %v956 = vpop.trf.xlu0
      %v957 = vpop.trf.xlu0
      %v958 = vpop.trf.xlu0
      %v959 = vpop.trf.xlu0
      %v960 = vpop.trf.xlu0
      %v961 = vpop.trf.xlu0
      %v962 = vpop.trf.xlu0
      %v964 = vsel %vm849, %v947, 0
      %v967 = vsel %vm849, %v948, 0
      %969 = vmatprep.subr.mxu0 0.0
      %970 = vmatpush1.msra.mxu0 0.0
      %971 = vmatprep.subr.mxu0 0.0
      %972 = vmatpush1.msra.mxu0 0.0
      %973 = vmatprep.subr.mxu0 0.0
      %974 = vmatpush1.msra.mxu0 0.0
      %975 = vmatprep.subr.mxu0 0.0
      %976 = vmatpush1.msra.mxu0 0.0
      %977 = vmatprep.subr.mxu0 0.0
      %978 = vmatpush1.msra.mxu0 0.0
      %979 = vmatprep.subr.mxu0 0.0
      %980 = vmatpush1.msra.mxu0 0.0
      %981 = vmatprep.subr.mxu0 0.0
      %982 = vmatpush1.msra.mxu0 0.0
      %983 = vmatprep.subr.mxu0 0.0
      %984 = vmatpush1.msra.mxu0 0.0
      %985 = vmatprep.subr.mxu0 0.0
      %986 = vmatpush1.msra.mxu0 0.0
      %987 = vmatprep.subr.mxu0 0.0
      %988 = vmatpush1.msra.mxu0 0.0
      %989 = vmatprep.subr.mxu0 0.0
      %990 = vmatpush1.msra.mxu0 0.0
      %991 = vmatprep.subr.mxu0 0.0
      %992 = vmatpush1.msra.mxu0 0.0
      %993 = vmatprep.subr.mxu0 0.0
      %994 = vmatpush1.msra.mxu0 0.0
      %995 = vmatprep.subr.mxu0 0.0
      %996 = vmatpush1.msra.mxu0 0.0
      %997 = vmatprep.subr.mxu0 0.0
      %998 = vmatpush1.msra.mxu0 0.0
      %999 = vmatprep.subr.mxu0 0.0
      %1000 = vmatpush1.msra.mxu0 %v790
      %1001 = vmatprep.subr.mxu0 0.0
      %1002 = vmatpush2.msra.mxu0 0.0
      %1003 = vmatprep.subr.mxu0 0.0
      %1004 = vmatpush2.msra.mxu0 0.0
      %1005 = vmatprep.subr.mxu0 0.0
      %1006 = vmatpush2.msra.mxu0 0.0
      %1007 = vmatprep.subr.mxu0 0.0
      %1008 = vmatpush2.msra.mxu0 0.0
      %1009 = vmatprep.subr.mxu0 0.0
      %1010 = vmatpush2.msra.mxu0 0.0
      %1011 = vmatprep.subr.mxu0 0.0
      %1012 = vmatpush2.msra.mxu0 0.0
      %1013 = vmatprep.subr.mxu0 0.0
      %1014 = vmatpush2.msra.mxu0 0.0
      %1015 = vmatprep.subr.mxu0 0.0
      %1016 = vmatpush2.msra.mxu0 0.0
      %1017 = vmatprep.subr.mxu0 0.0
      %1018 = vmatpush2.msra.mxu0 0.0
      %1019 = vmatprep.subr.mxu0 0.0
      %1020 = vmatpush2.msra.mxu0 0.0
      %1021 = vmatprep.subr.mxu0 0.0
      %1022 = vmatpush2.msra.mxu0 0.0
      %1023 = vmatprep.subr.mxu0 0.0
      %1024 = vmatpush2.msra.mxu0 0.0
      %1025 = vmatprep.subr.mxu0 0.0
      %1026 = vmatpush2.msra.mxu0 0.0
      %1027 = vmatprep.subr.mxu0 0.0
      %1028 = vmatpush2.msra.mxu0 0.0
      %1029 = vmatprep.subr.mxu0 0.0
      %1030 = vmatpush2.msra.mxu0 0.0
      %1031 = vmatprep.subr.mxu0 0.0
      %1032 = vmatpush2.msra.mxu0 0.0
      %1033 = vmatprep.mubr.f32.mxu0 0.0
      %1034 = vmatmul.mubr.f32.gmra.mxu0 %v964
      %v1035 = vpop.f32.mrf.mxu0
      %v1036 = vadd.f32 0.0, %v1035
      %v1037 = vpop.f32.mrf.mxu0
      %1038 = vmatprep.mubr.f32.mxu0 0.0
      %1039 = vmatmul.mubr.f32.gmra.mxu0 %v967
      %v1040 = vpop.f32.mrf.mxu0
      %v1041 = vadd.f32 0.0, %v1040
      %v1042 = vpop.f32.mrf.mxu0
      %1043 = vdwg.mxu0
      %1044 = vxpose.xlu0.b32.start [1/16] %v779, 128
      %1045 = vxpose.xlu0.b32.cont [2/16] 0.0, 128
      %1046 = vxpose.xlu0.b32.cont [3/16] 0.0, 128
      %1047 = vxpose.xlu0.b32.cont [4/16] 0.0, 128
      %1048 = vxpose.xlu0.b32.cont [5/16] 0.0, 128
      %1049 = vxpose.xlu0.b32.cont [6/16] 0.0, 128
      %1050 = vxpose.xlu0.b32.cont [7/16] 0.0, 128
      %1051 = vxpose.xlu0.b32.cont [8/16] 0.0, 128
      %1052 = vxpose.xlu0.b32.cont [9/16] 0.0, 128
      %1053 = vxpose.xlu0.b32.cont [10/16] 0.0, 128
      %1054 = vxpose.xlu0.b32.cont [11/16] 0.0, 128
      %1055 = vxpose.xlu0.b32.cont [12/16] 0.0, 128
      %1056 = vxpose.xlu0.b32.cont [13/16] 0.0, 128
      %1057 = vxpose.xlu0.b32.cont [14/16] 0.0, 128
      %1058 = vxpose.xlu0.b32.cont [15/16] 0.0, 128
      %1059 = vxpose.xlu0.b32.end [16/16] 0.0, 128
      %v1060 = vpop.trf.xlu0
      %v1061 = vpop.trf.xlu0
      %v1062 = vpop.trf.xlu0
      %v1063 = vpop.trf.xlu0
      %v1064 = vpop.trf.xlu0
      %v1065 = vpop.trf.xlu0
      %v1066 = vpop.trf.xlu0
      %v1067 = vpop.trf.xlu0
      %v1068 = vpop.trf.xlu0
      %v1069 = vpop.trf.xlu0
      %v1070 = vpop.trf.xlu0
      %v1071 = vpop.trf.xlu0
      %v1072 = vpop.trf.xlu0
      %v1073 = vpop.trf.xlu0
      %v1074 = vpop.trf.xlu0
      %v1075 = vpop.trf.xlu0
      %v1077 = vsel %vm849, %v1060, 0
      %v1080 = vsel %vm849, %v1061, 0
      %1082 = vmatprep.subr.mxu0 0.0
      %1083 = vmatpush1.msra.mxu0 0.0
      %1084 = vmatprep.subr.mxu0 0.0
      %1085 = vmatpush1.msra.mxu0 0.0
      %1086 = vmatprep.subr.mxu0 0.0
      %1087 = vmatpush1.msra.mxu0 0.0
      %1088 = vmatprep.subr.mxu0 0.0
      %1089 = vmatpush1.msra.mxu0 0.0
      %1090 = vmatprep.subr.mxu0 0.0
      %1091 = vmatpush1.msra.mxu0 0.0
      %1092 = vmatprep.subr.mxu0 0.0
      %1093 = vmatpush1.msra.mxu0 0.0
      %1094 = vmatprep.subr.mxu0 0.0
      %1095 = vmatpush1.msra.mxu0 0.0
      %1096 = vmatprep.subr.mxu0 0.0
      %1097 = vmatpush1.msra.mxu0 0.0
      %1098 = vmatprep.subr.mxu0 0.0
      %1099 = vmatpush1.msra.mxu0 0.0
      %1100 = vmatprep.subr.mxu0 0.0
      %1101 = vmatpush1.msra.mxu0 0.0
      %1102 = vmatprep.subr.mxu0 0.0
      %1103 = vmatpush1.msra.mxu0 0.0
      %1104 = vmatprep.subr.mxu0 0.0
      %1105 = vmatpush1.msra.mxu0 0.0
      %1106 = vmatprep.subr.mxu0 0.0
      %1107 = vmatpush1.msra.mxu0 0.0
      %1108 = vmatprep.subr.mxu0 0.0
      %1109 = vmatpush1.msra.mxu0 0.0
      %1110 = vmatprep.subr.mxu0 0.0
      %1111 = vmatpush1.msra.mxu0 0.0
      %1112 = vmatprep.subr.mxu0 0.0
      %1113 = vmatpush1.msra.mxu0 %v795
      %1114 = vmatprep.subr.mxu0 0.0
      %1115 = vmatpush2.msra.mxu0 0.0
      %1116 = vmatprep.subr.mxu0 0.0
      %1117 = vmatpush2.msra.mxu0 0.0
      %1118 = vmatprep.subr.mxu0 0.0
      %1119 = vmatpush2.msra.mxu0 0.0
      %1120 = vmatprep.subr.mxu0 0.0
      %1121 = vmatpush2.msra.mxu0 0.0
      %1122 = vmatprep.subr.mxu0 0.0
      %1123 = vmatpush2.msra.mxu0 0.0
      %1124 = vmatprep.subr.mxu0 0.0
      %1125 = vmatpush2.msra.mxu0 0.0
      %1126 = vmatprep.subr.mxu0 0.0
      %1127 = vmatpush2.msra.mxu0 0.0
      %1128 = vmatprep.subr.mxu0 0.0
      %1129 = vmatpush2.msra.mxu0 0.0
      %1130 = vmatprep.subr.mxu0 0.0
      %1131 = vmatpush2.msra.mxu0 0.0
      %1132 = vmatprep.subr.mxu0 0.0
      %1133 = vmatpush2.msra.mxu0 0.0
      %1134 = vmatprep.subr.mxu0 0.0
      %1135 = vmatpush2.msra.mxu0 0.0
      %1136 = vmatprep.subr.mxu0 0.0
      %1137 = vmatpush2.msra.mxu0 0.0
      %1138 = vmatprep.subr.mxu0 0.0
      %1139 = vmatpush2.msra.mxu0 0.0
      %1140 = vmatprep.subr.mxu0 0.0
      %1141 = vmatpush2.msra.mxu0 0.0
      %1142 = vmatprep.subr.mxu0 0.0
      %1143 = vmatpush2.msra.mxu0 0.0
      %1144 = vmatprep.subr.mxu0 0.0
      %1145 = vmatpush2.msra.mxu0 0.0
      %1146 = vmatprep.mubr.f32.mxu0 0.0
      %1147 = vmatmul.mubr.f32.gmra.mxu0 %v1077
      %v1148 = vpop.f32.mrf.mxu0
      %v1149 = vadd.f32 0.0, %v1148
      %v1150 = vpop.f32.mrf.mxu0
      %1151 = vmatprep.mubr.f32.mxu0 0.0
      %1152 = vmatmul.mubr.f32.gmra.mxu0 %v1080
      %v1153 = vpop.f32.mrf.mxu0
      %v1154 = vadd.f32 0.0, %v1153
      %v1155 = vpop.f32.mrf.mxu0
      %1156 = vdwg.mxu0
      %1157 = vxpose.xlu0.b32.start [1/16] %v782, 128
      %1158 = vxpose.xlu0.b32.cont [2/16] 0.0, 128
      %1159 = vxpose.xlu0.b32.cont [3/16] 0.0, 128
      %1160 = vxpose.xlu0.b32.cont [4/16] 0.0, 128
      %1161 = vxpose.xlu0.b32.cont [5/16] 0.0, 128
      %1162 = vxpose.xlu0.b32.cont [6/16] 0.0, 128
      %1163 = vxpose.xlu0.b32.cont [7/16] 0.0, 128
      %1164 = vxpose.xlu0.b32.cont [8/16] 0.0, 128
      %1165 = vxpose.xlu0.b32.cont [9/16] 0.0, 128
      %1166 = vxpose.xlu0.b32.cont [10/16] 0.0, 128
      %1167 = vxpose.xlu0.b32.cont [11/16] 0.0, 128
      %1168 = vxpose.xlu0.b32.cont [12/16] 0.0, 128
      %1169 = vxpose.xlu0.b32.cont [13/16] 0.0, 128
      %1170 = vxpose.xlu0.b32.cont [14/16] 0.0, 128
      %1171 = vxpose.xlu0.b32.cont [15/16] 0.0, 128
      %1172 = vxpose.xlu0.b32.end [16/16] 0.0, 128
      %v1173 = vpop.trf.xlu0
      %v1174 = vpop.trf.xlu0
      %v1175 = vpop.trf.xlu0
      %v1176 = vpop.trf.xlu0
      %v1177 = vpop.trf.xlu0
      %v1178 = vpop.trf.xlu0
      %v1179 = vpop.trf.xlu0
      %v1180 = vpop.trf.xlu0
      %v1181 = vpop.trf.xlu0
      %v1182 = vpop.trf.xlu0
      %v1183 = vpop.trf.xlu0
      %v1184 = vpop.trf.xlu0
      %v1185 = vpop.trf.xlu0
      %v1186 = vpop.trf.xlu0
      %v1187 = vpop.trf.xlu0
      %v1188 = vpop.trf.xlu0
      %v1190 = vsel %vm849, %v1173, 0
      %v1193 = vsel %vm849, %v1174, 0
      %1195 = vmatprep.subr.mxu0 0.0
      %1196 = vmatpush1.msra.mxu0 0.0
      %1197 = vmatprep.subr.mxu0 0.0
      %1198 = vmatpush1.msra.mxu0 0.0
      %1199 = vmatprep.subr.mxu0 0.0
      %1200 = vmatpush1.msra.mxu0 0.0
      %1201 = vmatprep.subr.mxu0 0.0
      %1202 = vmatpush1.msra.mxu0 0.0
      %1203 = vmatprep.subr.mxu0 0.0
      %1204 = vmatpush1.msra.mxu0 0.0
      %1205 = vmatprep.subr.mxu0 0.0
      %1206 = vmatpush1.msra.mxu0 0.0
      %1207 = vmatprep.subr.mxu0 0.0
      %1208 = vmatpush1.msra.mxu0 0.0
      %1209 = vmatprep.subr.mxu0 0.0
      %1210 = vmatpush1.msra.mxu0 0.0
      %1211 = vmatprep.subr.mxu0 0.0
      %1212 = vmatpush1.msra.mxu0 0.0
      %1213 = vmatprep.subr.mxu0 0.0
      %1214 = vmatpush1.msra.mxu0 0.0
      %1215 = vmatprep.subr.mxu0 0.0
      %1216 = vmatpush1.msra.mxu0 0.0
      %1217 = vmatprep.subr.mxu0 0.0
      %1218 = vmatpush1.msra.mxu0 0.0
      %1219 = vmatprep.subr.mxu0 0.0
      %1220 = vmatpush1.msra.mxu0 0.0
      %1221 = vmatprep.subr.mxu0 0.0
      %1222 = vmatpush1.msra.mxu0 0.0
      %1223 = vmatprep.subr.mxu0 0.0
      %1224 = vmatpush1.msra.mxu0 0.0
      %1225 = vmatprep.subr.mxu0 0.0
      %1226 = vmatpush1.msra.mxu0 %v798
      %1227 = vmatprep.subr.mxu0 0.0
      %1228 = vmatpush2.msra.mxu0 0.0
      %1229 = vmatprep.subr.mxu0 0.0
      %1230 = vmatpush2.msra.mxu0 0.0
      %1231 = vmatprep.subr.mxu0 0.0
      %1232 = vmatpush2.msra.mxu0 0.0
      %1233 = vmatprep.subr.mxu0 0.0
      %1234 = vmatpush2.msra.mxu0 0.0
      %1235 = vmatprep.subr.mxu0 0.0
      %1236 = vmatpush2.msra.mxu0 0.0
      %1237 = vmatprep.subr.mxu0 0.0
      %1238 = vmatpush2.msra.mxu0 0.0
      %1239 = vmatprep.subr.mxu0 0.0
      %1240 = vmatpush2.msra.mxu0 0.0
      %1241 = vmatprep.subr.mxu0 0.0
      %1242 = vmatpush2.msra.mxu0 0.0
      %1243 = vmatprep.subr.mxu0 0.0
      %1244 = vmatpush2.msra.mxu0 0.0
      %1245 = vmatprep.subr.mxu0 0.0
      %1246 = vmatpush2.msra.mxu0 0.0
      %1247 = vmatprep.subr.mxu0 0.0
      %1248 = vmatpush2.msra.mxu0 0.0
      %1249 = vmatprep.subr.mxu0 0.0
      %1250 = vmatpush2.msra.mxu0 0.0
      %1251 = vmatprep.subr.mxu0 0.0
      %1252 = vmatpush2.msra.mxu0 0.0
      %1253 = vmatprep.subr.mxu0 0.0
      %1254 = vmatpush2.msra.mxu0 0.0
      %1255 = vmatprep.subr.mxu0 0.0
      %1256 = vmatpush2.msra.mxu0 0.0
      %1257 = vmatprep.subr.mxu0 0.0
      %1258 = vmatpush2.msra.mxu0 0.0
      %1259 = vmatprep.mubr.f32.mxu0 0.0
      %1260 = vmatmul.mubr.f32.gmra.mxu0 %v1190
      %v1261 = vpop.f32.mrf.mxu0
      %v1262 = vadd.f32 0.0, %v1261
      %v1263 = vpop.f32.mrf.mxu0
      %1264 = vmatprep.mubr.f32.mxu0 0.0
      %1265 = vmatmul.mubr.f32.gmra.mxu0 %v1193
      %v1266 = vpop.f32.mrf.mxu0
      %v1267 = vadd.f32 0.0, %v1266
      %v1268 = vpop.f32.mrf.mxu0
      %1269 = vdwg.mxu0
      %v1270 = vsel %vm509, %v923, -inf
      %1271 = vmax.xlane.f32.xlu0 %v1270
      %v1272 = vpop.xlane.xlu0 %1271
      %v1273 = vsel %vm509, %v928, -inf
      %1274 = vmax.xlane.f32.xlu0 %v1273
      %v1275 = vpop.xlane.xlu0 %1274
      %v1276 = vsel %vm509, %v1036, -inf
      %1277 = vmax.xlane.f32.xlu0 %v1276
      %v1278 = vpop.xlane.xlu0 %1277
      %v1279 = vsel %vm509, %v1041, -inf
      %1280 = vmax.xlane.f32.xlu0 %v1279
      %v1281 = vpop.xlane.xlu0 %1280
      %v1282 = vsel %vm509, %v1149, -inf
      %1283 = vmax.xlane.f32.xlu0 %v1282
      %v1284 = vpop.xlane.xlu0 %1283
      %v1285 = vsel %vm509, %v1154, -inf
      %1286 = vmax.xlane.f32.xlu0 %v1285
      %v1287 = vpop.xlane.xlu0 %1286
      %v1288 = vsel %vm509, %v1262, -inf
      %1289 = vmax.xlane.f32.xlu0 %v1288
      %v1290 = vpop.xlane.xlu0 %1289
      %v1291 = vsel %vm509, %v1267, -inf
      %1292 = vmax.xlane.f32.xlu0 %v1291
      %v1293 = vpop.xlane.xlu0 %1292
      %v1294 = vsub.f32 %v923, %v1272
      %v1295 = vsub.f32 %v928, %v1275
      %v1296 = vsub.f32 %v1036, %v1278
      %v1297 = vsub.f32 %v1041, %v1281
      %v1298 = vsub.f32 %v1149, %v1284
      %v1299 = vsub.f32 %v1154, %v1287
      %v1300 = vsub.f32 %v1262, %v1290
      %v1301 = vsub.f32 %v1267, %v1293
      %v1302 = vmul.f32 %v1294, 1.442695
      %v1303 = vpow.pop %v1302
      %v1304 = vmul.f32 %v1295, 1.442695
      %v1305 = vpow.pop %v1304
      %v1306 = vmul.f32 %v1296, 1.442695
      %v1307 = vpow.pop %v1306
      %v1308 = vmul.f32 %v1297, 1.442695
      %v1309 = vpow.pop %v1308
      %v1310 = vmul.f32 %v1298, 1.442695
      %v1311 = vpow.pop %v1310
      %v1312 = vmul.f32 %v1299, 1.442695
      %v1313 = vpow.pop %v1312
      %v1314 = vmul.f32 %v1300, 1.442695
      %v1315 = vpow.pop %v1314
      %v1316 = vmul.f32 %v1301, 1.442695
      %v1317 = vpow.pop %v1316
      %v1318 = vsel %vm509, %v1303, 0.0
      %1319 = vadd.xlane.f32.xlu0 %v1318
      %v1320 = vpop.xlane.xlu0 %1319
      %v1321 = vsel %vm509, %v1305, 0.0
      %1322 = vadd.xlane.f32.xlu0 %v1321
      %v1323 = vpop.xlane.xlu0 %1322
      %v1324 = vsel %vm509, %v1307, 0.0
      %1325 = vadd.xlane.f32.xlu0 %v1324
      %v1326 = vpop.xlane.xlu0 %1325
      %v1327 = vsel %vm509, %v1309, 0.0
      %1328 = vadd.xlane.f32.xlu0 %v1327
      %v1329 = vpop.xlane.xlu0 %1328
      %v1330 = vsel %vm509, %v1311, 0.0
      %1331 = vadd.xlane.f32.xlu0 %v1330
      %v1332 = vpop.xlane.xlu0 %1331
      %v1333 = vsel %vm509, %v1313, 0.0
      %1334 = vadd.xlane.f32.xlu0 %v1333
      %v1335 = vpop.xlane.xlu0 %1334
      %v1336 = vsel %vm509, %v1315, 0.0
      %1337 = vadd.xlane.f32.xlu0 %v1336
      %v1338 = vpop.xlane.xlu0 %1337
      %v1339 = vsel %vm509, %v1317, 0.0
      %1340 = vadd.xlane.f32.xlu0 %v1339
      %v1341 = vpop.xlane.xlu0 %1340
      %v1342 = vrcp.pop %v1320
      %v1343 = vrcp.pop %v1323
      %v1344 = vrcp.pop %v1326
      %v1345 = vrcp.pop %v1329
      %v1346 = vrcp.pop %v1332
      %v1347 = vrcp.pop %v1335
      %v1348 = vrcp.pop %v1338
      %v1349 = vrcp.pop %v1341
      %v1350 = vmul.f32 %v1303, %v1342
      %v1351 = vmul.f32 %v1305, %v1343
      %v1352 = vmul.f32 %v1307, %v1344
      %v1353 = vmul.f32 %v1309, %v1345
      %v1354 = vmul.f32 %v1311, %v1346
      %v1355 = vmul.f32 %v1313, %v1347
      %v1356 = vmul.f32 %v1315, %v1348
      %v1357 = vmul.f32 %v1317, %v1349
      %v1359 = vsel %vm509, %v803, 0
      %v1362 = vsel %vm509, %v1350, 0
      %v1365 = vsel %vm509, %v1351, 0
      %1367 = vmatprep.subr.mxu0 0.0
      %1368 = vmatpush1.xpose.msra.mxu0 0.0
      %1369 = vmatprep.subr.mxu0 0.0
      %1370 = vmatpush1.xpose.msra.mxu0 0.0
      %1371 = vmatprep.subr.mxu0 0.0
      %1372 = vmatpush1.xpose.msra.mxu0 0.0
      %1373 = vmatprep.subr.mxu0 0.0
      %1374 = vmatpush1.xpose.msra.mxu0 0.0
      %1375 = vmatprep.subr.mxu0 0.0
      %1376 = vmatpush1.xpose.msra.mxu0 0.0
      %1377 = vmatprep.subr.mxu0 0.0
      %1378 = vmatpush1.xpose.msra.mxu0 0.0
      %1379 = vmatprep.subr.mxu0 0.0
      %1380 = vmatpush1.xpose.msra.mxu0 0.0
      %1381 = vmatprep.subr.mxu0 0.0
      %1382 = vmatpush1.xpose.msra.mxu0 0.0
      %1383 = vmatprep.subr.mxu0 0.0
      %1384 = vmatpush1.xpose.msra.mxu0 0.0
      %1385 = vmatprep.subr.mxu0 0.0
      %1386 = vmatpush1.xpose.msra.mxu0 0.0
      %1387 = vmatprep.subr.mxu0 0.0
      %1388 = vmatpush1.xpose.msra.mxu0 0.0
      %1389 = vmatprep.subr.mxu0 0.0
      %1390 = vmatpush1.xpose.msra.mxu0 0.0
      %1391 = vmatprep.subr.mxu0 0.0
      %1392 = vmatpush1.xpose.msra.mxu0 0.0
      %1393 = vmatprep.subr.mxu0 0.0
      %1394 = vmatpush1.xpose.msra.mxu0 0.0
      %1395 = vmatprep.subr.mxu0 0.0
      %1396 = vmatpush1.xpose.msra.mxu0 %v1365
      %1397 = vmatprep.subr.mxu0 0.0
      %1398 = vmatpush1.xpose.msra.mxu0 %v1362
      %1399 = vmatprep.subr.mxu0 0.0
      %1400 = vmatpush2.xpose.msra.mxu0 0.0
      %1401 = vmatprep.subr.mxu0 0.0
      %1402 = vmatpush2.xpose.msra.mxu0 0.0
      %1403 = vmatprep.subr.mxu0 0.0
      %1404 = vmatpush2.xpose.msra.mxu0 0.0
      %1405 = vmatprep.subr.mxu0 0.0
      %1406 = vmatpush2.xpose.msra.mxu0 0.0
      %1407 = vmatprep.subr.mxu0 0.0
      %1408 = vmatpush2.xpose.msra.mxu0 0.0
      %1409 = vmatprep.subr.mxu0 0.0
      %1410 = vmatpush2.xpose.msra.mxu0 0.0
      %1411 = vmatprep.subr.mxu0 0.0
      %1412 = vmatpush2.xpose.msra.mxu0 0.0
      %1413 = vmatprep.subr.mxu0 0.0
      %1414 = vmatpush2.xpose.msra.mxu0 0.0
      %1415 = vmatprep.subr.mxu0 0.0
      %1416 = vmatpush2.xpose.msra.mxu0 0.0
      %1417 = vmatprep.subr.mxu0 0.0
      %1418 = vmatpush2.xpose.msra.mxu0 0.0
      %1419 = vmatprep.subr.mxu0 0.0
      %1420 = vmatpush2.xpose.msra.mxu0 0.0
      %1421 = vmatprep.subr.mxu0 0.0
      %1422 = vmatpush2.xpose.msra.mxu0 0.0
      %1423 = vmatprep.subr.mxu0 0.0
      %1424 = vmatpush2.xpose.msra.mxu0 0.0
      %1425 = vmatprep.subr.mxu0 0.0
      %1426 = vmatpush2.xpose.msra.mxu0 0.0
      %1427 = vmatprep.subr.mxu0 0.0
      %1428 = vmatpush2.xpose.msra.mxu0 0.0
      %1429 = vmatprep.subr.mxu0 0.0
      %1430 = vmatpush2.xpose.msra.mxu0 0.0
      %1431 = vmatprep.mubr.f32.mxu0 0.0
      %1432 = vmatmul.mubr.f32.gmra.mxu0 %v1359
      %v1433 = vpop.f32.mrf.mxu0
      %v1434 = vadd.f32 0.0, %v1433
      %v1435 = vpop.f32.mrf.mxu0
      %1436 = vdwg.mxu0
      %v1438 = vsel %vm509, %v806, 0
      %v1441 = vsel %vm509, %v1352, 0
      %v1444 = vsel %vm509, %v1353, 0
      %1446 = vmatprep.subr.mxu0 0.0
      %1447 = vmatpush1.xpose.msra.mxu0 0.0
      %1448 = vmatprep.subr.mxu0 0.0
      %1449 = vmatpush1.xpose.msra.mxu0 0.0
      %1450 = vmatprep.subr.mxu0 0.0
      %1451 = vmatpush1.xpose.msra.mxu0 0.0
      %1452 = vmatprep.subr.mxu0 0.0
      %1453 = vmatpush1.xpose.msra.mxu0 0.0
      %1454 = vmatprep.subr.mxu0 0.0
      %1455 = vmatpush1.xpose.msra.mxu0 0.0
      %1456 = vmatprep.subr.mxu0 0.0
      %1457 = vmatpush1.xpose.msra.mxu0 0.0
      %1458 = vmatprep.subr.mxu0 0.0
      %1459 = vmatpush1.xpose.msra.mxu0 0.0
      %1460 = vmatprep.subr.mxu0 0.0
      %1461 = vmatpush1.xpose.msra.mxu0 0.0
      %1462 = vmatprep.subr.mxu0 0.0
      %1463 = vmatpush1.xpose.msra.mxu0 0.0
      %1464 = vmatprep.subr.mxu0 0.0
      %1465 = vmatpush1.xpose.msra.mxu0 0.0
      %1466 = vmatprep.subr.mxu0 0.0
      %1467 = vmatpush1.xpose.msra.mxu0 0.0
      %1468 = vmatprep.subr.mxu0 0.0
      %1469 = vmatpush1.xpose.msra.mxu0 0.0
      %1470 = vmatprep.subr.mxu0 0.0
      %1471 = vmatpush1.xpose.msra.mxu0 0.0
      %1472 = vmatprep.subr.mxu0 0.0
      %1473 = vmatpush1.xpose.msra.mxu0 0.0
      %1474 = vmatprep.subr.mxu0 0.0
      %1475 = vmatpush1.xpose.msra.mxu0 %v1444
      %1476 = vmatprep.subr.mxu0 0.0
      %1477 = vmatpush1.xpose.msra.mxu0 %v1441
      %1478 = vmatprep.subr.mxu0 0.0
      %1479 = vmatpush2.xpose.msra.mxu0 0.0
      %1480 = vmatprep.subr.mxu0 0.0
      %1481 = vmatpush2.xpose.msra.mxu0 0.0
      %1482 = vmatprep.subr.mxu0 0.0
      %1483 = vmatpush2.xpose.msra.mxu0 0.0
      %1484 = vmatprep.subr.mxu0 0.0
      %1485 = vmatpush2.xpose.msra.mxu0 0.0
      %1486 = vmatprep.subr.mxu0 0.0
      %1487 = vmatpush2.xpose.msra.mxu0 0.0
      %1488 = vmatprep.subr.mxu0 0.0
      %1489 = vmatpush2.xpose.msra.mxu0 0.0
      %1490 = vmatprep.subr.mxu0 0.0
      %1491 = vmatpush2.xpose.msra.mxu0 0.0
      %1492 = vmatprep.subr.mxu0 0.0
      %1493 = vmatpush2.xpose.msra.mxu0 0.0
      %1494 = vmatprep.subr.mxu0 0.0
      %1495 = vmatpush2.xpose.msra.mxu0 0.0
      %1496 = vmatprep.subr.mxu0 0.0
      %1497 = vmatpush2.xpose.msra.mxu0 0.0
      %1498 = vmatprep.subr.mxu0 0.0
      %1499 = vmatpush2.xpose.msra.mxu0 0.0
      %1500 = vmatprep.subr.mxu0 0.0
      %1501 = vmatpush2.xpose.msra.mxu0 0.0
      %1502 = vmatprep.subr.mxu0 0.0
      %1503 = vmatpush2.xpose.msra.mxu0 0.0
      %1504 = vmatprep.subr.mxu0 0.0
      %1505 = vmatpush2.xpose.msra.mxu0 0.0
      %1506 = vmatprep.subr.mxu0 0.0
      %1507 = vmatpush2.xpose.msra.mxu0 0.0
      %1508 = vmatprep.subr.mxu0 0.0
      %1509 = vmatpush2.xpose.msra.mxu0 0.0
      %1510 = vmatprep.mubr.f32.mxu0 0.0
      %1511 = vmatmul.mubr.f32.gmra.mxu0 %v1438
      %v1512 = vpop.f32.mrf.mxu0
      %v1513 = vadd.f32 0.0, %v1512
      %v1514 = vpop.f32.mrf.mxu0
      %1515 = vdwg.mxu0
      %v1517 = vsel %vm509, %v811, 0
      %v1520 = vsel %vm509, %v1354, 0
      %v1523 = vsel %vm509, %v1355, 0
      %1525 = vmatprep.subr.mxu0 0.0
      %1526 = vmatpush1.xpose.msra.mxu0 0.0
      %1527 = vmatprep.subr.mxu0 0.0
      %1528 = vmatpush1.xpose.msra.mxu0 0.0
      %1529 = vmatprep.subr.mxu0 0.0
      %1530 = vmatpush1.xpose.msra.mxu0 0.0
      %1531 = vmatprep.subr.mxu0 0.0
      %1532 = vmatpush1.xpose.msra.mxu0 0.0
      %1533 = vmatprep.subr.mxu0 0.0
      %1534 = vmatpush1.xpose.msra.mxu0 0.0
      %1535 = vmatprep.subr.mxu0 0.0
      %1536 = vmatpush1.xpose.msra.mxu0 0.0
      %1537 = vmatprep.subr.mxu0 0.0
      %1538 = vmatpush1.xpose.msra.mxu0 0.0
      %1539 = vmatprep.subr.mxu0 0.0
      %1540 = vmatpush1.xpose.msra.mxu0 0.0
      %1541 = vmatprep.subr.mxu0 0.0
      %1542 = vmatpush1.xpose.msra.mxu0 0.0
      %1543 = vmatprep.subr.mxu0 0.0
      %1544 = vmatpush1.xpose.msra.mxu0 0.0
      %1545 = vmatprep.subr.mxu0 0.0
      %1546 = vmatpush1.xpose.msra.mxu0 0.0
      %1547 = vmatprep.subr.mxu0 0.0
      %1548 = vmatpush1.xpose.msra.mxu0 0.0
      %1549 = vmatprep.subr.mxu0 0.0
      %1550 = vmatpush1.xpose.msra.mxu0 0.0
      %1551 = vmatprep.subr.mxu0 0.0
      %1552 = vmatpush1.xpose.msra.mxu0 0.0
      %1553 = vmatprep.subr.mxu0 0.0
      %1554 = vmatpush1.xpose.msra.mxu0 %v1523
      %1555 = vmatprep.subr.mxu0 0.0
      %1556 = vmatpush1.xpose.msra.mxu0 %v1520
      %1557 = vmatprep.subr.mxu0 0.0
      %1558 = vmatpush2.xpose.msra.mxu0 0.0
      %1559 = vmatprep.subr.mxu0 0.0
      %1560 = vmatpush2.xpose.msra.mxu0 0.0
      %1561 = vmatprep.subr.mxu0 0.0
      %1562 = vmatpush2.xpose.msra.mxu0 0.0
      %1563 = vmatprep.subr.mxu0 0.0
      %1564 = vmatpush2.xpose.msra.mxu0 0.0
      %1565 = vmatprep.subr.mxu0 0.0
      %1566 = vmatpush2.xpose.msra.mxu0 0.0
      %1567 = vmatprep.subr.mxu0 0.0
      %1568 = vmatpush2.xpose.msra.mxu0 0.0
      %1569 = vmatprep.subr.mxu0 0.0
      %1570 = vmatpush2.xpose.msra.mxu0 0.0
      %1571 = vmatprep.subr.mxu0 0.0
      %1572 = vmatpush2.xpose.msra.mxu0 0.0
      %1573 = vmatprep.subr.mxu0 0.0
      %1574 = vmatpush2.xpose.msra.mxu0 0.0
      %1575 = vmatprep.subr.mxu0 0.0
      %1576 = vmatpush2.xpose.msra.mxu0 0.0
      %1577 = vmatprep.subr.mxu0 0.0
      %1578 = vmatpush2.xpose.msra.mxu0 0.0
      %1579 = vmatprep.subr.mxu0 0.0
      %1580 = vmatpush2.xpose.msra.mxu0 0.0
      %1581 = vmatprep.subr.mxu0 0.0
      %1582 = vmatpush2.xpose.msra.mxu0 0.0
      %1583 = vmatprep.subr.mxu0 0.0
      %1584 = vmatpush2.xpose.msra.mxu0 0.0
      %1585 = vmatprep.subr.mxu0 0.0
      %1586 = vmatpush2.xpose.msra.mxu0 0.0
      %1587 = vmatprep.subr.mxu0 0.0
      %1588 = vmatpush2.xpose.msra.mxu0 0.0
      %1589 = vmatprep.mubr.f32.mxu0 0.0
      %1590 = vmatmul.mubr.f32.gmra.mxu0 %v1517
      %v1591 = vpop.f32.mrf.mxu0
      %v1592 = vadd.f32 0.0, %v1591
      %v1593 = vpop.f32.mrf.mxu0
      %1594 = vdwg.mxu0
      %v1596 = vsel %vm509, %v814, 0
      %v1599 = vsel %vm509, %v1356, 0
      %v1602 = vsel %vm509, %v1357, 0
      %1604 = vmatprep.subr.mxu0 0.0
      %1605 = vmatpush1.xpose.msra.mxu0 0.0
      %1606 = vmatprep.subr.mxu0 0.0
      %1607 = vmatpush1.xpose.msra.mxu0 0.0
      %1608 = vmatprep.subr.mxu0 0.0
      %1609 = vmatpush1.xpose.msra.mxu0 0.0
      %1610 = vmatprep.subr.mxu0 0.0
      %1611 = vmatpush1.xpose.msra.mxu0 0.0
      %1612 = vmatprep.subr.mxu0 0.0
      %1613 = vmatpush1.xpose.msra.mxu0 0.0
      %1614 = vmatprep.subr.mxu0 0.0
      %1615 = vmatpush1.xpose.msra.mxu0 0.0
      %1616 = vmatprep.subr.mxu0 0.0
      %1617 = vmatpush1.xpose.msra.mxu0 0.0
      %1618 = vmatprep.subr.mxu0 0.0
      %1619 = vmatpush1.xpose.msra.mxu0 0.0
      %1620 = vmatprep.subr.mxu0 0.0
      %1621 = vmatpush1.xpose.msra.mxu0 0.0
      %1622 = vmatprep.subr.mxu0 0.0
      %1623 = vmatpush1.xpose.msra.mxu0 0.0
      %1624 = vmatprep.subr.mxu0 0.0
      %1625 = vmatpush1.xpose.msra.mxu0 0.0
      %1626 = vmatprep.subr.mxu0 0.0
      %1627 = vmatpush1.xpose.msra.mxu0 0.0
      %1628 = vmatprep.subr.mxu0 0.0
      %1629 = vmatpush1.xpose.msra.mxu0 0.0
      %1630 = vmatprep.subr.mxu0 0.0
      %1631 = vmatpush1.xpose.msra.mxu0 0.0
      %1632 = vmatprep.subr.mxu0 0.0
      %1633 = vmatpush1.xpose.msra.mxu0 %v1602
      %1634 = vmatprep.subr.mxu0 0.0
      %1635 = vmatpush1.xpose.msra.mxu0 %v1599
      %1636 = vmatprep.subr.mxu0 0.0
      %1637 = vmatpush2.xpose.msra.mxu0 0.0
      %1638 = vmatprep.subr.mxu0 0.0
      %1639 = vmatpush2.xpose.msra.mxu0 0.0
      %1640 = vmatprep.subr.mxu0 0.0
      %1641 = vmatpush2.xpose.msra.mxu0 0.0
      %1642 = vmatprep.subr.mxu0 0.0
      %1643 = vmatpush2.xpose.msra.mxu0 0.0
      %1644 = vmatprep.subr.mxu0 0.0
      %1645 = vmatpush2.xpose.msra.mxu0 0.0
      %1646 = vmatprep.subr.mxu0 0.0
      %1647 = vmatpush2.xpose.msra.mxu0 0.0
      %1648 = vmatprep.subr.mxu0 0.0
      %1649 = vmatpush2.xpose.msra.mxu0 0.0
      %1650 = vmatprep.subr.mxu0 0.0
      %1651 = vmatpush2.xpose.msra.mxu0 0.0
      %1652 = vmatprep.subr.mxu0 0.0
      %1653 = vmatpush2.xpose.msra.mxu0 0.0
      %1654 = vmatprep.subr.mxu0 0.0
      %1655 = vmatpush2.xpose.msra.mxu0 0.0
      %1656 = vmatprep.subr.mxu0 0.0
      %1657 = vmatpush2.xpose.msra.mxu0 0.0
      %1658 = vmatprep.subr.mxu0 0.0
      %1659 = vmatpush2.xpose.msra.mxu0 0.0
      %1660 = vmatprep.subr.mxu0 0.0
      %1661 = vmatpush2.xpose.msra.mxu0 0.0
      %1662 = vmatprep.subr.mxu0 0.0
      %1663 = vmatpush2.xpose.msra.mxu0 0.0
      %1664 = vmatprep.subr.mxu0 0.0
      %1665 = vmatpush2.xpose.msra.mxu0 0.0
      %1666 = vmatprep.subr.mxu0 0.0
      %1667 = vmatpush2.xpose.msra.mxu0 0.0
      %1668 = vmatprep.mubr.f32.mxu0 0.0
      %1669 = vmatmul.mubr.f32.gmra.mxu0 %v1596
      %v1670 = vpop.f32.mrf.mxu0
      %v1671 = vadd.f32 0.0, %v1670
      %v1672 = vpop.f32.mrf.mxu0
      %1673 = vdwg.mxu0
      %v1674 = vld [vmem:[%s6] sm:$0xf]
      %v1675 = vld [vmem:[%s6 + $0x4] sm:$0xf]
      %v1676 = vld [vmem:[%s6 + $0x8] sm:$0xf]
      %v1677 = vld [vmem:[%s6 + $0xc] sm:$0xf]
      %v1678 = vld [vmem:[%s7] sm:$0xff]
      %v1679 = vld [vmem:[%s7 + $0x8] sm:$0xff]
      %v1680 = vld [vmem:[%s7 + $0x10] sm:$0xff]
      %v1681 = vld [vmem:[%s7 + $0x18] sm:$0xff]
      %v1682 = vpack.c.bf16 %v1513, %v1434
      %v1683 = vpack.c.bf16 %v1671, %v1592
      %1685 = vset.pattern.permute.xlu0 0
      %1686 = vperm.xlu0 %1685, %v1678
      %v1687 = vpop.permute.xlu0 %1686
      %1690 = vset.pattern.permute.xlu0 0
      %1691 = vperm.xlu0 %1690, %v1679
      %v1692 = vpop.permute.xlu0 %1691
      %1695 = vset.pattern.permute.xlu0 0
      %1696 = vperm.xlu0 %1695, %v1680
      %v1697 = vpop.permute.xlu0 %1696
      %1700 = vset.pattern.permute.xlu0 0
      %1701 = vperm.xlu0 %1700, %v1681
      %v1702 = vpop.permute.xlu0 %1701
      %v1708 = vunpack.c.l.b16 %v1674
      %v1709 = vunpack.c.l.b16 %v1675
      %v1710 = vunpack.c.l.b16 %v1676
      %v1711 = vunpack.c.l.b16 %v1677
      %v1712 = vpack.c.b16 %v1709, %v1708
      %v1713 = vpack.c.b16 %v1711, %v1710
      %v1715 = vsel %vm717, %v1712, 0
      %v1718 = vsel %vm717, %v1713, 0
      %1720 = vmatprep.subr.bf16.mxu0 0
      %1721 = vmatpush1.bf16.msra.mxu0 0
      %1722 = vmatprep.subr.bf16.mxu0 0
      %1723 = vmatpush1.bf16.msra.mxu0 0
      %1724 = vmatprep.subr.bf16.mxu0 0
      %1725 = vmatpush1.bf16.msra.mxu0 0
      %1726 = vmatprep.subr.bf16.mxu0 0
      %1727 = vmatpush1.bf16.msra.mxu0 0
      %1728 = vmatprep.subr.bf16.mxu0 0
      %1729 = vmatpush1.bf16.msra.mxu0 0
      %1730 = vmatprep.subr.bf16.mxu0 0
      %1731 = vmatpush1.bf16.msra.mxu0 0
      %1732 = vmatprep.subr.bf16.mxu0 0
      %1733 = vmatpush1.bf16.msra.mxu0 %v1683
      %1734 = vmatprep.subr.bf16.mxu0 0
      %1735 = vmatpush1.bf16.msra.mxu0 %v1682
      %1736 = vmatprep.subr.bf16.mxu0 0
      %1737 = vmatpush2.bf16.msra.mxu0 0
      %1738 = vmatprep.subr.bf16.mxu0 0
      %1739 = vmatpush2.bf16.msra.mxu0 0
      %1740 = vmatprep.subr.bf16.mxu0 0
      %1741 = vmatpush2.bf16.msra.mxu0 0
      %1742 = vmatprep.subr.bf16.mxu0 0
      %1743 = vmatpush2.bf16.msra.mxu0 0
      %1744 = vmatprep.subr.bf16.mxu0 0
      %1745 = vmatpush2.bf16.msra.mxu0 0
      %1746 = vmatprep.subr.bf16.mxu0 0
      %1747 = vmatpush2.bf16.msra.mxu0 0
      %1748 = vmatprep.subr.bf16.mxu0 0
      %1749 = vmatpush2.bf16.msra.mxu0 0
      %1750 = vmatprep.subr.bf16.mxu0 0
      %1751 = vmatpush2.bf16.msra.mxu0 0
      %1752 = vmatprep.mubr.bf16.mxu0 0
      %1753 = vmatmul.mubr.bf16.gmra.mxu0 %v1715
      %v1754 = vpop.f32.mrf.mxu0
      %v1755 = vadd.f32 %v1687, %v1754
      %v1756 = vpop.f32.mrf.mxu0
      %v1757 = vpop.f32.mrf.mxu0
      %v1758 = vadd.f32 %v1692, %v1757
      %v1759 = vpop.f32.mrf.mxu0
      %1760 = vmatprep.mubr.bf16.mxu0 0
      %1761 = vmatmul.mubr.bf16.gmra.mxu0 %v1718
      %v1762 = vpop.f32.mrf.mxu0
      %v1763 = vadd.f32 %v1697, %v1762
      %v1764 = vpop.f32.mrf.mxu0
      %v1765 = vpop.f32.mrf.mxu0
      %v1766 = vadd.f32 %v1702, %v1765
      %v1767 = vpop.f32.mrf.mxu0
      %1768 = vdwg.mxu0
      %v1769 = vadd.f32 %v497, %v1755
      %v1770 = vadd.f32 %v498, %v1758
      %v1771 = vadd.f32 %v499, %v1763
      %v1772 = vadd.f32 %v500, %v1766
      %v1773 = vld [vmem:[%s8] sm:$0xff]
      %v1774 = vld [vmem:[%s8 + $0x8] sm:$0xff]
      %v1775 = vld [vmem:[%s8 + $0x10] sm:$0xff]
      %v1776 = vld [vmem:[%s8 + $0x18] sm:$0xff]
      %v1777 = vld [vmem:[%s9] sm:$0xff]
      %v1778 = vld [vmem:[%s9 + $0x8] sm:$0xff]
      %v1779 = vld [vmem:[%s9 + $0x10] sm:$0xff]
      %v1780 = vld [vmem:[%s9 + $0x18] sm:$0xff]
      %v1781 = vsel %vm509, %v1769, 0.0
      %v1782 = vsel %vm509, %v1770, 0.0
      %v1783 = vadd.f32 %v1781, %v1782
      %v1784 = vsel %vm509, %v1771, 0.0
      %v1785 = vadd.f32 %v1783, %v1784
      %v1786 = vsel %vm509, %v1772, 0.0
      %v1787 = vadd.f32 %v1785, %v1786
      %v1788 = vrot.slane %v1787, 4
      %v1789 = vadd.f32 %v1787, %v1788
      %v1790 = vrot.slane %v1789, 2
      %v1791 = vadd.f32 %v1789, %v1790
      %v1792 = vrot.slane %v1791, 1
      %v1793 = vadd.f32 %v1791, %v1792
      %v1794 = vmul.f32 %v1793, %v523
      %v1795 = vsub.f32 %v1769, %v1794
      %v1796 = vsub.f32 %v1770, %v1794
      %v1797 = vsub.f32 %v1771, %v1794
      %v1798 = vsub.f32 %v1772, %v1794
      %v1799 = vmul.f32 %v1795, %v1795
      %v1800 = vmul.f32 %v1796, %v1796
      %v1801 = vmul.f32 %v1797, %v1797
      %v1802 = vmul.f32 %v1798, %v1798
      %v1803 = vsel %vm509, %v1799, 0.0
      %v1804 = vsel %vm509, %v1800, 0.0
      %v1805 = vadd.f32 %v1803, %v1804
      %v1806 = vsel %vm509, %v1801, 0.0
      %v1807 = vadd.f32 %v1805, %v1806
      %v1808 = vsel %vm509, %v1802, 0.0
      %v1809 = vadd.f32 %v1807, %v1808
      %v1810 = vrot.slane %v1809, 4
      %v1811 = vadd.f32 %v1809, %v1810
      %v1812 = vrot.slane %v1811, 2
      %v1813 = vadd.f32 %v1811, %v1812
      %v1814 = vrot.slane %v1813, 1
      %v1815 = vadd.f32 %v1813, %v1814
      %v1816 = vmul.f32 %v1815, %v523
      %v1817 = vadd.f32 %v1816, 1e-05
      %v1818 = vrsqrt.pop %v1817
      %v1819 = vmul.f32 %v1795, %v1818
      %v1820 = vmul.f32 %v1796, %v1818
      %v1821 = vmul.f32 %v1797, %v1818
      %v1822 = vmul.f32 %v1798, %v1818
      %1824 = vset.pattern.permute.xlu0 0
      %1825 = vperm.xlu0 %1824, %v1773
      %v1826 = vpop.permute.xlu0 %1825
      %1829 = vset.pattern.permute.xlu0 0
      %1830 = vperm.xlu0 %1829, %v1774
      %v1831 = vpop.permute.xlu0 %1830
      %1834 = vset.pattern.permute.xlu0 0
      %1835 = vperm.xlu0 %1834, %v1775
      %v1836 = vpop.permute.xlu0 %1835
      %1839 = vset.pattern.permute.xlu0 0
      %1840 = vperm.xlu0 %1839, %v1776
      %v1841 = vpop.permute.xlu0 %1840
      %v1843 = vmul.f32 %v1819, %v1826
      %v1844 = vmul.f32 %v1820, %v1831
      %v1845 = vmul.f32 %v1821, %v1836
      %v1846 = vmul.f32 %v1822, %v1841
      %1848 = vset.pattern.permute.xlu0 0
      %1849 = vperm.xlu0 %1848, %v1777
      %v1850 = vpop.permute.xlu0 %1849
      %1853 = vset.pattern.permute.xlu0 0
      %1854 = vperm.xlu0 %1853, %v1778
      %v1855 = vpop.permute.xlu0 %1854
      %1858 = vset.pattern.permute.xlu0 0
      %1859 = vperm.xlu0 %1858, %v1779
      %v1860 = vpop.permute.xlu0 %1859
      %1863 = vset.pattern.permute.xlu0 0
      %1864 = vperm.xlu0 %1863, %v1780
      %v1865 = vpop.permute.xlu0 %1864
      %v1867 = vadd.f32 %v1843, %v1850
      %v1868 = vadd.f32 %v1844, %v1855
      %v1869 = vadd.f32 %v1845, %v1860
      %v1870 = vadd.f32 %v1846, %v1865
      %v1871 = vld [vmem:[%s10] sm:$0xf]
      %v1872 = vld [vmem:[%s10 + $0x4] sm:$0xf]
      %v1873 = vld [vmem:[%s10 + $0x8] sm:$0xf]
      %v1874 = vld [vmem:[%s10 + $0xc] sm:$0xf]
      %v1875 = vld [vmem:[%s10 + $0x10] sm:$0xf]
      %v1876 = vld [vmem:[%s10 + $0x14] sm:$0xf]
      %v1877 = vld [vmem:[%s10 + $0x18] sm:$0xf]
      %v1878 = vld [vmem:[%s10 + $0x1c] sm:$0xf]
      %v1879 = vld [vmem:[%s11] sm:$0xff]
      %v1880 = vld [vmem:[%s11 + $0x8] sm:$0xff]
      %v1881 = vld [vmem:[%s11 + $0x10] sm:$0xff]
      %v1882 = vld [vmem:[%s11 + $0x18] sm:$0xff]
      %v1883 = vld [vmem:[%s11 + $0x20] sm:$0xff]
      %v1884 = vld [vmem:[%s11 + $0x28] sm:$0xff]
      %v1885 = vld [vmem:[%s11 + $0x30] sm:$0xff]
      %v1886 = vld [vmem:[%s11 + $0x38] sm:$0xff]
      %v1887 = vpack.c.bf16 %v1868, %v1867
      %v1888 = vpack.c.bf16 %v1870, %v1869
      %1890 = vset.pattern.permute.xlu0 0
      %1891 = vperm.xlu0 %1890, %v1879
      %v1892 = vpop.permute.xlu0 %1891
      %1895 = vset.pattern.permute.xlu0 0
      %1896 = vperm.xlu0 %1895, %v1880
      %v1897 = vpop.permute.xlu0 %1896
      %1900 = vset.pattern.permute.xlu0 0
      %1901 = vperm.xlu0 %1900, %v1881
      %v1902 = vpop.permute.xlu0 %1901
      %1905 = vset.pattern.permute.xlu0 0
      %1906 = vperm.xlu0 %1905, %v1882
      %v1907 = vpop.permute.xlu0 %1906
      %1910 = vset.pattern.permute.xlu0 0
      %1911 = vperm.xlu0 %1910, %v1883
      %v1912 = vpop.permute.xlu0 %1911
      %1915 = vset.pattern.permute.xlu0 0
      %1916 = vperm.xlu0 %1915, %v1884
      %v1917 = vpop.permute.xlu0 %1916
      %1920 = vset.pattern.permute.xlu0 0
      %1921 = vperm.xlu0 %1920, %v1885
      %v1922 = vpop.permute.xlu0 %1921
      %1925 = vset.pattern.permute.xlu0 0
      %1926 = vperm.xlu0 %1925, %v1886
      %v1927 = vpop.permute.xlu0 %1926
      %v1937 = vunpack.c.l.b16 %v1871
      %v1938 = vunpack.c.l.b16 %v1872
      %v1939 = vunpack.c.l.b16 %v1873
      %v1940 = vunpack.c.l.b16 %v1874
      %v1941 = vunpack.c.l.b16 %v1875
      %v1942 = vunpack.c.l.b16 %v1876
      %v1943 = vunpack.c.l.b16 %v1877
      %v1944 = vunpack.c.l.b16 %v1878
      %v1945 = vpack.c.b16 %v1938, %v1937
      %v1946 = vpack.c.b16 %v1940, %v1939
      %v1947 = vpack.c.b16 %v1942, %v1941
      %v1948 = vpack.c.b16 %v1944, %v1943
      %v1950 = vsel %vm717, %v1945, 0
      %v1953 = vsel %vm717, %v1946, 0
      %v1956 = vsel %vm717, %v1947, 0
      %v1959 = vsel %vm717, %v1948, 0
      %1961 = vmatprep.subr.bf16.mxu0 0
      %1962 = vmatpush1.bf16.msra.mxu0 0
      %1963 = vmatprep.subr.bf16.mxu0 0
      %1964 = vmatpush1.bf16.msra.mxu0 0
      %1965 = vmatprep.subr.bf16.mxu0 0
      %1966 = vmatpush1.bf16.msra.mxu0 0
      %1967 = vmatprep.subr.bf16.mxu0 0
      %1968 = vmatpush1.bf16.msra.mxu0 0
      %1969 = vmatprep.subr.bf16.mxu0 0
      %1970 = vmatpush1.bf16.msra.mxu0 0
      %1971 = vmatprep.subr.bf16.mxu0 0
      %1972 = vmatpush1.bf16.msra.mxu0 0
      %1973 = vmatprep.subr.bf16.mxu0 0
      %1974 = vmatpush1.bf16.msra.mxu0 %v1888
      %1975 = vmatprep.subr.bf16.mxu0 0
      %1976 = vmatpush1.bf16.msra.mxu0 %v1887
      %1977 = vmatprep.subr.bf16.mxu0 0
      %1978 = vmatpush2.bf16.msra.mxu0 0
      %1979 = vmatprep.subr.bf16.mxu0 0
      %1980 = vmatpush2.bf16.msra.mxu0 0
      %1981 = vmatprep.subr.bf16.mxu0 0
      %1982 = vmatpush2.bf16.msra.mxu0 0
      %1983 = vmatprep.subr.bf16.mxu0 0
      %1984 = vmatpush2.bf16.msra.mxu0 0
      %1985 = vmatprep.subr.bf16.mxu0 0
      %1986 = vmatpush2.bf16.msra.mxu0 0
      %1987 = vmatprep.subr.bf16.mxu0 0
      %1988 = vmatpush2.bf16.msra.mxu0 0
      %1989 = vmatprep.subr.bf16.mxu0 0
      %1990 = vmatpush2.bf16.msra.mxu0 0
      %1991 = vmatprep.subr.bf16.mxu0 0
      %1992 = vmatpush2.bf16.msra.mxu0 0
      %1993 = vmatprep.mubr.bf16.mxu0 0
      %1994 = vmatmul.mubr.bf16.gmra.mxu0 %v1950
      %v1995 = vpop.f32.mrf.mxu0
      %v1996 = vadd.f32 %v1892, %v1995
      %v1997 = vpop.f32.mrf.mxu0
      %v1998 = vpop.f32.mrf.mxu0
      %v1999 = vadd.f32 %v1897, %v1998
      %v2000 = vpop.f32.mrf.mxu0
      %2001 = vmatprep.mubr.bf16.mxu0 0
      %2002 = vmatmul.mubr.bf16.gmra.mxu0 %v1953
      %v2003 = vpop.f32.mrf.mxu0
      %v2004 = vadd.f32 %v1902, %v2003
      %v2005 = vpop.f32.mrf.mxu0
      %v2006 = vpop.f32.mrf.mxu0
      %v2007 = vadd.f32 %v1907, %v2006
      %v2008 = vpop.f32.mrf.mxu0
      %2009 = vmatprep.mubr.bf16.mxu0 0
      %2010 = vmatmul.mubr.bf16.gmra.mxu0 %v1956
      %v2011 = vpop.f32.mrf.mxu0
      %v2012 = vadd.f32 %v1912, %v2011
      %v2013 = vpop.f32.mrf.mxu0
      %v2014 = vpop.f32.mrf.mxu0
      %v2015 = vadd.f32 %v1917, %v2014
      %v2016 = vpop.f32.mrf.mxu0
      %2017 = vmatprep.mubr.bf16.mxu0 0
      %2018 = vmatmul.mubr.bf16.gmra.mxu0 %v1959
      %v2019 = vpop.f32.mrf.mxu0
      %v2020 = vadd.f32 %v1922, %v2019
      %v2021 = vpop.f32.mrf.mxu0
      %v2022 = vpop.f32.mrf.mxu0
      %v2023 = vadd.f32 %v1927, %v2022
      %v2024 = vpop.f32.mrf.mxu0
      %2025 = vdwg.mxu0
      %v2026 = vmul.f32 %v1996, 0.5
      %v2027 = vmul.f32 %v1999, 0.5
      %v2028 = vmul.f32 %v2004, 0.5
      %v2029 = vmul.f32 %v2007, 0.5
      %v2030 = vmul.f32 %v2012, 0.5
      %v2031 = vmul.f32 %v2015, 0.5
      %v2032 = vmul.f32 %v2020, 0.5
      %v2033 = vmul.f32 %v2023, 0.5
      %v2034 = vmul.f32 %v1996, 0.044715
      %v2035 = vmul.f32 %v1999, 0.044715
      %v2036 = vmul.f32 %v2004, 0.044715
      %v2037 = vmul.f32 %v2007, 0.044715
      %v2038 = vmul.f32 %v2012, 0.044715
      %v2039 = vmul.f32 %v2015, 0.044715
      %v2040 = vmul.f32 %v2020, 0.044715
      %v2041 = vmul.f32 %v2023, 0.044715
      %v2042 = vmul.f32 %v2034, %v1996
      %v2043 = vmul.f32 %v2035, %v1999
      %v2044 = vmul.f32 %v2036, %v2004
      %v2045 = vmul.f32 %v2037, %v2007
      %v2046 = vmul.f32 %v2038, %v2012
      %v2047 = vmul.f32 %v2039, %v2015
      %v2048 = vmul.f32 %v2040, %v2020
      %v2049 = vmul.f32 %v2041, %v2023
      %v2050 = vmul.f32 %v2042, %v1996
      %v2051 = vmul.f32 %v2043, %v1999
      %v2052 = vmul.f32 %v2044, %v2004
      %v2053 = vmul.f32 %v2045, %v2007
      %v2054 = vmul.f32 %v2046, %v2012
      %v2055 = vmul.f32 %v2047, %v2015
      %v2056 = vmul.f32 %v2048, %v2020
      %v2057 = vmul.f32 %v2049, %v2023
      %v2058 = vadd.f32 %v1996, %v2050
      %v2059 = vadd.f32 %v1999, %v2051
      %v2060 = vadd.f32 %v2004, %v2052
      %v2061 = vadd.f32 %v2007, %v2053
      %v2062 = vadd.f32 %v2012, %v2054
      %v2063 = vadd.f32 %v2015, %v2055
      %v2064 = vadd.f32 %v2020, %v2056
      %v2065 = vadd.f32 %v2023, %v2057
      %v2066 = vmul.f32 %v2058, 0.7978846
      %v2067 = vmul.f32 %v2059, 0.7978846
      %v2068 = vmul.f32 %v2060, 0.7978846
      %v2069 = vmul.f32 %v2061, 0.7978846
      %v2070 = vmul.f32 %v2062, 0.7978846
      %v2071 = vmul.f32 %v2063, 0.7978846
      %v2072 = vmul.f32 %v2064, 0.7978846
      %v2073 = vmul.f32 %v2065, 0.7978846
      %v2074 = vtanh.pop %v2066
      %v2075 = vtanh.pop %v2067
      %v2076 = vtanh.pop %v2068
      %v2077 = vtanh.pop %v2069
      %v2078 = vtanh.pop %v2070
      %v2079 = vtanh.pop %v2071
      %v2080 = vtanh.pop %v2072
      %v2081 = vtanh.pop %v2073
      %v2082 = vadd.f32 %v2074, 1.0
      %v2083 = vadd.f32 %v2075, 1.0
      %v2084 = vadd.f32 %v2076, 1.0
      %v2085 = vadd.f32 %v2077, 1.0
      %v2086 = vadd.f32 %v2078, 1.0
      %v2087 = vadd.f32 %v2079, 1.0
      %v2088 = vadd.f32 %v2080, 1.0
      %v2089 = vadd.f32 %v2081, 1.0
      %v2090 = vmul.f32 %v2026, %v2082
      %v2091 = vmul.f32 %v2027, %v2083
      %v2092 = vmul.f32 %v2028, %v2084
      %v2093 = vmul.f32 %v2029, %v2085
      %v2094 = vmul.f32 %v2030, %v2086
      %v2095 = vmul.f32 %v2031, %v2087
      %v2096 = vmul.f32 %v2032, %v2088
      %v2097 = vmul.f32 %v2033, %v2089
      %v2098 = vld [vmem:[%s12] sm:$0xf]
      %v2099 = vld [vmem:[%s12 + $0x4] sm:$0xf]
      %v2100 = vld [vmem:[%s12 + $0x8] sm:$0xf]
      %v2101 = vld [vmem:[%s12 + $0xc] sm:$0xf]
      %v2102 = vld [vmem:[%s13] sm:$0xff]
      %v2103 = vld [vmem:[%s13 + $0x8] sm:$0xff]
      %v2104 = vld [vmem:[%s13 + $0x10] sm:$0xff]
      %v2105 = vld [vmem:[%s13 + $0x18] sm:$0xff]
      %v2106 = vpack.c.bf16 %v2091, %v2090
      %v2107 = vpack.c.bf16 %v2093, %v2092
      %v2108 = vpack.c.bf16 %v2095, %v2094
      %v2109 = vpack.c.bf16 %v2097, %v2096
      %2111 = vset.pattern.permute.xlu0 0
      %2112 = vperm.xlu0 %2111, %v2102
      %v2113 = vpop.permute.xlu0 %2112
      %2116 = vset.pattern.permute.xlu0 0
      %2117 = vperm.xlu0 %2116, %v2103
      %v2118 = vpop.permute.xlu0 %2117
      %2121 = vset.pattern.permute.xlu0 0
      %2122 = vperm.xlu0 %2121, %v2104
      %v2123 = vpop.permute.xlu0 %2122
      %2126 = vset.pattern.permute.xlu0 0
      %2127 = vperm.xlu0 %2126, %v2105
      %v2128 = vpop.permute.xlu0 %2127
      %v2134 = vunpack.c.l.b16 %v2098
      %v2135 = vunpack.c.l.b16 %v2099
      %v2136 = vunpack.c.l.b16 %v2100
      %v2137 = vunpack.c.l.b16 %v2101
      %v2138 = vpack.c.b16 %v2135, %v2134
      %v2139 = vpack.c.b16 %v2137, %v2136
      %vm2140 = vcmask 523264
      %v2142 = vsel %vm2140, %v2138, 0
      %v2145 = vsel %vm2140, %v2139, 0
      %2147 = vmatprep.subr.bf16.mxu0 0
      %2148 = vmatpush1.bf16.msra.mxu0 0
      %2149 = vmatprep.subr.bf16.mxu0 0
      %2150 = vmatpush1.bf16.msra.mxu0 0
      %2151 = vmatprep.subr.bf16.mxu0 0
      %2152 = vmatpush1.bf16.msra.mxu0 0
      %2153 = vmatprep.subr.bf16.mxu0 0
      %2154 = vmatpush1.bf16.msra.mxu0 0
      %2155 = vmatprep.subr.bf16.mxu0 0
      %2156 = vmatpush1.bf16.msra.mxu0 %v2109
      %2157 = vmatprep.subr.bf16.mxu0 0
      %2158 = vmatpush1.bf16.msra.mxu0 %v2108
      %2159 = vmatprep.subr.bf16.mxu0 0
      %2160 = vmatpush1.bf16.msra.mxu0 %v2107
      %2161 = vmatprep.subr.bf16.mxu0 0
      %2162 = vmatpush1.bf16.msra.mxu0 %v2106
      %2163 = vmatprep.subr.bf16.mxu0 0
      %2164 = vmatpush2.bf16.msra.mxu0 0
      %2165 = vmatprep.subr.bf16.mxu0 0
      %2166 = vmatpush2.bf16.msra.mxu0 0
      %2167 = vmatprep.subr.bf16.mxu0 0
      %2168 = vmatpush2.bf16.msra.mxu0 0
      %2169 = vmatprep.subr.bf16.mxu0 0
      %2170 = vmatpush2.bf16.msra.mxu0 0
      %2171 = vmatprep.subr.bf16.mxu0 0
      %2172 = vmatpush2.bf16.msra.mxu0 0
      %2173 = vmatprep.subr.bf16.mxu0 0
      %2174 = vmatpush2.bf16.msra.mxu0 0
      %2175 = vmatprep.subr.bf16.mxu0 0
      %2176 = vmatpush2.bf16.msra.mxu0 0
      %2177 = vmatprep.subr.bf16.mxu0 0
      %2178 = vmatpush2.bf16.msra.mxu0 0
      %2179 = vmatprep.mubr.bf16.mxu0 0
      %2180 = vmatmul.mubr.bf16.gmra.mxu0 %v2142
      %v2181 = vpop.f32.mrf.mxu0
      %v2182 = vadd.f32 %v2113, %v2181
      %v2183 = vpop.f32.mrf.mxu0
      %v2184 = vpop.f32.mrf.mxu0
      %v2185 = vadd.f32 %v2118, %v2184
      %v2186 = vpop.f32.mrf.mxu0
      %2187 = vmatprep.mubr.bf16.mxu0 0
      %2188 = vmatmul.mubr.bf16.gmra.mxu0 %v2145
      %v2189 = vpop.f32.mrf.mxu0
      %v2190 = vadd.f32 %v2123, %v2189
      %v2191 = vpop.f32.mrf.mxu0
      %v2192 = vpop.f32.mrf.mxu0
      %v2193 = vadd.f32 %v2128, %v2192
      %v2194 = vpop.f32.mrf.mxu0
      %2195 = vdwg.mxu0
      %v2196 = vadd.f32 %v1769, %v2182
      %v2197 = vadd.f32 %v1770, %v2185
      %v2198 = vadd.f32 %v1771, %v2190
      %v2199 = vadd.f32 %v1772, %v2193
      %s2200 = scalar_lea.vmem %s2, 32
      %v2201 = vld [vmem:[%s2200] sm:$0xff]
      %v2202 = vld [vmem:[%s2200 + $0x8] sm:$0xff]
      %v2203 = vld [vmem:[%s2200 + $0x10] sm:$0xff]
      %v2204 = vld [vmem:[%s2200 + $0x18] sm:$0xff]
      %s2205 = scalar_lea.vmem %s3, 32
      %v2206 = vld [vmem:[%s2205] sm:$0xff]
      %v2207 = vld [vmem:[%s2205 + $0x8] sm:$0xff]
      %v2208 = vld [vmem:[%s2205 + $0x10] sm:$0xff]
      %v2209 = vld [vmem:[%s2205 + $0x18] sm:$0xff]
      %v2210 = vsel %vm509, %v2196, 0.0
      %v2211 = vsel %vm509, %v2197, 0.0
      %v2212 = vadd.f32 %v2210, %v2211
      %v2213 = vsel %vm509, %v2198, 0.0
      %v2214 = vadd.f32 %v2212, %v2213
      %v2215 = vsel %vm509, %v2199, 0.0
      %v2216 = vadd.f32 %v2214, %v2215
      %v2217 = vrot.slane %v2216, 4
      %v2218 = vadd.f32 %v2216, %v2217
      %v2219 = vrot.slane %v2218, 2
      %v2220 = vadd.f32 %v2218, %v2219
      %v2221 = vrot.slane %v2220, 1
      %v2222 = vadd.f32 %v2220, %v2221
      %v2223 = vmul.f32 %v2222, %v523
      %v2224 = vsub.f32 %v2196, %v2223
      %v2225 = vsub.f32 %v2197, %v2223
      %v2226 = vsub.f32 %v2198, %v2223
      %v2227 = vsub.f32 %v2199, %v2223
      %v2228 = vmul.f32 %v2224, %v2224
      %v2229 = vmul.f32 %v2225, %v2225
      %v2230 = vmul.f32 %v2226, %v2226
      %v2231 = vmul.f32 %v2227, %v2227
      %v2232 = vsel %vm509, %v2228, 0.0
      %v2233 = vsel %vm509, %v2229, 0.0
      %v2234 = vadd.f32 %v2232, %v2233
      %v2235 = vsel %vm509, %v2230, 0.0
      %v2236 = vadd.f32 %v2234, %v2235
      %v2237 = vsel %vm509, %v2231, 0.0
      %v2238 = vadd.f32 %v2236, %v2237
      %v2239 = vrot.slane %v2238, 4
      %v2240 = vadd.f32 %v2238, %v2239
      %v2241 = vrot.slane %v2240, 2
      %v2242 = vadd.f32 %v2240, %v2241
      %v2243 = vrot.slane %v2242, 1
      %v2244 = vadd.f32 %v2242, %v2243
      %v2245 = vmul.f32 %v2244, %v523
      %v2246 = vadd.f32 %v2245, 1e-05
      %v2247 = vrsqrt.pop %v2246
      %v2248 = vmul.f32 %v2224, %v2247
      %v2249 = vmul.f32 %v2225, %v2247
      %v2250 = vmul.f32 %v2226, %v2247
      %v2251 = vmul.f32 %v2227, %v2247
      %2253 = vset.pattern.permute.xlu0 0
      %2254 = vperm.xlu0 %2253, %v2201
      %v2255 = vpop.permute.xlu0 %2254
      %2258 = vset.pattern.permute.xlu0 0
      %2259 = vperm.xlu0 %2258, %v2202
      %v2260 = vpop.permute.xlu0 %2259
      %2263 = vset.pattern.permute.xlu0 0
      %2264 = vperm.xlu0 %2263, %v2203
      %v2265 = vpop.permute.xlu0 %2264
      %2268 = vset.pattern.permute.xlu0 0
      %2269 = vperm.xlu0 %2268, %v2204
      %v2270 = vpop.permute.xlu0 %2269
      %v2272 = vmul.f32 %v2248, %v2255
      %v2273 = vmul.f32 %v2249, %v2260
      %v2274 = vmul.f32 %v2250, %v2265
      %v2275 = vmul.f32 %v2251, %v2270
      %2277 = vset.pattern.permute.xlu0 0
      %2278 = vperm.xlu0 %2277, %v2206
      %v2279 = vpop.permute.xlu0 %2278
      %2282 = vset.pattern.permute.xlu0 0
      %2283 = vperm.xlu0 %2282, %v2207
      %v2284 = vpop.permute.xlu0 %2283
      %2287 = vset.pattern.permute.xlu0 0
      %2288 = vperm.xlu0 %2287, %v2208
      %v2289 = vpop.permute.xlu0 %2288
      %2292 = vset.pattern.permute.xlu0 0
      %2293 = vperm.xlu0 %2292, %v2209
      %v2294 = vpop.permute.xlu0 %2293
      %v2296 = vadd.f32 %v2272, %v2279
      %v2297 = vadd.f32 %v2273, %v2284
      %v2298 = vadd.f32 %v2274, %v2289
      %v2299 = vadd.f32 %v2275, %v2294
      %s2300 = scalar_lea.vmem %s4, 48
      %v2301 = vld [vmem:[%s2300] sm:$0xf]
      %v2302 = vld [vmem:[%s2300 + $0x4] sm:$0xf]
      %v2303 = vld [vmem:[%s2300 + $0x8] sm:$0xf]
      %v2304 = vld [vmem:[%s2300 + $0xc] sm:$0xf]
      %v2305 = vld [vmem:[%s2300 + $0x10] sm:$0xf]
      %v2306 = vld [vmem:[%s2300 + $0x14] sm:$0xf]
      %v2307 = vld [vmem:[%s2300 + $0x18] sm:$0xf]
      %v2308 = vld [vmem:[%s2300 + $0x1c] sm:$0xf]
      %v2309 = vld [vmem:[%s2300 + $0x20] sm:$0xf]
      %v2310 = vld [vmem:[%s2300 + $0x24] sm:$0xf]
      %v2311 = vld [vmem:[%s2300 + $0x28] sm:$0xf]
      %v2312 = vld [vmem:[%s2300 + $0x2c] sm:$0xf]
      %s2313 = scalar_lea.vmem %s5, 96
      %v2314 = vld [vmem:[%s2313] sm:$0xff]
      %v2315 = vld [vmem:[%s2313 + $0x8] sm:$0xff]
      %v2316 = vld [vmem:[%s2313 + $0x10] sm:$0xff]
      %v2317 = vld [vmem:[%s2313 + $0x18] sm:$0xff]
      %v2318 = vld [vmem:[%s2313 + $0x20] sm:$0xff]
      %v2319 = vld [vmem:[%s2313 + $0x28] sm:$0xff]
      %v2320 = vld [vmem:[%s2313 + $0x30] sm:$0xff]
      %v2321 = vld [vmem:[%s2313 + $0x38] sm:$0xff]
      %v2322 = vld [vmem:[%s2313 + $0x40] sm:$0xff]
      %v2323 = vld [vmem:[%s2313 + $0x48] sm:$0xff]
      %v2324 = vld [vmem:[%s2313 + $0x50] sm:$0xff]
      %v2325 = vld [vmem:[%s2313 + $0x58] sm:$0xff]
      %v2326 = vpack.c.bf16 %v2297, %v2296
      %v2327 = vpack.c.bf16 %v2299, %v2298
      %2329 = vset.pattern.permute.xlu0 0
      %2330 = vperm.xlu0 %2329, %v2314
      %v2331 = vpop.permute.xlu0 %2330
      %2334 = vset.pattern.permute.xlu0 0
      %2335 = vperm.xlu0 %2334, %v2315
      %v2336 = vpop.permute.xlu0 %2335
      %2339 = vset.pattern.permute.xlu0 0
      %2340 = vperm.xlu0 %2339, %v2316
      %v2341 = vpop.permute.xlu0 %2340
      %2344 = vset.pattern.permute.xlu0 0
      %2345 = vperm.xlu0 %2344, %v2317
      %v2346 = vpop.permute.xlu0 %2345
      %2349 = vset.pattern.permute.xlu0 0
      %2350 = vperm.xlu0 %2349, %v2318
      %v2351 = vpop.permute.xlu0 %2350
      %2354 = vset.pattern.permute.xlu0 0
      %2355 = vperm.xlu0 %2354, %v2319
      %v2356 = vpop.permute.xlu0 %2355
      %2359 = vset.pattern.permute.xlu0 0
      %2360 = vperm.xlu0 %2359, %v2320
      %v2361 = vpop.permute.xlu0 %2360
      %2364 = vset.pattern.permute.xlu0 0
      %2365 = vperm.xlu0 %2364, %v2321
      %v2366 = vpop.permute.xlu0 %2365
      %2369 = vset.pattern.permute.xlu0 0
      %2370 = vperm.xlu0 %2369, %v2322
      %v2371 = vpop.permute.xlu0 %2370
      %2374 = vset.pattern.permute.xlu0 0
      %2375 = vperm.xlu0 %2374, %v2323
      %v2376 = vpop.permute.xlu0 %2375
      %2379 = vset.pattern.permute.xlu0 0
      %2380 = vperm.xlu0 %2379, %v2324
      %v2381 = vpop.permute.xlu0 %2380
      %2384 = vset.pattern.permute.xlu0 0
      %2385 = vperm.xlu0 %2384, %v2325
      %v2386 = vpop.permute.xlu0 %2385
      %v2400 = vunpack.c.l.b16 %v2301
      %v2401 = vunpack.c.l.b16 %v2302
      %v2402 = vunpack.c.l.b16 %v2303
      %v2403 = vunpack.c.l.b16 %v2304
      %v2404 = vunpack.c.l.b16 %v2305
      %v2405 = vunpack.c.l.b16 %v2306
      %v2406 = vunpack.c.l.b16 %v2307
      %v2407 = vunpack.c.l.b16 %v2308
      %v2408 = vunpack.c.l.b16 %v2309
      %v2409 = vunpack.c.l.b16 %v2310
      %v2410 = vunpack.c.l.b16 %v2311
      %v2411 = vunpack.c.l.b16 %v2312
      %v2412 = vpack.c.b16 %v2401, %v2400
      %v2413 = vpack.c.b16 %v2403, %v2402
      %v2414 = vpack.c.b16 %v2405, %v2404
      %v2415 = vpack.c.b16 %v2407, %v2406
      %v2416 = vpack.c.b16 %v2409, %v2408
      %v2417 = vpack.c.b16 %v2411, %v2410
      %v2419 = vsel %vm717, %v2412, 0
      %v2422 = vsel %vm717, %v2413, 0
      %v2425 = vsel %vm717, %v2414, 0
      %v2428 = vsel %vm717, %v2415, 0
      %v2431 = vsel %vm717, %v2416, 0
      %v2434 = vsel %vm717, %v2417, 0
      %2436 = vmatprep.subr.bf16.mxu0 0
      %2437 = vmatpush1.bf16.msra.mxu0 0
      %2438 = vmatprep.subr.bf16.mxu0 0
      %2439 = vmatpush1.bf16.msra.mxu0 0
      %2440 = vmatprep.subr.bf16.mxu0 0
      %2441 = vmatpush1.bf16.msra.mxu0 0
      %2442 = vmatprep.subr.bf16.mxu0 0
      %2443 = vmatpush1.bf16.msra.mxu0 0
      %2444 = vmatprep.subr.bf16.mxu0 0
      %2445 = vmatpush1.bf16.msra.mxu0 0
      %2446 = vmatprep.subr.bf16.mxu0 0
      %2447 = vmatpush1.bf16.msra.mxu0 0
      %2448 = vmatprep.subr.bf16.mxu0 0
      %2449 = vmatpush1.bf16.msra.mxu0 %v2327
      %2450 = vmatprep.subr.bf16.mxu0 0
      %2451 = vmatpush1.bf16.msra.mxu0 %v2326
      %2452 = vmatprep.subr.bf16.mxu0 0
      %2453 = vmatpush2.bf16.msra.mxu0 0
      %2454 = vmatprep.subr.bf16.mxu0 0
      %2455 = vmatpush2.bf16.msra.mxu0 0
      %2456 = vmatprep.subr.bf16.mxu0 0
      %2457 = vmatpush2.bf16.msra.mxu0 0
      %2458 = vmatprep.subr.bf16.mxu0 0
      %2459 = vmatpush2.bf16.msra.mxu0 0
      %2460 = vmatprep.subr.bf16.mxu0 0
      %2461 = vmatpush2.bf16.msra.mxu0 0
      %2462 = vmatprep.subr.bf16.mxu0 0
      %2463 = vmatpush2.bf16.msra.mxu0 0
      %2464 = vmatprep.subr.bf16.mxu0 0
      %2465 = vmatpush2.bf16.msra.mxu0 0
      %2466 = vmatprep.subr.bf16.mxu0 0
      %2467 = vmatpush2.bf16.msra.mxu0 0
      %2468 = vmatprep.mubr.bf16.mxu0 0
      %2469 = vmatmul.mubr.bf16.gmra.mxu0 %v2419
      %v2470 = vpop.f32.mrf.mxu0
      %v2471 = vadd.f32 %v2331, %v2470
      %v2472 = vpop.f32.mrf.mxu0
      %v2473 = vpop.f32.mrf.mxu0
      %v2474 = vadd.f32 %v2336, %v2473
      %v2475 = vpop.f32.mrf.mxu0
      %2476 = vmatprep.mubr.bf16.mxu0 0
      %2477 = vmatmul.mubr.bf16.gmra.mxu0 %v2422
      %v2478 = vpop.f32.mrf.mxu0
      %v2479 = vadd.f32 %v2341, %v2478
      %v2480 = vpop.f32.mrf.mxu0
      %v2481 = vpop.f32.mrf.mxu0
      %v2482 = vadd.f32 %v2346, %v2481
      %v2483 = vpop.f32.mrf.mxu0
      %2484 = vmatprep.mubr.bf16.mxu0 0
      %2485 = vmatmul.mubr.bf16.gmra.mxu0 %v2425
      %v2486 = vpop.f32.mrf.mxu0
      %v2487 = vadd.f32 %v2351, %v2486
      %v2488 = vpop.f32.mrf.mxu0
      %v2489 = vpop.f32.mrf.mxu0
      %v2490 = vadd.f32 %v2356, %v2489
      %v2491 = vpop.f32.mrf.mxu0
      %2492 = vmatprep.mubr.bf16.mxu0 0
      %2493 = vmatmul.mubr.bf16.gmra.mxu0 %v2428
      %v2494 = vpop.f32.mrf.mxu0
      %v2495 = vadd.f32 %v2361, %v2494
      %v2496 = vpop.f32.mrf.mxu0
      %v2497 = vpop.f32.mrf.mxu0
      %v2498 = vadd.f32 %v2366, %v2497
      %v2499 = vpop.f32.mrf.mxu0
      %2500 = vmatprep.mubr.bf16.mxu0 0
      %2501 = vmatmul.mubr.bf16.gmra.mxu0 %v2431
      %v2502 = vpop.f32.mrf.mxu0
      %v2503 = vadd.f32 %v2371, %v2502
      %v2504 = vpop.f32.mrf.mxu0
      %v2505 = vpop.f32.mrf.mxu0
      %v2506 = vadd.f32 %v2376, %v2505
      %v2507 = vpop.f32.mrf.mxu0
      %2508 = vmatprep.mubr.bf16.mxu0 0
      %2509 = vmatmul.mubr.bf16.gmra.mxu0 %v2434
      %v2510 = vpop.f32.mrf.mxu0
      %v2511 = vadd.f32 %v2381, %v2510
      %v2512 = vpop.f32.mrf.mxu0
      %v2513 = vpop.f32.mrf.mxu0
      %v2514 = vadd.f32 %v2386, %v2513
      %v2515 = vpop.f32.mrf.mxu0
      %2516 = vdwg.mxu0
      %2517 = vxpose.xlu0.b32.start [1/16] %v2471, 128
      %2518 = vxpose.xlu0.b32.cont [2/16] 0.0, 128
      %2519 = vxpose.xlu0.b32.cont [3/16] 0.0, 128
      %2520 = vxpose.xlu0.b32.cont [4/16] 0.0, 128
      %2521 = vxpose.xlu0.b32.cont [5/16] 0.0, 128
      %2522 = vxpose.xlu0.b32.cont [6/16] 0.0, 128
      %2523 = vxpose.xlu0.b32.cont [7/16] 0.0, 128
      %2524 = vxpose.xlu0.b32.cont [8/16] 0.0, 128
      %2525 = vxpose.xlu0.b32.cont [9/16] 0.0, 128
      %2526 = vxpose.xlu0.b32.cont [10/16] 0.0, 128
      %2527 = vxpose.xlu0.b32.cont [11/16] 0.0, 128
      %2528 = vxpose.xlu0.b32.cont [12/16] 0.0, 128
      %2529 = vxpose.xlu0.b32.cont [13/16] 0.0, 128
      %2530 = vxpose.xlu0.b32.cont [14/16] 0.0, 128
      %2531 = vxpose.xlu0.b32.cont [15/16] 0.0, 128
      %2532 = vxpose.xlu0.b32.end [16/16] 0.0, 128
      %v2533 = vpop.trf.xlu0
      %v2534 = vpop.trf.xlu0
      %v2535 = vpop.trf.xlu0
      %v2536 = vpop.trf.xlu0
      %v2537 = vpop.trf.xlu0
      %v2538 = vpop.trf.xlu0
      %v2539 = vpop.trf.xlu0
      %v2540 = vpop.trf.xlu0
      %v2541 = vpop.trf.xlu0
      %v2542 = vpop.trf.xlu0
      %v2543 = vpop.trf.xlu0
      %v2544 = vpop.trf.xlu0
      %v2545 = vpop.trf.xlu0
      %v2546 = vpop.trf.xlu0
      %v2547 = vpop.trf.xlu0
      %v2548 = vpop.trf.xlu0
      %v2550 = vsel %vm849, %v2533, 0
      %v2553 = vsel %vm849, %v2534, 0
      %2555 = vmatprep.subr.mxu0 0.0
      %2556 = vmatpush1.msra.mxu0 0.0
      %2557 = vmatprep.subr.mxu0 0.0
      %2558 = vmatpush1.msra.mxu0 0.0
      %2559 = vmatprep.subr.mxu0 0.0
      %2560 = vmatpush1.msra.mxu0 0.0
      %2561 = vmatprep.subr.mxu0 0.0
      %2562 = vmatpush1.msra.mxu0 0.0
      %2563 = vmatprep.subr.mxu0 0.0
      %2564 = vmatpush1.msra.mxu0 0.0
      %2565 = vmatprep.subr.mxu0 0.0
      %2566 = vmatpush1.msra.mxu0 0.0
      %2567 = vmatprep.subr.mxu0 0.0
      %2568 = vmatpush1.msra.mxu0 0.0
      %2569 = vmatprep.subr.mxu0 0.0
      %2570 = vmatpush1.msra.mxu0 0.0
      %2571 = vmatprep.subr.mxu0 0.0
      %2572 = vmatpush1.msra.mxu0 0.0
      %2573 = vmatprep.subr.mxu0 0.0
      %2574 = vmatpush1.msra.mxu0 0.0
      %2575 = vmatprep.subr.mxu0 0.0
      %2576 = vmatpush1.msra.mxu0 0.0
      %2577 = vmatprep.subr.mxu0 0.0
      %2578 = vmatpush1.msra.mxu0 0.0
      %2579 = vmatprep.subr.mxu0 0.0
      %2580 = vmatpush1.msra.mxu0 0.0
      %2581 = vmatprep.subr.mxu0 0.0
      %2582 = vmatpush1.msra.mxu0 0.0
      %2583 = vmatprep.subr.mxu0 0.0
      %2584 = vmatpush1.msra.mxu0 0.0
      %2585 = vmatprep.subr.mxu0 0.0
      %2586 = vmatpush1.msra.mxu0 %v2487
      %2587 = vmatprep.subr.mxu0 0.0
      %2588 = vmatpush2.msra.mxu0 0.0
      %2589 = vmatprep.subr.mxu0 0.0
      %2590 = vmatpush2.msra.mxu0 0.0
      %2591 = vmatprep.subr.mxu0 0.0
      %2592 = vmatpush2.msra.mxu0 0.0
      %2593 = vmatprep.subr.mxu0 0.0
      %2594 = vmatpush2.msra.mxu0 0.0
      %2595 = vmatprep.subr.mxu0 0.0
      %2596 = vmatpush2.msra.mxu0 0.0
      %2597 = vmatprep.subr.mxu0 0.0
      %2598 = vmatpush2.msra.mxu0 0.0
      %2599 = vmatprep.subr.mxu0 0.0
      %2600 = vmatpush2.msra.mxu0 0.0
      %2601 = vmatprep.subr.mxu0 0.0
      %2602 = vmatpush2.msra.mxu0 0.0
      %2603 = vmatprep.subr.mxu0 0.0
      %2604 = vmatpush2.msra.mxu0 0.0
      %2605 = vmatprep.subr.mxu0 0.0
      %2606 = vmatpush2.msra.mxu0 0.0
      %2607 = vmatprep.subr.mxu0 0.0
      %2608 = vmatpush2.msra.mxu0 0.0
      %2609 = vmatprep.subr.mxu0 0.0
      %2610 = vmatpush2.msra.mxu0 0.0
      %2611 = vmatprep.subr.mxu0 0.0
      %2612 = vmatpush2.msra.mxu0 0.0
      %2613 = vmatprep.subr.mxu0 0.0
      %2614 = vmatpush2.msra.mxu0 0.0
      %2615 = vmatprep.subr.mxu0 0.0
      %2616 = vmatpush2.msra.mxu0 0.0
      %2617 = vmatprep.subr.mxu0 0.0
      %2618 = vmatpush2.msra.mxu0 0.0
      %2619 = vmatprep.mubr.f32.mxu0 0.0
      %2620 = vmatmul.mubr.f32.gmra.mxu0 %v2550
      %v2621 = vpop.f32.mrf.mxu0
      %v2622 = vadd.f32 0.0, %v2621
      %v2623 = vpop.f32.mrf.mxu0
      %2624 = vmatprep.mubr.f32.mxu0 0.0
      %2625 = vmatmul.mubr.f32.gmra.mxu0 %v2553
      %v2626 = vpop.f32.mrf.mxu0
      %v2627 = vadd.f32 0.0, %v2626
      %v2628 = vpop.f32.mrf.mxu0
      %2629 = vdwg.mxu0
      %2630 = vxpose.xlu0.b32.start [1/16] %v2474, 128
      %2631 = vxpose.xlu0.b32.cont [2/16] 0.0, 128
      %2632 = vxpose.xlu0.b32.cont [3/16] 0.0, 128
      %2633 = vxpose.xlu0.b32.cont [4/16] 0.0, 128
      %2634 = vxpose.xlu0.b32.cont [5/16] 0.0, 128
      %2635 = vxpose.xlu0.b32.cont [6/16] 0.0, 128
      %2636 = vxpose.xlu0.b32.cont [7/16] 0.0, 128
      %2637 = vxpose.xlu0.b32.cont [8/16] 0.0, 128
      %2638 = vxpose.xlu0.b32.cont [9/16] 0.0, 128
      %2639 = vxpose.xlu0.b32.cont [10/16] 0.0, 128
      %2640 = vxpose.xlu0.b32.cont [11/16] 0.0, 128
      %2641 = vxpose.xlu0.b32.cont [12/16] 0.0, 128
      %2642 = vxpose.xlu0.b32.cont [13/16] 0.0, 128
      %2643 = vxpose.xlu0.b32.cont [14/16] 0.0, 128
      %2644 = vxpose.xlu0.b32.cont [15/16] 0.0, 128
      %2645 = vxpose.xlu0.b32.end [16/16] 0.0, 128
      %v2646 = vpop.trf.xlu0
      %v2647 = vpop.trf.xlu0
      %v2648 = vpop.trf.xlu0
      %v2649 = vpop.trf.xlu0
      %v2650 = vpop.trf.xlu0
      %v2651 = vpop.trf.xlu0
      %v2652 = vpop.trf.xlu0
      %v2653 = vpop.trf.xlu0
      %v2654 = vpop.trf.xlu0
      %v2655 = vpop.trf.xlu0
      %v2656 = vpop.trf.xlu0
      %v2657 = vpop.trf.xlu0
      %v2658 = vpop.trf.xlu0
      %v2659 = vpop.trf.xlu0
      %v2660 = vpop.trf.xlu0
      %v2661 = vpop.trf.xlu0
      %v2663 = vsel %vm849, %v2646, 0
      %v2666 = vsel %vm849, %v2647, 0
      %2668 = vmatprep.subr.mxu0 0.0
      %2669 = vmatpush1.msra.mxu0 0.0
      %2670 = vmatprep.subr.mxu0 0.0
      %2671 = vmatpush1.msra.mxu0 0.0
      %2672 = vmatprep.subr.mxu0 0.0
      %2673 = vmatpush1.msra.mxu0 0.0
      %2674 = vmatprep.subr.mxu0 0.0
      %2675 = vmatpush1.msra.mxu0 0.0
      %2676 = vmatprep.subr.mxu0 0.0
      %2677 = vmatpush1.msra.mxu0 0.0
      %2678 = vmatprep.subr.mxu0 0.0
      %2679 = vmatpush1.msra.mxu0 0.0
      %2680 = vmatprep.subr.mxu0 0.0
      %2681 = vmatpush1.msra.mxu0 0.0
      %2682 = vmatprep.subr.mxu0 0.0
      %2683 = vmatpush1.msra.mxu0 0.0
      %2684 = vmatprep.subr.mxu0 0.0
      %2685 = vmatpush1.msra.mxu0 0.0
      %2686 = vmatprep.subr.mxu0 0.0
      %2687 = vmatpush1.msra.mxu0 0.0
      %2688 = vmatprep.subr.mxu0 0.0
      %2689 = vmatpush1.msra.mxu0 0.0
      %2690 = vmatprep.subr.mxu0 0.0
      %2691 = vmatpush1.msra.mxu0 0.0
      %2692 = vmatprep.subr.mxu0 0.0
      %2693 = vmatpush1.msra.mxu0 0.0
      %2694 = vmatprep.subr.mxu0 0.0
      %2695 = vmatpush1.msra.mxu0 0.0
      %2696 = vmatprep.subr.mxu0 0.0
      %2697 = vmatpush1.msra.mxu0 0.0
      %2698 = vmatprep.subr.mxu0 0.0
      %2699 = vmatpush1.msra.mxu0 %v2490
      %2700 = vmatprep.subr.mxu0 0.0
      %2701 = vmatpush2.msra.mxu0 0.0
      %2702 = vmatprep.subr.mxu0 0.0
      %2703 = vmatpush2.msra.mxu0 0.0
      %2704 = vmatprep.subr.mxu0 0.0
      %2705 = vmatpush2.msra.mxu0 0.0
      %2706 = vmatprep.subr.mxu0 0.0
      %2707 = vmatpush2.msra.mxu0 0.0
      %2708 = vmatprep.subr.mxu0 0.0
      %2709 = vmatpush2.msra.mxu0 0.0
      %2710 = vmatprep.subr.mxu0 0.0
      %2711 = vmatpush2.msra.mxu0 0.0
      %2712 = vmatprep.subr.mxu0 0.0
      %2713 = vmatpush2.msra.mxu0 0.0
      %2714 = vmatprep.subr.mxu0 0.0
      %2715 = vmatpush2.msra.mxu0 0.0
      %2716 = vmatprep.subr.mxu0 0.0
      %2717 = vmatpush2.msra.mxu0 0.0
      %2718 = vmatprep.subr.mxu0 0.0
      %2719 = vmatpush2.msra.mxu0 0.0
      %2720 = vmatprep.subr.mxu0 0.0
      %2721 = vmatpush2.msra.mxu0 0.0
      %2722 = vmatprep.subr.mxu0 0.0
      %2723 = vmatpush2.msra.mxu0 0.0
      %2724 = vmatprep.subr.mxu0 0.0
      %2725 = vmatpush2.msra.mxu0 0.0
      %2726 = vmatprep.subr.mxu0 0.0
      %2727 = vmatpush2.msra.mxu0 0.0
      %2728 = vmatprep.subr.mxu0 0.0
      %2729 = vmatpush2.msra.mxu0 0.0
      %2730 = vmatprep.subr.mxu0 0.0
      %2731 = vmatpush2.msra.mxu0 0.0
      %2732 = vmatprep.mubr.f32.mxu0 0.0
      %2733 = vmatmul.mubr.f32.gmra.mxu0 %v2663
      %v2734 = vpop.f32.mrf.mxu0
      %v2735 = vadd.f32 0.0, %v2734
      %v2736 = vpop.f32.mrf.mxu0
      %2737 = vmatprep.mubr.f32.mxu0 0.0
      %2738 = vmatmul.mubr.f32.gmra.mxu0 %v2666
      %v2739 = vpop.f32.mrf.mxu0
      %v2740 = vadd.f32 0.0, %v2739
      %v2741 = vpop.f32.mrf.mxu0
      %2742 = vdwg.mxu0
      %2743 = vxpose.xlu0.b32.start [1/16] %v2479, 128
      %2744 = vxpose.xlu0.b32.cont [2/16] 0.0, 128
      %2745 = vxpose.xlu0.b32.cont [3/16] 0.0, 128
      %2746 = vxpose.xlu0.b32.cont [4/16] 0.0, 128
      %2747 = vxpose.xlu0.b32.cont [5/16] 0.0, 128
      %2748 = vxpose.xlu0.b32.cont [6/16] 0.0, 128
      %2749 = vxpose.xlu0.b32.cont [7/16] 0.0, 128
      %2750 = vxpose.xlu0.b32.cont [8/16] 0.0, 128
      %2751 = vxpose.xlu0.b32.cont [9/16] 0.0, 128
      %2752 = vxpose.xlu0.b32.cont [10/16] 0.0, 128
      %2753 = vxpose.xlu0.b32.cont [11/16] 0.0, 128
      %2754 = vxpose.xlu0.b32.cont [12/16] 0.0, 128
      %2755 = vxpose.xlu0.b32.cont [13/16] 0.0, 128
      %2756 = vxpose.xlu0.b32.cont [14/16] 0.0, 128
      %2757 = vxpose.xlu0.b32.cont [15/16] 0.0, 128
      %2758 = vxpose.xlu0.b32.end [16/16] 0.0, 128
      %v2759 = vpop.trf.xlu0
      %v2760 = vpop.trf.xlu0
      %v2761 = vpop.trf.xlu0
      %v2762 = vpop.trf.xlu0
      %v2763 = vpop.trf.xlu0
      %v2764 = vpop.trf.xlu0
      %v2765 = vpop.trf.xlu0
      %v2766 = vpop.trf.xlu0
      %v2767 = vpop.trf.xlu0
      %v2768 = vpop.trf.xlu0
      %v2769 = vpop.trf.xlu0
      %v2770 = vpop.trf.xlu0
      %v2771 = vpop.trf.xlu0
      %v2772 = vpop.trf.xlu0
      %v2773 = vpop.trf.xlu0
      %v2774 = vpop.trf.xlu0
      %v2776 = vsel %vm849, %v2759, 0
      %v2779 = vsel %vm849, %v2760, 0
      %2781 = vmatprep.subr.mxu0 0.0
      %2782 = vmatpush1.msra.mxu0 0.0
      %2783 = vmatprep.subr.mxu0 0.0
      %2784 = vmatpush1.msra.mxu0 0.0
      %2785 = vmatprep.subr.mxu0 0.0
      %2786 = vmatpush1.msra.mxu0 0.0
      %2787 = vmatprep.subr.mxu0 0.0
      %2788 = vmatpush1.msra.mxu0 0.0
      %2789 = vmatprep.subr.mxu0 0.0
      %2790 = vmatpush1.msra.mxu0 0.0
      %2791 = vmatprep.subr.mxu0 0.0
      %2792 = vmatpush1.msra.mxu0 0.0
      %2793 = vmatprep.subr.mxu0 0.0
      %2794 = vmatpush1.msra.mxu0 0.0
      %2795 = vmatprep.subr.mxu0 0.0
      %2796 = vmatpush1.msra.mxu0 0.0
      %2797 = vmatprep.subr.mxu0 0.0
      %2798 = vmatpush1.msra.mxu0 0.0
      %2799 = vmatprep.subr.mxu0 0.0
      %2800 = vmatpush1.msra.mxu0 0.0
      %2801 = vmatprep.subr.mxu0 0.0
      %2802 = vmatpush1.msra.mxu0 0.0
      %2803 = vmatprep.subr.mxu0 0.0
      %2804 = vmatpush1.msra.mxu0 0.0
      %2805 = vmatprep.subr.mxu0 0.0
      %2806 = vmatpush1.msra.mxu0 0.0
      %2807 = vmatprep.subr.mxu0 0.0
      %2808 = vmatpush1.msra.mxu0 0.0
      %2809 = vmatprep.subr.mxu0 0.0
      %2810 = vmatpush1.msra.mxu0 0.0
      %2811 = vmatprep.subr.mxu0 0.0
      %2812 = vmatpush1.msra.mxu0 %v2495
      %2813 = vmatprep.subr.mxu0 0.0
      %2814 = vmatpush2.msra.mxu0 0.0
      %2815 = vmatprep.subr.mxu0 0.0
      %2816 = vmatpush2.msra.mxu0 0.0
      %2817 = vmatprep.subr.mxu0 0.0
      %2818 = vmatpush2.msra.mxu0 0.0
      %2819 = vmatprep.subr.mxu0 0.0
      %2820 = vmatpush2.msra.mxu0 0.0
      %2821 = vmatprep.subr.mxu0 0.0
      %2822 = vmatpush2.msra.mxu0 0.0
      %2823 = vmatprep.subr.mxu0 0.0
      %2824 = vmatpush2.msra.mxu0 0.0
      %2825 = vmatprep.subr.mxu0 0.0
      %2826 = vmatpush2.msra.mxu0 0.0
      %2827 = vmatprep.subr.mxu0 0.0
      %2828 = vmatpush2.msra.mxu0 0.0
      %2829 = vmatprep.subr.mxu0 0.0
      %2830 = vmatpush2.msra.mxu0 0.0
      %2831 = vmatprep.subr.mxu0 0.0
      %2832 = vmatpush2.msra.mxu0 0.0
      %2833 = vmatprep.subr.mxu0 0.0
      %2834 = vmatpush2.msra.mxu0 0.0
      %2835 = vmatprep.subr.mxu0 0.0
      %2836 = vmatpush2.msra.mxu0 0.0
      %2837 = vmatprep.subr.mxu0 0.0
      %2838 = vmatpush2.msra.mxu0 0.0
      %2839 = vmatprep.subr.mxu0 0.0
      %2840 = vmatpush2.msra.mxu0 0.0
      %2841 = vmatprep.subr.mxu0 0.0
      %2842 = vmatpush2.msra.mxu0 0.0
      %2843 = vmatprep.subr.mxu0 0.0
      %2844 = vmatpush2.msra.mxu0 0.0
      %2845 = vmatprep.mubr.f32.mxu0 0.0
      %2846 = vmatmul.mubr.f32.gmra.mxu0 %v2776
      %v2847 = vpop.f32.mrf.mxu0
      %v2848 = vadd.f32 0.0, %v2847
      %v2849 = vpop.f32.mrf.mxu0
      %2850 = vmatprep.mubr.f32.mxu0 0.0
      %2851 = vmatmul.mubr.f32.gmra.mxu0 %v2779
      %v2852 = vpop.f32.mrf.mxu0
      %v2853 = vadd.f32 0.0, %v2852
      %v2854 = vpop.f32.mrf.mxu0
      %2855 = vdwg.mxu0
      %2856 = vxpose.xlu0.b32.start [1/16] %v2482, 128
      %2857 = vxpose.xlu0.b32.cont [2/16] 0.0, 128
      %2858 = vxpose.xlu0.b32.cont [3/16] 0.0, 128
      %2859 = vxpose.xlu0.b32.cont [4/16] 0.0, 128
      %2860 = vxpose.xlu0.b32.cont [5/16] 0.0, 128
      %2861 = vxpose.xlu0.b32.cont [6/16] 0.0, 128
      %2862 = vxpose.xlu0.b32.cont [7/16] 0.0, 128
      %2863 = vxpose.xlu0.b32.cont [8/16] 0.0, 128
      %2864 = vxpose.xlu0.b32.cont [9/16] 0.0, 128
      %2865 = vxpose.xlu0.b32.cont [10/16] 0.0, 128
      %2866 = vxpose.xlu0.b32.cont [11/16] 0.0, 128
      %2867 = vxpose.xlu0.b32.cont [12/16] 0.0, 128
      %2868 = vxpose.xlu0.b32.cont [13/16] 0.0, 128
      %2869 = vxpose.xlu0.b32.cont [14/16] 0.0, 128
      %2870 = vxpose.xlu0.b32.cont [15/16] 0.0, 128
      %2871 = vxpose.xlu0.b32.end [16/16] 0.0, 128
      %v2872 = vpop.trf.xlu0
      %v2873 = vpop.trf.xlu0
      %v2874 = vpop.trf.xlu0
      %v2875 = vpop.trf.xlu0
      %v2876 = vpop.trf.xlu0
      %v2877 = vpop.trf.xlu0
      %v2878 = vpop.trf.xlu0
      %v2879 = vpop.trf.xlu0
      %v2880 = vpop.trf.xlu0
      %v2881 = vpop.trf.xlu0
      %v2882 = vpop.trf.xlu0
      %v2883 = vpop.trf.xlu0
      %v2884 = vpop.trf.xlu0
      %v2885 = vpop.trf.xlu0
      %v2886 = vpop.trf.xlu0
      %v2887 = vpop.trf.xlu0
      %v2889 = vsel %vm849, %v2872, 0
      %v2892 = vsel %vm849, %v2873, 0
      %2894 = vmatprep.subr.mxu0 0.0
      %2895 = vmatpush1.msra.mxu0 0.0
      %2896 = vmatprep.subr.mxu0 0.0
      %2897 = vmatpush1.msra.mxu0 0.0
      %2898 = vmatprep.subr.mxu0 0.0
      %2899 = vmatpush1.msra.mxu0 0.0
      %2900 = vmatprep.subr.mxu0 0.0
      %2901 = vmatpush1.msra.mxu0 0.0
      %2902 = vmatprep.subr.mxu0 0.0
      %2903 = vmatpush1.msra.mxu0 0.0
      %2904 = vmatprep.subr.mxu0 0.0
      %2905 = vmatpush1.msra.mxu0 0.0
      %2906 = vmatprep.subr.mxu0 0.0
      %2907 = vmatpush1.msra.mxu0 0.0
      %2908 = vmatprep.subr.mxu0 0.0
      %2909 = vmatpush1.msra.mxu0 0.0
      %2910 = vmatprep.subr.mxu0 0.0
      %2911 = vmatpush1.msra.mxu0 0.0
      %2912 = vmatprep.subr.mxu0 0.0
      %2913 = vmatpush1.msra.mxu0 0.0
      %2914 = vmatprep.subr.mxu0 0.0
      %2915 = vmatpush1.msra.mxu0 0.0
      %2916 = vmatprep.subr.mxu0 0.0
      %2917 = vmatpush1.msra.mxu0 0.0
      %2918 = vmatprep.subr.mxu0 0.0
      %2919 = vmatpush1.msra.mxu0 0.0
      %2920 = vmatprep.subr.mxu0 0.0
      %2921 = vmatpush1.msra.mxu0 0.0
      %2922 = vmatprep.subr.mxu0 0.0
      %2923 = vmatpush1.msra.mxu0 0.0
      %2924 = vmatprep.subr.mxu0 0.0
      %2925 = vmatpush1.msra.mxu0 %v2498
      %2926 = vmatprep.subr.mxu0 0.0
      %2927 = vmatpush2.msra.mxu0 0.0
      %2928 = vmatprep.subr.mxu0 0.0
      %2929 = vmatpush2.msra.mxu0 0.0
      %2930 = vmatprep.subr.mxu0 0.0
      %2931 = vmatpush2.msra.mxu0 0.0
      %2932 = vmatprep.subr.mxu0 0.0
      %2933 = vmatpush2.msra.mxu0 0.0
      %2934 = vmatprep.subr.mxu0 0.0
      %2935 = vmatpush2.msra.mxu0 0.0
      %2936 = vmatprep.subr.mxu0 0.0
      %2937 = vmatpush2.msra.mxu0 0.0
      %2938 = vmatprep.subr.mxu0 0.0
      %2939 = vmatpush2.msra.mxu0 0.0
      %2940 = vmatprep.subr.mxu0 0.0
      %2941 = vmatpush2.msra.mxu0 0.0
      %2942 = vmatprep.subr.mxu0 0.0
      %2943 = vmatpush2.msra.mxu0 0.0
      %2944 = vmatprep.subr.mxu0 0.0
      %2945 = vmatpush2.msra.mxu0 0.0
      %2946 = vmatprep.subr.mxu0 0.0
      %2947 = vmatpush2.msra.mxu0 0.0
      %2948 = vmatprep.subr.mxu0 0.0
      %2949 = vmatpush2.msra.mxu0 0.0
      %2950 = vmatprep.subr.mxu0 0.0
      %2951 = vmatpush2.msra.mxu0 0.0
      %2952 = vmatprep.subr.mxu0 0.0
      %2953 = vmatpush2.msra.mxu0 0.0
      %2954 = vmatprep.subr.mxu0 0.0
      %2955 = vmatpush2.msra.mxu0 0.0
      %2956 = vmatprep.subr.mxu0 0.0
      %2957 = vmatpush2.msra.mxu0 0.0
      %2958 = vmatprep.mubr.f32.mxu0 0.0
      %2959 = vmatmul.mubr.f32.gmra.mxu0 %v2889
      %v2960 = vpop.f32.mrf.mxu0
      %v2961 = vadd.f32 0.0, %v2960
      %v2962 = vpop.f32.mrf.mxu0
      %2963 = vmatprep.mubr.f32.mxu0 0.0
      %2964 = vmatmul.mubr.f32.gmra.mxu0 %v2892
      %v2965 = vpop.f32.mrf.mxu0
      %v2966 = vadd.f32 0.0, %v2965
      %v2967 = vpop.f32.mrf.mxu0
      %2968 = vdwg.mxu0
      %v2969 = vsel %vm509, %v2622, -inf
      %2970 = vmax.xlane.f32.xlu0 %v2969
      %v2971 = vpop.xlane.xlu0 %2970
      %v2972 = vsel %vm509, %v2627, -inf
      %2973 = vmax.xlane.f32.xlu0 %v2972
      %v2974 = vpop.xlane.xlu0 %2973
      %v2975 = vsel %vm509, %v2735, -inf
      %2976 = vmax.xlane.f32.xlu0 %v2975
      %v2977 = vpop.xlane.xlu0 %2976
      %v2978 = vsel %vm509, %v2740, -inf
      %2979 = vmax.xlane.f32.xlu0 %v2978
      %v2980 = vpop.xlane.xlu0 %2979
      %v2981 = vsel %vm509, %v2848, -inf
      %2982 = vmax.xlane.f32.xlu0 %v2981
      %v2983 = vpop.xlane.xlu0 %2982
      %v2984 = vsel %vm509, %v2853, -inf
      %2985 = vmax.xlane.f32.xlu0 %v2984
      %v2986 = vpop.xlane.xlu0 %2985
      %v2987 = vsel %vm509, %v2961, -inf
      %2988 = vmax.xlane.f32.xlu0 %v2987
      %v2989 = vpop.xlane.xlu0 %2988
      %v2990 = vsel %vm509, %v2966, -inf
      %2991 = vmax.xlane.f32.xlu0 %v2990
      %v2992 = vpop.xlane.xlu0 %2991
      %v2993 = vsub.f32 %v2622, %v2971
      %v2994 = vsub.f32 %v2627, %v2974
      %v2995 = vsub.f32 %v2735, %v2977
      %v2996 = vsub.f32 %v2740, %v2980
      %v2997 = vsub.f32 %v2848, %v2983
      %v2998 = vsub.f32 %v2853, %v2986
      %v2999 = vsub.f32 %v2961, %v2989
      %v3000 = vsub.f32 %v2966, %v2992
      %v3001 = vmul.f32 %v2993, 1.442695
      %v3002 = vpow.pop %v3001
      %v3003 = vmul.f32 %v2994, 1.442695
      %v3004 = vpow.pop %v3003
      %v3005 = vmul.f32 %v2995, 1.442695
      %v3006 = vpow.pop %v3005
      %v3007 = vmul.f32 %v2996, 1.442695
      %v3008 = vpow.pop %v3007
      %v3009 = vmul.f32 %v2997, 1.442695
      %v3010 = vpow.pop %v3009
      %v3011 = vmul.f32 %v2998, 1.442695
      %v3012 = vpow.pop %v3011
      %v3013 = vmul.f32 %v2999, 1.442695
      %v3014 = vpow.pop %v3013
      %v3015 = vmul.f32 %v3000, 1.442695
      %v3016 = vpow.pop %v3015
      %v3017 = vsel %vm509, %v3002, 0.0
      %3018 = vadd.xlane.f32.xlu0 %v3017
      %v3019 = vpop.xlane.xlu0 %3018
      %v3020 = vsel %vm509, %v3004, 0.0
      %3021 = vadd.xlane.f32.xlu0 %v3020
      %v3022 = vpop.xlane.xlu0 %3021
      %v3023 = vsel %vm509, %v3006, 0.0
      %3024 = vadd.xlane.f32.xlu0 %v3023
      %v3025 = vpop.xlane.xlu0 %3024
      %v3026 = vsel %vm509, %v3008, 0.0
      %3027 = vadd.xlane.f32.xlu0 %v3026
      %v3028 = vpop.xlane.xlu0 %3027
      %v3029 = vsel %vm509, %v3010, 0.0
      %3030 = vadd.xlane.f32.xlu0 %v3029
      %v3031 = vpop.xlane.xlu0 %3030
      %v3032 = vsel %vm509, %v3012, 0.0
      %3033 = vadd.xlane.f32.xlu0 %v3032
      %v3034 = vpop.xlane.xlu0 %3033
      %v3035 = vsel %vm509, %v3014, 0.0
      %3036 = vadd.xlane.f32.xlu0 %v3035
      %v3037 = vpop.xlane.xlu0 %3036
      %v3038 = vsel %vm509, %v3016, 0.0
      %3039 = vadd.xlane.f32.xlu0 %v3038
      %v3040 = vpop.xlane.xlu0 %3039
      %v3041 = vrcp.pop %v3019
      %v3042 = vrcp.pop %v3022
      %v3043 = vrcp.pop %v3025
      %v3044 = vrcp.pop %v3028
      %v3045 = vrcp.pop %v3031
      %v3046 = vrcp.pop %v3034
      %v3047 = vrcp.pop %v3037
      %v3048 = vrcp.pop %v3040
      %v3049 = vmul.f32 %v3002, %v3041
      %v3050 = vmul.f32 %v3004, %v3042
      %v3051 = vmul.f32 %v3006, %v3043
      %v3052 = vmul.f32 %v3008, %v3044
      %v3053 = vmul.f32 %v3010, %v3045
      %v3054 = vmul.f32 %v3012, %v3046
      %v3055 = vmul.f32 %v3014, %v3047
      %v3056 = vmul.f32 %v3016, %v3048
      %v3058 = vsel %vm509, %v2503, 0
      %v3061 = vsel %vm509, %v3049, 0
      %v3064 = vsel %vm509, %v3050, 0
      %3066 = vmatprep.subr.mxu0 0.0
      %3067 = vmatpush1.xpose.msra.mxu0 0.0
      %3068 = vmatprep.subr.mxu0 0.0
      %3069 = vmatpush1.xpose.msra.mxu0 0.0
      %3070 = vmatprep.subr.mxu0 0.0
      %3071 = vmatpush1.xpose.msra.mxu0 0.0
      %3072 = vmatprep.subr.mxu0 0.0
      %3073 = vmatpush1.xpose.msra.mxu0 0.0
      %3074 = vmatprep.subr.mxu0 0.0
      %3075 = vmatpush1.xpose.msra.mxu0 0.0
      %3076 = vmatprep.subr.mxu0 0.0
      %3077 = vmatpush1.xpose.msra.mxu0 0.0
      %3078 = vmatprep.subr.mxu0 0.0
      %3079 = vmatpush1.xpose.msra.mxu0 0.0
      %3080 = vmatprep.subr.mxu0 0.0
      %3081 = vmatpush1.xpose.msra.mxu0 0.0
      %3082 = vmatprep.subr.mxu0 0.0
      %3083 = vmatpush1.xpose.msra.mxu0 0.0
      %3084 = vmatprep.subr.mxu0 0.0
      %3085 = vmatpush1.xpose.msra.mxu0 0.0
      %3086 = vmatprep.subr.mxu0 0.0
      %3087 = vmatpush1.xpose.msra.mxu0 0.0
      %3088 = vmatprep.subr.mxu0 0.0
      %3089 = vmatpush1.xpose.msra.mxu0 0.0
      %3090 = vmatprep.subr.mxu0 0.0
      %3091 = vmatpush1.xpose.msra.mxu0 0.0
      %3092 = vmatprep.subr.mxu0 0.0
      %3093 = vmatpush1.xpose.msra.mxu0 0.0
      %3094 = vmatprep.subr.mxu0 0.0
      %3095 = vmatpush1.xpose.msra.mxu0 %v3064
      %3096 = vmatprep.subr.mxu0 0.0
      %3097 = vmatpush1.xpose.msra.mxu0 %v3061
      %3098 = vmatprep.subr.mxu0 0.0
      %3099 = vmatpush2.xpose.msra.mxu0 0.0
      %3100 = vmatprep.subr.mxu0 0.0
      %3101 = vmatpush2.xpose.msra.mxu0 0.0
      %3102 = vmatprep.subr.mxu0 0.0
      %3103 = vmatpush2.xpose.msra.mxu0 0.0
      %3104 = vmatprep.subr.mxu0 0.0
      %3105 = vmatpush2.xpose.msra.mxu0 0.0
      %3106 = vmatprep.subr.mxu0 0.0
      %3107 = vmatpush2.xpose.msra.mxu0 0.0
      %3108 = vmatprep.subr.mxu0 0.0
      %3109 = vmatpush2.xpose.msra.mxu0 0.0
      %3110 = vmatprep.subr.mxu0 0.0
      %3111 = vmatpush2.xpose.msra.mxu0 0.0
      %3112 = vmatprep.subr.mxu0 0.0
      %3113 = vmatpush2.xpose.msra.mxu0 0.0
      %3114 = vmatprep.subr.mxu0 0.0
      %3115 = vmatpush2.xpose.msra.mxu0 0.0
      %3116 = vmatprep.subr.mxu0 0.0
      %3117 = vmatpush2.xpose.msra.mxu0 0.0
      %3118 = vmatprep.subr.mxu0 0.0
      %3119 = vmatpush2.xpose.msra.mxu0 0.0
      %3120 = vmatprep.subr.mxu0 0.0
      %3121 = vmatpush2.xpose.msra.mxu0 0.0
      %3122 = vmatprep.subr.mxu0 0.0
      %3123 = vmatpush2.xpose.msra.mxu0 0.0
      %3124 = vmatprep.subr.mxu0 0.0
      %3125 = vmatpush2.xpose.msra.mxu0 0.0
      %3126 = vmatprep.subr.mxu0 0.0
      %3127 = vmatpush2.xpose.msra.mxu0 0.0
      %3128 = vmatprep.subr.mxu0 0.0
      %3129 = vmatpush2.xpose.msra.mxu0 0.0
      %3130 = vmatprep.mubr.f32.mxu0 0.0
      %3131 = vmatmul.mubr.f32.gmra.mxu0 %v3058
      %v3132 = vpop.f32.mrf.mxu0
      %v3133 = vadd.f32 0.0, %v3132
      %v3134 = vpop.f32.mrf.mxu0
      %3135 = vdwg.mxu0
      %v3137 = vsel %vm509, %v2506, 0
      %v3140 = vsel %vm509, %v3051, 0
      %v3143 = vsel %vm509, %v3052, 0
      %3145 = vmatprep.subr.mxu0 0.0
      %3146 = vmatpush1.xpose.msra.mxu0 0.0
      %3147 = vmatprep.subr.mxu0 0.0
      %3148 = vmatpush1.xpose.msra.mxu0 0.0
      %3149 = vmatprep.subr.mxu0 0.0
      %3150 = vmatpush1.xpose.msra.mxu0 0.0
      %3151 = vmatprep.subr.mxu0 0.0
      %3152 = vmatpush1.xpose.msra.mxu0 0.0
      %3153 = vmatprep.subr.mxu0 0.0
      %3154 = vmatpush1.xpose.msra.mxu0 0.0
      %3155 = vmatprep.subr.mxu0 0.0
      %3156 = vmatpush1.xpose.msra.mxu0 0.0
      %3157 = vmatprep.subr.mxu0 0.0
      %3158 = vmatpush1.xpose.msra.mxu0 0.0
      %3159 = vmatprep.subr.mxu0 0.0
      %3160 = vmatpush1.xpose.msra.mxu0 0.0
      %3161 = vmatprep.subr.mxu0 0.0
      %3162 = vmatpush1.xpose.msra.mxu0 0.0
      %3163 = vmatprep.subr.mxu0 0.0
      %3164 = vmatpush1.xpose.msra.mxu0 0.0
      %3165 = vmatprep.subr.mxu0 0.0
      %3166 = vmatpush1.xpose.msra.mxu0 0.0
      %3167 = vmatprep.subr.mxu0 0.0
      %3168 = vmatpush1.xpose.msra.mxu0 0.0
      %3169 = vmatprep.subr.mxu0 0.0
      %3170 = vmatpush1.xpose.msra.mxu0 0.0
      %3171 = vmatprep.subr.mxu0 0.0
      %3172 = vmatpush1.xpose.msra.mxu0 0.0
      %3173 = vmatprep.subr.mxu0 0.0
      %3174 = vmatpush1.xpose.msra.mxu0 %v3143
      %3175 = vmatprep.subr.mxu0 0.0
      %3176 = vmatpush1.xpose.msra.mxu0 %v3140
      %3177 = vmatprep.subr.mxu0 0.0
      %3178 = vmatpush2.xpose.msra.mxu0 0.0
      %3179 = vmatprep.subr.mxu0 0.0
      %3180 = vmatpush2.xpose.msra.mxu0 0.0
      %3181 = vmatprep.subr.mxu0 0.0
      %3182 = vmatpush2.xpose.msra.mxu0 0.0
      %3183 = vmatprep.subr.mxu0 0.0
      %3184 = vmatpush2.xpose.msra.mxu0 0.0
      %3185 = vmatprep.subr.mxu0 0.0
      %3186 = vmatpush2.xpose.msra.mxu0 0.0
      %3187 = vmatprep.subr.mxu0 0.0
      %3188 = vmatpush2.xpose.msra.mxu0 0.0
      %3189 = vmatprep.subr.mxu0 0.0
      %3190 = vmatpush2.xpose.msra.mxu0 0.0
      %3191 = vmatprep.subr.mxu0 0.0
      %3192 = vmatpush2.xpose.msra.mxu0 0.0
      %3193 = vmatprep.subr.mxu0 0.0
      %3194 = vmatpush2.xpose.msra.mxu0 0.0
      %3195 = vmatprep.subr.mxu0 0.0
      %3196 = vmatpush2.xpose.msra.mxu0 0.0
      %3197 = vmatprep.subr.mxu0 0.0
      %3198 = vmatpush2.xpose.msra.mxu0 0.0
      %3199 = vmatprep.subr.mxu0 0.0
      %3200 = vmatpush2.xpose.msra.mxu0 0.0
      %3201 = vmatprep.subr.mxu0 0.0
      %3202 = vmatpush2.xpose.msra.mxu0 0.0
      %3203 = vmatprep.subr.mxu0 0.0
      %3204 = vmatpush2.xpose.msra.mxu0 0.0
      %3205 = vmatprep.subr.mxu0 0.0
      %3206 = vmatpush2.xpose.msra.mxu0 0.0
      %3207 = vmatprep.subr.mxu0 0.0
      %3208 = vmatpush2.xpose.msra.mxu0 0.0
      %3209 = vmatprep.mubr.f32.mxu0 0.0
      %3210 = vmatmul.mubr.f32.gmra.mxu0 %v3137
      %v3211 = vpop.f32.mrf.mxu0
      %v3212 = vadd.f32 0.0, %v3211
      %v3213 = vpop.f32.mrf.mxu0
      %3214 = vdwg.mxu0
      %v3216 = vsel %vm509, %v2511, 0
      %v3219 = vsel %vm509, %v3053, 0
      %v3222 = vsel %vm509, %v3054, 0
      %3224 = vmatprep.subr.mxu0 0.0
      %3225 = vmatpush1.xpose.msra.mxu0 0.0
      %3226 = vmatprep.subr.mxu0 0.0
      %3227 = vmatpush1.xpose.msra.mxu0 0.0
      %3228 = vmatprep.subr.mxu0 0.0
      %3229 = vmatpush1.xpose.msra.mxu0 0.0
      %3230 = vmatprep.subr.mxu0 0.0
      %3231 = vmatpush1.xpose.msra.mxu0 0.0
      %3232 = vmatprep.subr.mxu0 0.0
      %3233 = vmatpush1.xpose.msra.mxu0 0.0
      %3234 = vmatprep.subr.mxu0 0.0
      %3235 = vmatpush1.xpose.msra.mxu0 0.0
      %3236 = vmatprep.subr.mxu0 0.0
      %3237 = vmatpush1.xpose.msra.mxu0 0.0
      %3238 = vmatprep.subr.mxu0 0.0
      %3239 = vmatpush1.xpose.msra.mxu0 0.0
      %3240 = vmatprep.subr.mxu0 0.0
      %3241 = vmatpush1.xpose.msra.mxu0 0.0
      %3242 = vmatprep.subr.mxu0 0.0
      %3243 = vmatpush1.xpose.msra.mxu0 0.0
      %3244 = vmatprep.subr.mxu0 0.0
      %3245 = vmatpush1.xpose.msra.mxu0 0.0
      %3246 = vmatprep.subr.mxu0 0.0
      %3247 = vmatpush1.xpose.msra.mxu0 0.0
      %3248 = vmatprep.subr.mxu0 0.0
      %3249 = vmatpush1.xpose.msra.mxu0 0.0
      %3250 = vmatprep.subr.mxu0 0.0
      %3251 = vmatpush1.xpose.msra.mxu0 0.0
      %3252 = vmatprep.subr.mxu0 0.0
      %3253 = vmatpush1.xpose.msra.mxu0 %v3222
      %3254 = vmatprep.subr.mxu0 0.0
      %3255 = vmatpush1.xpose.msra.mxu0 %v3219
      %3256 = vmatprep.subr.mxu0 0.0
      %3257 = vmatpush2.xpose.msra.mxu0 0.0
      %3258 = vmatprep.subr.mxu0 0.0
      %3259 = vmatpush2.xpose.msra.mxu0 0.0
      %3260 = vmatprep.subr.mxu0 0.0
      %3261 = vmatpush2.xpose.msra.mxu0 0.0
      %3262 = vmatprep.subr.mxu0 0.0
      %3263 = vmatpush2.xpose.msra.mxu0 0.0
      %3264 = vmatprep.subr.mxu0 0.0
      %3265 = vmatpush2.xpose.msra.mxu0 0.0
      %3266 = vmatprep.subr.mxu0 0.0
      %3267 = vmatpush2.xpose.msra.mxu0 0.0
      %3268 = vmatprep.subr.mxu0 0.0
      %3269 = vmatpush2.xpose.msra.mxu0 0.0
      %3270 = vmatprep.subr.mxu0 0.0
      %3271 = vmatpush2.xpose.msra.mxu0 0.0
      %3272 = vmatprep.subr.mxu0 0.0
      %3273 = vmatpush2.xpose.msra.mxu0 0.0
      %3274 = vmatprep.subr.mxu0 0.0
      %3275 = vmatpush2.xpose.msra.mxu0 0.0
      %3276 = vmatprep.subr.mxu0 0.0
      %3277 = vmatpush2.xpose.msra.mxu0 0.0
      %3278 = vmatprep.subr.mxu0 0.0
      %3279 = vmatpush2.xpose.msra.mxu0 0.0
      %3280 = vmatprep.subr.mxu0 0.0
      %3281 = vmatpush2.xpose.msra.mxu0 0.0
      %3282 = vmatprep.subr.mxu0 0.0
      %3283 = vmatpush2.xpose.msra.mxu0 0.0
      %3284 = vmatprep.subr.mxu0 0.0
      %3285 = vmatpush2.xpose.msra.mxu0 0.0
      %3286 = vmatprep.subr.mxu0 0.0
      %3287 = vmatpush2.xpose.msra.mxu0 0.0
      %3288 = vmatprep.mubr.f32.mxu0 0.0
      %3289 = vmatmul.mubr.f32.gmra.mxu0 %v3216
      %v3290 = vpop.f32.mrf.mxu0
      %v3291 = vadd.f32 0.0, %v3290
      %v3292 = vpop.f32.mrf.mxu0
      %3293 = vdwg.mxu0
      %v3295 = vsel %vm509, %v2514, 0
      %v3298 = vsel %vm509, %v3055, 0
      %v3301 = vsel %vm509, %v3056, 0
      %3303 = vmatprep.subr.mxu0 0.0
      %3304 = vmatpush1.xpose.msra.mxu0 0.0
      %3305 = vmatprep.subr.mxu0 0.0
      %3306 = vmatpush1.xpose.msra.mxu0 0.0
      %3307 = vmatprep.subr.mxu0 0.0
      %3308 = vmatpush1.xpose.msra.mxu0 0.0
      %3309 = vmatprep.subr.mxu0 0.0
      %3310 = vmatpush1.xpose.msra.mxu0 0.0
      %3311 = vmatprep.subr.mxu0 0.0
      %3312 = vmatpush1.xpose.msra.mxu0 0.0
      %3313 = vmatprep.subr.mxu0 0.0
      %3314 = vmatpush1.xpose.msra.mxu0 0.0
      %3315 = vmatprep.subr.mxu0 0.0
      %3316 = vmatpush1.xpose.msra.mxu0 0.0
      %3317 = vmatprep.subr.mxu0 0.0
      %3318 = vmatpush1.xpose.msra.mxu0 0.0
      %3319 = vmatprep.subr.mxu0 0.0
      %3320 = vmatpush1.xpose.msra.mxu0 0.0
      %3321 = vmatprep.subr.mxu0 0.0
      %3322 = vmatpush1.xpose.msra.mxu0 0.0
      %3323 = vmatprep.subr.mxu0 0.0
      %3324 = vmatpush1.xpose.msra.mxu0 0.0
      %3325 = vmatprep.subr.mxu0 0.0
      %3326 = vmatpush1.xpose.msra.mxu0 0.0
      %3327 = vmatprep.subr.mxu0 0.0
      %3328 = vmatpush1.xpose.msra.mxu0 0.0
      %3329 = vmatprep.subr.mxu0 0.0
      %3330 = vmatpush1.xpose.msra.mxu0 0.0
      %3331 = vmatprep.subr.mxu0 0.0
      %3332 = vmatpush1.xpose.msra.mxu0 %v3301
      %3333 = vmatprep.subr.mxu0 0.0
      %3334 = vmatpush1.xpose.msra.mxu0 %v3298
      %3335 = vmatprep.subr.mxu0 0.0
      %3336 = vmatpush2.xpose.msra.mxu0 0.0
      %3337 = vmatprep.subr.mxu0 0.0
      %3338 = vmatpush2.xpose.msra.mxu0 0.0
      %3339 = vmatprep.subr.mxu0 0.0
      %3340 = vmatpush2.xpose.msra.mxu0 0.0
      %3341 = vmatprep.subr.mxu0 0.0
      %3342 = vmatpush2.xpose.msra.mxu0 0.0
      %3343 = vmatprep.subr.mxu0 0.0
      %3344 = vmatpush2.xpose.msra.mxu0 0.0
      %3345 = vmatprep.subr.mxu0 0.0
      %3346 = vmatpush2.xpose.msra.mxu0 0.0
      %3347 = vmatprep.subr.mxu0 0.0
      %3348 = vmatpush2.xpose.msra.mxu0 0.0
      %3349 = vmatprep.subr.mxu0 0.0
      %3350 = vmatpush2.xpose.msra.mxu0 0.0
      %3351 = vmatprep.subr.mxu0 0.0
      %3352 = vmatpush2.xpose.msra.mxu0 0.0
      %3353 = vmatprep.subr.mxu0 0.0
      %3354 = vmatpush2.xpose.msra.mxu0 0.0
      %3355 = vmatprep.subr.mxu0 0.0
      %3356 = vmatpush2.xpose.msra.mxu0 0.0
      %3357 = vmatprep.subr.mxu0 0.0
      %3358 = vmatpush2.xpose.msra.mxu0 0.0
      %3359 = vmatprep.subr.mxu0 0.0
      %3360 = vmatpush2.xpose.msra.mxu0 0.0
      %3361 = vmatprep.subr.mxu0 0.0
      %3362 = vmatpush2.xpose.msra.mxu0 0.0
      %3363 = vmatprep.subr.mxu0 0.0
      %3364 = vmatpush2.xpose.msra.mxu0 0.0
      %3365 = vmatprep.subr.mxu0 0.0
      %3366 = vmatpush2.xpose.msra.mxu0 0.0
      %3367 = vmatprep.mubr.f32.mxu0 0.0
      %3368 = vmatmul.mubr.f32.gmra.mxu0 %v3295
      %v3369 = vpop.f32.mrf.mxu0
      %v3370 = vadd.f32 0.0, %v3369
      %v3371 = vpop.f32.mrf.mxu0
      %3372 = vdwg.mxu0
      %s3373 = scalar_lea.vmem %s6, 16
      %v3374 = vld [vmem:[%s3373] sm:$0xf]
      %v3375 = vld [vmem:[%s3373 + $0x4] sm:$0xf]
      %v3376 = vld [vmem:[%s3373 + $0x8] sm:$0xf]
      %v3377 = vld [vmem:[%s3373 + $0xc] sm:$0xf]
      %s3378 = scalar_lea.vmem %s7, 32
      %v3379 = vld [vmem:[%s3378] sm:$0xff]
      %v3380 = vld [vmem:[%s3378 + $0x8] sm:$0xff]
      %v3381 = vld [vmem:[%s3378 + $0x10] sm:$0xff]
      %v3382 = vld [vmem:[%s3378 + $0x18] sm:$0xff]
      %v3383 = vpack.c.bf16 %v3212, %v3133
      %v3384 = vpack.c.bf16 %v3370, %v3291
      %3386 = vset.pattern.permute.xlu0 0
      %3387 = vperm.xlu0 %3386, %v3379
      %v3388 = vpop.permute.xlu0 %3387
      %3391 = vset.pattern.permute.xlu0 0
      %3392 = vperm.xlu0 %3391, %v3380
      %v3393 = vpop.permute.xlu0 %3392
      %3396 = vset.pattern.permute.xlu0 0
      %3397 = vperm.xlu0 %3396, %v3381
      %v3398 = vpop.permute.xlu0 %3397
      %3401 = vset.pattern.permute.xlu0 0
      %3402 = vperm.xlu0 %3401, %v3382
      %v3403 = vpop.permute.xlu0 %3402
      %v3409 = vunpack.c.l.b16 %v3374
      %v3410 = vunpack.c.l.b16 %v3375
      %v3411 = vunpack.c.l.b16 %v3376
      %v3412 = vunpack.c.l.b16 %v3377
      %v3413 = vpack.c.b16 %v3410, %v3409
      %v3414 = vpack.c.b16 %v3412, %v3411
      %v3416 = vsel %vm717, %v3413, 0
      %v3419 = vsel %vm717, %v3414, 0
      %3421 = vmatprep.subr.bf16.mxu0 0
      %3422 = vmatpush1.bf16.msra.mxu0 0
      %3423 = vmatprep.subr.bf16.mxu0 0
      %3424 = vmatpush1.bf16.msra.mxu0 0
      %3425 = vmatprep.subr.bf16.mxu0 0
      %3426 = vmatpush1.bf16.msra.mxu0 0
      %3427 = vmatprep.subr.bf16.mxu0 0
      %3428 = vmatpush1.bf16.msra.mxu0 0
      %3429 = vmatprep.subr.bf16.mxu0 0
      %3430 = vmatpush1.bf16.msra.mxu0 0
      %3431 = vmatprep.subr.bf16.mxu0 0
      %3432 = vmatpush1.bf16.msra.mxu0 0
      %3433 = vmatprep.subr.bf16.mxu0 0
      %3434 = vmatpush1.bf16.msra.mxu0 %v3384
      %3435 = vmatprep.subr.bf16.mxu0 0
      %3436 = vmatpush1.bf16.msra.mxu0 %v3383
      %3437 = vmatprep.subr.bf16.mxu0 0
      %3438 = vmatpush2.bf16.msra.mxu0 0
      %3439 = vmatprep.subr.bf16.mxu0 0
      %3440 = vmatpush2.bf16.msra.mxu0 0
      %3441 = vmatprep.subr.bf16.mxu0 0
      %3442 = vmatpush2.bf16.msra.mxu0 0
      %3443 = vmatprep.subr.bf16.mxu0 0
      %3444 = vmatpush2.bf16.msra.mxu0 0
      %3445 = vmatprep.subr.bf16.mxu0 0
      %3446 = vmatpush2.bf16.msra.mxu0 0
      %3447 = vmatprep.subr.bf16.mxu0 0
      %3448 = vmatpush2.bf16.msra.mxu0 0
      %3449 = vmatprep.subr.bf16.mxu0 0
      %3450 = vmatpush2.bf16.msra.mxu0 0
      %3451 = vmatprep.subr.bf16.mxu0 0
      %3452 = vmatpush2.bf16.msra.mxu0 0
      %3453 = vmatprep.mubr.bf16.mxu0 0
      %3454 = vmatmul.mubr.bf16.gmra.mxu0 %v3416
      %v3455 = vpop.f32.mrf.mxu0
      %v3456 = vadd.f32 %v3388, %v3455
      %v3457 = vpop.f32.mrf.mxu0
      %v3458 = vpop.f32.mrf.mxu0
      %v3459 = vadd.f32 %v3393, %v3458
      %v3460 = vpop.f32.mrf.mxu0
      %3461 = vmatprep.mubr.bf16.mxu0 0
      %3462 = vmatmul.mubr.bf16.gmra.mxu0 %v3419
      %v3463 = vpop.f32.mrf.mxu0
      %v3464 = vadd.f32 %v3398, %v3463
      %v3465 = vpop.f32.mrf.mxu0
      %v3466 = vpop.f32.mrf.mxu0
      %v3467 = vadd.f32 %v3403, %v3466
      %v3468 = vpop.f32.mrf.mxu0
      %3469 = vdwg.mxu0
      %v3470 = vadd.f32 %v2196, %v3456
      %v3471 = vadd.f32 %v2197, %v3459
      %v3472 = vadd.f32 %v2198, %v3464
      %v3473 = vadd.f32 %v2199, %v3467
      %s3474 = scalar_lea.vmem %s8, 32
      %v3475 = vld [vmem:[%s3474] sm:$0xff]
      %v3476 = vld [vmem:[%s3474 + $0x8] sm:$0xff]
      %v3477 = vld [vmem:[%s3474 + $0x10] sm:$0xff]
      %v3478 = vld [vmem:[%s3474 + $0x18] sm:$0xff]
      %s3479 = scalar_lea.vmem %s9, 32
      %v3480 = vld [vmem:[%s3479] sm:$0xff]
      %v3481 = vld [vmem:[%s3479 + $0x8] sm:$0xff]
      %v3482 = vld [vmem:[%s3479 + $0x10] sm:$0xff]
      %v3483 = vld [vmem:[%s3479 + $0x18] sm:$0xff]
      %v3484 = vsel %vm509, %v3470, 0.0
      %v3485 = vsel %vm509, %v3471, 0.0
      %v3486 = vadd.f32 %v3484, %v3485
      %v3487 = vsel %vm509, %v3472, 0.0
      %v3488 = vadd.f32 %v3486, %v3487
      %v3489 = vsel %vm509, %v3473, 0.0
      %v3490 = vadd.f32 %v3488, %v3489
      %v3491 = vrot.slane %v3490, 4
      %v3492 = vadd.f32 %v3490, %v3491
      %v3493 = vrot.slane %v3492, 2
      %v3494 = vadd.f32 %v3492, %v3493
      %v3495 = vrot.slane %v3494, 1
      %v3496 = vadd.f32 %v3494, %v3495
      %v3497 = vmul.f32 %v3496, %v523
      %v3498 = vsub.f32 %v3470, %v3497
      %v3499 = vsub.f32 %v3471, %v3497
      %v3500 = vsub.f32 %v3472, %v3497
      %v3501 = vsub.f32 %v3473, %v3497
      %v3502 = vmul.f32 %v3498, %v3498
      %v3503 = vmul.f32 %v3499, %v3499
      %v3504 = vmul.f32 %v3500, %v3500
      %v3505 = vmul.f32 %v3501, %v3501
      %v3506 = vsel %vm509, %v3502, 0.0
      %v3507 = vsel %vm509, %v3503, 0.0
      %v3508 = vadd.f32 %v3506, %v3507
      %v3509 = vsel %vm509, %v3504, 0.0
      %v3510 = vadd.f32 %v3508, %v3509
      %v3511 = vsel %vm509, %v3505, 0.0
      %v3512 = vadd.f32 %v3510, %v3511
      %v3513 = vrot.slane %v3512, 4
      %v3514 = vadd.f32 %v3512, %v3513
      %v3515 = vrot.slane %v3514, 2
      %v3516 = vadd.f32 %v3514, %v3515
      %v3517 = vrot.slane %v3516, 1
      %v3518 = vadd.f32 %v3516, %v3517
      %v3519 = vmul.f32 %v3518, %v523
      %v3520 = vadd.f32 %v3519, 1e-05
      %v3521 = vrsqrt.pop %v3520
      %v3522 = vmul.f32 %v3498, %v3521
      %v3523 = vmul.f32 %v3499, %v3521
      %v3524 = vmul.f32 %v3500, %v3521
      %v3525 = vmul.f32 %v3501, %v3521
      %3527 = vset.pattern.permute.xlu0 0
      %3528 = vperm.xlu0 %3527, %v3475
      %v3529 = vpop.permute.xlu0 %3528
      %3532 = vset.pattern.permute.xlu0 0
      %3533 = vperm.xlu0 %3532, %v3476
      %v3534 = vpop.permute.xlu0 %3533
      %3537 = vset.pattern.permute.xlu0 0
      %3538 = vperm.xlu0 %3537, %v3477
      %v3539 = vpop.permute.xlu0 %3538
      %3542 = vset.pattern.permute.xlu0 0
      %3543 = vperm.xlu0 %3542, %v3478
      %v3544 = vpop.permute.xlu0 %3543
      %v3546 = vmul.f32 %v3522, %v3529
      %v3547 = vmul.f32 %v3523, %v3534
      %v3548 = vmul.f32 %v3524, %v3539
      %v3549 = vmul.f32 %v3525, %v3544
      %3551 = vset.pattern.permute.xlu0 0
      %3552 = vperm.xlu0 %3551, %v3480
      %v3553 = vpop.permute.xlu0 %3552
      %3556 = vset.pattern.permute.xlu0 0
      %3557 = vperm.xlu0 %3556, %v3481
      %v3558 = vpop.permute.xlu0 %3557
      %3561 = vset.pattern.permute.xlu0 0
      %3562 = vperm.xlu0 %3561, %v3482
      %v3563 = vpop.permute.xlu0 %3562
      %3566 = vset.pattern.permute.xlu0 0
      %3567 = vperm.xlu0 %3566, %v3483
      %v3568 = vpop.permute.xlu0 %3567
      %v3570 = vadd.f32 %v3546, %v3553
      %v3571 = vadd.f32 %v3547, %v3558
      %v3572 = vadd.f32 %v3548, %v3563
      %v3573 = vadd.f32 %v3549, %v3568
      %s3574 = scalar_lea.vmem %s10, 32
      %v3575 = vld [vmem:[%s3574] sm:$0xf]
      %v3576 = vld [vmem:[%s3574 + $0x4] sm:$0xf]
      %v3577 = vld [vmem:[%s3574 + $0x8] sm:$0xf]
      %v3578 = vld [vmem:[%s3574 + $0xc] sm:$0xf]
      %v3579 = vld [vmem:[%s3574 + $0x10] sm:$0xf]
      %v3580 = vld [vmem:[%s3574 + $0x14] sm:$0xf]
      %v3581 = vld [vmem:[%s3574 + $0x18] sm:$0xf]
      %v3582 = vld [vmem:[%s3574 + $0x1c] sm:$0xf]
      %s3583 = scalar_lea.vmem %s11, 64
      %v3584 = vld [vmem:[%s3583] sm:$0xff]
      %v3585 = vld [vmem:[%s3583 + $0x8] sm:$0xff]
      %v3586 = vld [vmem:[%s3583 + $0x10] sm:$0xff]
      %v3587 = vld [vmem:[%s3583 + $0x18] sm:$0xff]
      %v3588 = vld [vmem:[%s3583 + $0x20] sm:$0xff]
      %v3589 = vld [vmem:[%s3583 + $0x28] sm:$0xff]
      %v3590 = vld [vmem:[%s3583 + $0x30] sm:$0xff]
      %v3591 = vld [vmem:[%s3583 + $0x38] sm:$0xff]
      %v3592 = vpack.c.bf16 %v3571, %v3570
      %v3593 = vpack.c.bf16 %v3573, %v3572
      %3595 = vset.pattern.permute.xlu0 0
      %3596 = vperm.xlu0 %3595, %v3584
      %v3597 = vpop.permute.xlu0 %3596
      %3600 = vset.pattern.permute.xlu0 0
      %3601 = vperm.xlu0 %3600, %v3585
      %v3602 = vpop.permute.xlu0 %3601
      %3605 = vset.pattern.permute.xlu0 0
      %3606 = vperm.xlu0 %3605, %v3586
      %v3607 = vpop.permute.xlu0 %3606
      %3610 = vset.pattern.permute.xlu0 0
      %3611 = vperm.xlu0 %3610, %v3587
      %v3612 = vpop.permute.xlu0 %3611
      %3615 = vset.pattern.permute.xlu0 0
      %3616 = vperm.xlu0 %3615, %v3588
      %v3617 = vpop.permute.xlu0 %3616
      %3620 = vset.pattern.permute.xlu0 0
      %3621 = vperm.xlu0 %3620, %v3589
      %v3622 = vpop.permute.xlu0 %3621
      %3625 = vset.pattern.permute.xlu0 0
      %3626 = vperm.xlu0 %3625, %v3590
      %v3627 = vpop.permute.xlu0 %3626
      %3630 = vset.pattern.permute.xlu0 0
      %3631 = vperm.xlu0 %3630, %v3591
      %v3632 = vpop.permute.xlu0 %3631
      %v3642 = vunpack.c.l.b16 %v3575
      %v3643 = vunpack.c.l.b16 %v3576
      %v3644 = vunpack.c.l.b16 %v3577
      %v3645 = vunpack.c.l.b16 %v3578
      %v3646 = vunpack.c.l.b16 %v3579
      %v3647 = vunpack.c.l.b16 %v3580
      %v3648 = vunpack.c.l.b16 %v3581
      %v3649 = vunpack.c.l.b16 %v3582
      %v3650 = vpack.c.b16 %v3643, %v3642
      %v3651 = vpack.c.b16 %v3645, %v3644
      %v3652 = vpack.c.b16 %v3647, %v3646
      %v3653 = vpack.c.b16 %v3649, %v3648
      %v3655 = vsel %vm717, %v3650, 0
      %v3658 = vsel %vm717, %v3651, 0
      %v3661 = vsel %vm717, %v3652, 0
      %v3664 = vsel %vm717, %v3653, 0
      %3666 = vmatprep.subr.bf16.mxu0 0
      %3667 = vmatpush1.bf16.msra.mxu0 0
      %3668 = vmatprep.subr.bf16.mxu0 0
      %3669 = vmatpush1.bf16.msra.mxu0 0
      %3670 = vmatprep.subr.bf16.mxu0 0
      %3671 = vmatpush1.bf16.msra.mxu0 0
      %3672 = vmatprep.subr.bf16.mxu0 0
      %3673 = vmatpush1.bf16.msra.mxu0 0
      %3674 = vmatprep.subr.bf16.mxu0 0
      %3675 = vmatpush1.bf16.msra.mxu0 0
      %3676 = vmatprep.subr.bf16.mxu0 0
      %3677 = vmatpush1.bf16.msra.mxu0 0
      %3678 = vmatprep.subr.bf16.mxu0 0
      %3679 = vmatpush1.bf16.msra.mxu0 %v3593
      %3680 = vmatprep.subr.bf16.mxu0 0
      %3681 = vmatpush1.bf16.msra.mxu0 %v3592
      %3682 = vmatprep.subr.bf16.mxu0 0
      %3683 = vmatpush2.bf16.msra.mxu0 0
      %3684 = vmatprep.subr.bf16.mxu0 0
      %3685 = vmatpush2.bf16.msra.mxu0 0
      %3686 = vmatprep.subr.bf16.mxu0 0
      %3687 = vmatpush2.bf16.msra.mxu0 0
      %3688 = vmatprep.subr.bf16.mxu0 0
      %3689 = vmatpush2.bf16.msra.mxu0 0
      %3690 = vmatprep.subr.bf16.mxu0 0
      %3691 = vmatpush2.bf16.msra.mxu0 0
      %3692 = vmatprep.subr.bf16.mxu0 0
      %3693 = vmatpush2.bf16.msra.mxu0 0
      %3694 = vmatprep.subr.bf16.mxu0 0
      %3695 = vmatpush2.bf16.msra.mxu0 0
      %3696 = vmatprep.subr.bf16.mxu0 0
      %3697 = vmatpush2.bf16.msra.mxu0 0
      %3698 = vmatprep.mubr.bf16.mxu0 0
      %3699 = vmatmul.mubr.bf16.gmra.mxu0 %v3655
      %v3700 = vpop.f32.mrf.mxu0
      %v3701 = vadd.f32 %v3597, %v3700
      %v3702 = vpop.f32.mrf.mxu0
      %v3703 = vpop.f32.mrf.mxu0
      %v3704 = vadd.f32 %v3602, %v3703
      %v3705 = vpop.f32.mrf.mxu0
      %3706 = vmatprep.mubr.bf16.mxu0 0
      %3707 = vmatmul.mubr.bf16.gmra.mxu0 %v3658
      %v3708 = vpop.f32.mrf.mxu0
      %v3709 = vadd.f32 %v3607, %v3708
      %v3710 = vpop.f32.mrf.mxu0
      %v3711 = vpop.f32.mrf.mxu0
      %v3712 = vadd.f32 %v3612, %v3711
      %v3713 = vpop.f32.mrf.mxu0
      %3714 = vmatprep.mubr.bf16.mxu0 0
      %3715 = vmatmul.mubr.bf16.gmra.mxu0 %v3661
      %v3716 = vpop.f32.mrf.mxu0
      %v3717 = vadd.f32 %v3617, %v3716
      %v3718 = vpop.f32.mrf.mxu0
      %v3719 = vpop.f32.mrf.mxu0
      %v3720 = vadd.f32 %v3622, %v3719
      %v3721 = vpop.f32.mrf.mxu0
      %3722 = vmatprep.mubr.bf16.mxu0 0
      %3723 = vmatmul.mubr.bf16.gmra.mxu0 %v3664
      %v3724 = vpop.f32.mrf.mxu0
      %v3725 = vadd.f32 %v3627, %v3724
      %v3726 = vpop.f32.mrf.mxu0
      %v3727 = vpop.f32.mrf.mxu0
      %v3728 = vadd.f32 %v3632, %v3727
      %v3729 = vpop.f32.mrf.mxu0
      %3730 = vdwg.mxu0
      %v3731 = vmul.f32 %v3701, 0.5
      %v3732 = vmul.f32 %v3704, 0.5
      %v3733 = vmul.f32 %v3709, 0.5
      %v3734 = vmul.f32 %v3712, 0.5
      %v3735 = vmul.f32 %v3717, 0.5
      %v3736 = vmul.f32 %v3720, 0.5
      %v3737 = vmul.f32 %v3725, 0.5
      %v3738 = vmul.f32 %v3728, 0.5
      %v3739 = vmul.f32 %v3701, 0.044715
      %v3740 = vmul.f32 %v3704, 0.044715
      %v3741 = vmul.f32 %v3709, 0.044715
      %v3742 = vmul.f32 %v3712, 0.044715
      %v3743 = vmul.f32 %v3717, 0.044715
      %v3744 = vmul.f32 %v3720, 0.044715
      %v3745 = vmul.f32 %v3725, 0.044715
      %v3746 = vmul.f32 %v3728, 0.044715
      %v3747 = vmul.f32 %v3739, %v3701
      %v3748 = vmul.f32 %v3740, %v3704
      %v3749 = vmul.f32 %v3741, %v3709
      %v3750 = vmul.f32 %v3742, %v3712
      %v3751 = vmul.f32 %v3743, %v3717
      %v3752 = vmul.f32 %v3744, %v3720
      %v3753 = vmul.f32 %v3745, %v3725
      %v3754 = vmul.f32 %v3746, %v3728
      %v3755 = vmul.f32 %v3747, %v3701
      %v3756 = vmul.f32 %v3748, %v3704
      %v3757 = vmul.f32 %v3749, %v3709
      %v3758 = vmul.f32 %v3750, %v3712
      %v3759 = vmul.f32 %v3751, %v3717
      %v3760 = vmul.f32 %v3752, %v3720
      %v3761 = vmul.f32 %v3753, %v3725
      %v3762 = vmul.f32 %v3754, %v3728
      %v3763 = vadd.f32 %v3701, %v3755
      %v3764 = vadd.f32 %v3704, %v3756
      %v3765 = vadd.f32 %v3709, %v3757
      %v3766 = vadd.f32 %v3712, %v3758
      %v3767 = vadd.f32 %v3717, %v3759
      %v3768 = vadd.f32 %v3720, %v3760
      %v3769 = vadd.f32 %v3725, %v3761
      %v3770 = vadd.f32 %v3728, %v3762
      %v3771 = vmul.f32 %v3763, 0.7978846
      %v3772 = vmul.f32 %v3764, 0.7978846
      %v3773 = vmul.f32 %v3765, 0.7978846
      %v3774 = vmul.f32 %v3766, 0.7978846
      %v3775 = vmul.f32 %v3767, 0.7978846
      %v3776 = vmul.f32 %v3768, 0.7978846
      %v3777 = vmul.f32 %v3769, 0.7978846
      %v3778 = vmul.f32 %v3770, 0.7978846
      %v3779 = vtanh.pop %v3771
      %v3780 = vtanh.pop %v3772
      %v3781 = vtanh.pop %v3773
      %v3782 = vtanh.pop %v3774
      %v3783 = vtanh.pop %v3775
      %v3784 = vtanh.pop %v3776
      %v3785 = vtanh.pop %v3777
      %v3786 = vtanh.pop %v3778
      %v3787 = vadd.f32 %v3779, 1.0
      %v3788 = vadd.f32 %v3780, 1.0
      %v3789 = vadd.f32 %v3781, 1.0
      %v3790 = vadd.f32 %v3782, 1.0
      %v3791 = vadd.f32 %v3783, 1.0
      %v3792 = vadd.f32 %v3784, 1.0
      %v3793 = vadd.f32 %v3785, 1.0
      %v3794 = vadd.f32 %v3786, 1.0
      %v3795 = vmul.f32 %v3731, %v3787
      %v3796 = vmul.f32 %v3732, %v3788
      %v3797 = vmul.f32 %v3733, %v3789
      %v3798 = vmul.f32 %v3734, %v3790
      %v3799 = vmul.f32 %v3735, %v3791
      %v3800 = vmul.f32 %v3736, %v3792
      %v3801 = vmul.f32 %v3737, %v3793
      %v3802 = vmul.f32 %v3738, %v3794
      %s3803 = scalar_lea.vmem %s12, 16
      %v3804 = vld [vmem:[%s3803] sm:$0xf]
      %v3805 = vld [vmem:[%s3803 + $0x4] sm:$0xf]
      %v3806 = vld [vmem:[%s3803 + $0x8] sm:$0xf]
      %v3807 = vld [vmem:[%s3803 + $0xc] sm:$0xf]
      %s3808 = scalar_lea.vmem %s13, 32
      %v3809 = vld [vmem:[%s3808] sm:$0xff]
      %v3810 = vld [vmem:[%s3808 + $0x8] sm:$0xff]
      %v3811 = vld [vmem:[%s3808 + $0x10] sm:$0xff]
      %v3812 = vld [vmem:[%s3808 + $0x18] sm:$0xff]
      %v3813 = vpack.c.bf16 %v3796, %v3795
      %v3814 = vpack.c.bf16 %v3798, %v3797
      %v3815 = vpack.c.bf16 %v3800, %v3799
      %v3816 = vpack.c.bf16 %v3802, %v3801
      %3818 = vset.pattern.permute.xlu0 0
      %3819 = vperm.xlu0 %3818, %v3809
      %v3820 = vpop.permute.xlu0 %3819
      %3823 = vset.pattern.permute.xlu0 0
      %3824 = vperm.xlu0 %3823, %v3810
      %v3825 = vpop.permute.xlu0 %3824
      %3828 = vset.pattern.permute.xlu0 0
      %3829 = vperm.xlu0 %3828, %v3811
      %v3830 = vpop.permute.xlu0 %3829
      %3833 = vset.pattern.permute.xlu0 0
      %3834 = vperm.xlu0 %3833, %v3812
      %v3835 = vpop.permute.xlu0 %3834
      %v3841 = vunpack.c.l.b16 %v3804
      %v3842 = vunpack.c.l.b16 %v3805
      %v3843 = vunpack.c.l.b16 %v3806
      %v3844 = vunpack.c.l.b16 %v3807
      %v3845 = vpack.c.b16 %v3842, %v3841
      %v3846 = vpack.c.b16 %v3844, %v3843
      %v3848 = vsel %vm2140, %v3845, 0
      %v3851 = vsel %vm2140, %v3846, 0
      %3853 = vmatprep.subr.bf16.mxu0 0
      %3854 = vmatpush1.bf16.msra.mxu0 0
      %3855 = vmatprep.subr.bf16.mxu0 0
      %3856 = vmatpush1.bf16.msra.mxu0 0
      %3857 = vmatprep.subr.bf16.mxu0 0
      %3858 = vmatpush1.bf16.msra.mxu0 0
      %3859 = vmatprep.subr.bf16.mxu0 0
      %3860 = vmatpush1.bf16.msra.mxu0 0
      %3861 = vmatprep.subr.bf16.mxu0 0
      %3862 = vmatpush1.bf16.msra.mxu0 %v3816
      %3863 = vmatprep.subr.bf16.mxu0 0
      %3864 = vmatpush1.bf16.msra.mxu0 %v3815
      %3865 = vmatprep.subr.bf16.mxu0 0
      %3866 = vmatpush1.bf16.msra.mxu0 %v3814
      %3867 = vmatprep.subr.bf16.mxu0 0
      %3868 = vmatpush1.bf16.msra.mxu0 %v3813
      %3869 = vmatprep.subr.bf16.mxu0 0
      %3870 = vmatpush2.bf16.msra.mxu0 0
      %3871 = vmatprep.subr.bf16.mxu0 0
      %3872 = vmatpush2.bf16.msra.mxu0 0
      %3873 = vmatprep.subr.bf16.mxu0 0
      %3874 = vmatpush2.bf16.msra.mxu0 0
      %3875 = vmatprep.subr.bf16.mxu0 0
      %3876 = vmatpush2.bf16.msra.mxu0 0
      %3877 = vmatprep.subr.bf16.mxu0 0
      %3878 = vmatpush2.bf16.msra.mxu0 0
      %3879 = vmatprep.subr.bf16.mxu0 0
      %3880 = vmatpush2.bf16.msra.mxu0 0
      %3881 = vmatprep.subr.bf16.mxu0 0
      %3882 = vmatpush2.bf16.msra.mxu0 0
      %3883 = vmatprep.subr.bf16.mxu0 0
      %3884 = vmatpush2.bf16.msra.mxu0 0
      %3885 = vmatprep.mubr.bf16.mxu0 0
      %3886 = vmatmul.mubr.bf16.gmra.mxu0 %v3848
      %v3887 = vpop.f32.mrf.mxu0
      %v3888 = vadd.f32 %v3820, %v3887
      %v3889 = vpop.f32.mrf.mxu0
      %v3890 = vpop.f32.mrf.mxu0
      %v3891 = vadd.f32 %v3825, %v3890
      %v3892 = vpop.f32.mrf.mxu0
      %3893 = vmatprep.mubr.bf16.mxu0 0
      %3894 = vmatmul.mubr.bf16.gmra.mxu0 %v3851
      %v3895 = vpop.f32.mrf.mxu0
      %v3896 = vadd.f32 %v3830, %v3895
      %v3897 = vpop.f32.mrf.mxu0
      %v3898 = vpop.f32.mrf.mxu0
      %v3899 = vadd.f32 %v3835, %v3898
      %v3900 = vpop.f32.mrf.mxu0
      %3901 = vdwg.mxu0
      %v3902 = vadd.f32 %v3470, %v3888
      %v3903 = vadd.f32 %v3471, %v3891
      %v3904 = vadd.f32 %v3472, %v3896
      %v3905 = vadd.f32 %v3473, %v3899
      %3906 = vst.msk [vmem:[%s487] sm:$0xff] %vm509, %v3902
      %3907 = vst.msk [vmem:[%s487 + $0x8] sm:$0xff] %vm509, %v3903
      %3908 = vst.msk [vmem:[%s487 + $0x10] sm:$0xff] %vm509, %v3904
      %3909 = vst.msk [vmem:[%s487 + $0x18] sm:$0xff] %vm509, %v3905
      %p3910 = scmp.lt.s32.totalorder %s25, 1
      %s3911 = scalar_select %p3910, %s25, 1
      %s3912 = smul.addr %s3911, 4
      %s3913 = smul.addr %s3912, 8
      %s3914 = scalar_lea.vmem %s14, %s3913
      // Predicated region
      $region77: #{transformer_block_forward.1} parent=75 // pred_check
        %p3915 = pneg %p347
      $region78: #{transformer_block_forward.1} parent=75 // pred_check_branch
        %3917 = sbr.rel (%p3915) target = $region80
      $region79: #{transformer_block_forward.1} parent=75 // pred_region
        _
      $region80: #{transformer_block_forward.1} parent=75 // pred_fallthru
        _
    $region76: #{transformer_block_forward.1} parent=5 // pred_fallthru
      _
    %p3918 = scmp.le.s32.totalorder 2, %s20
    // Predicated region
    $region81: #{transformer_block_forward.1} parent=5 // pred_check
      %p3919 = pneg %p3918
    $region82: #{transformer_block_forward.1} parent=5 // pred_check_branch
      %3921 = sbr.rel (%p3919) target = $region84
    $region83: #{transformer_block_forward.1} parent=5 // pred_region
      %s3922 = ssub.s32 %s20, 2
      // Predicated region
      $region85: #{transformer_block_forward.1} parent=83 // pred_check
        %p3923 = pneg %p353
      $region86: #{transformer_block_forward.1} parent=83 // pred_check_branch
        %3925 = sbr.rel (%p3923) target = $region88
      $region87: #{transformer_block_forward.1} parent=83 // pred_region
        %p3926 = scmp.lt.s32.totalorder %s26, 1
        %s3927 = scalar_select %p3926, %s26, 1
        %s3928 = smul.addr %s3927, 4
        %s3929 = smul.addr %s3928, 8
        %s3930 = scalar_lea.vmem %s14, %s3929
      $region88: #{transformer_block_forward.1} parent=83 // pred_fallthru
        _
    $region84: #{transformer_block_forward.1} parent=5 // pred_fallthru
      _
  $region6: #{transformer_block_forward.1} parent=0 // loop_footer
    %s24 = sadd.s32 1, %s20
  $region7: #{transformer_block_forward.1} parent=0 // loop_footer_branch
    %19 = sbr.rel target = $region3
  $region8: #{transformer_block_forward.1} parent=0 // loop_exit
    _

</llo_original>
